<compile_context>
chip_gen: v7x
topology: tpu7x:2x2x1
jax: 0.10.0
libtpu: 0.0.40
codegen_flags: <defaults>
</compile_context>

<pallas_src>
import jax
import jax.numpy as jnp
from jax import lax
from jax.experimental import pallas as pl
from jax.experimental.pallas import tpu as pltpu

# Full-f32 matmuls everywhere (kernel dots in interpret mode and the pure-JAX
# reference).  On hardware, Mosaic f32 matmuls are exact multi-pass anyway.
jax.config.update("jax_default_matmul_precision", "highest")

block_size = 32
n_embd = 128
num_heads = 4
head_size = n_embd // num_heads  # 32


def mha_kernel(x_ref, wqkv_ref, wp_ref, bp_ref, o_ref):
    # x_ref: (BB, T, C); wqkv: (C, 3C) with sqrt(C) folded into q cols;
    # wp: (C, C); bp: (1, C); o_ref: (BB, T, C)
    BB, T, C = x_ref.shape
    M = BB * T
    hs = C // num_heads
    x2 = x_ref[...].reshape(M, C)

    # Fused Q/K/V projection: one MXU pass with N = 3C.
    qkv = jnp.dot(x2, wqkv_ref[...], preferred_element_type=jnp.float32)   # (M, 3C)

    # causal (tril) mask: row >= col is kept
    row = lax.broadcasted_iota(jnp.int32, (T, T), 0)
    col = lax.broadcasted_iota(jnp.int32, (T, T), 1)
    keep = row >= col

    outs = []
    # Static unroll over the 4 heads; per-head temporaries are (BB, T, T) with
    # T <= 32, so live-range pressure is negligible.
    for h in range(num_heads):
        q_h = qkv[:, h * hs:(h + 1) * hs].reshape(BB, T, hs)
        k_h = qkv[:, C + h * hs:C + (h + 1) * hs].reshape(BB, T, hs)
        v_h = qkv[:, 2 * C + h * hs:2 * C + (h + 1) * hs].reshape(BB, T, hs)

        # scores: contract on the head dim -> no explicit k transpose
        s = jnp.einsum('bqd,bkd->bqk', q_h, k_h,
                       preferred_element_type=jnp.float32)                 # (BB, T, T)
        s = jnp.where(keep, s, -jnp.inf)

        m = jnp.max(s, axis=-1, keepdims=True)
        p = jnp.exp(s - m)
        p = p / jnp.sum(p, axis=-1, keepdims=True)      # exact softmax normalization

        outs.append(jnp.einsum('bqk,bkd->bqd', p, v_h,
                               preferred_element_type=jnp.float32))        # (BB, T, hs)

    # Lane-concat the head outputs into their contiguous 32-lane slabs, then a
    # single K=128 projection and one bias add.
    cat = jnp.concatenate(outs, axis=-1).reshape(M, C)                      # (M, C)
    out = jnp.dot(cat, wp_ref[...], preferred_element_type=jnp.float32) + bp_ref[...]
    o_ref[...] = out.reshape(BB, T, C).astype(o_ref.dtype)


def multi_head_attention(x, wq, wk, wv, wp, bp, *, block_b=None):
    """x: (B, T, C).  wq/wk/wv/wp: (C, C) in (in, out) layout.  bp: (C,)."""
    B, T0, C = x.shape
    assert C == n_embd

    # Pad T to a multiple of 8 (f32 sublane count) so in-kernel reshapes stay
    # layout-free.  Padded query rows are sliced off; padded key columns are
    # never attended to by real queries (causal mask).
    pad_t = (-T0) % 8
    if pad_t:
        x = jnp.pad(x, ((0, 0), (0, pad_t), (0, 0)))
    T = T0 + pad_t

    if block_b is None:
        # Aim for ~512 rows (BB*T) per grid step to fill the MXU M dimension
        # and amortize per-step overhead; fall back to a divisor of B.
        target_rows = 512
        block_b = max(1, min(B, target_rows // max(T, 1)))
        while B % block_b:
            block_b -= 1
        # Keep the (parallel) grid length >= 2 when possible so both v7x
        # TensorCores get work.
        if B // block_b < 2 and B > 1:
            block_b = max(1, B // 2)
            while B % block_b:
                block_b -= 1
    assert B % block_b == 0

    # One-time weight prep: fuse QKV and fold the sqrt(C) logit scale into the
    # q columns (mask value is -inf, so scale-before-mask == scale-after-mask).
    scale = C ** 0.5
    wqkv = jnp.concatenate([wq * scale, wk, wv], axis=1).astype(x.dtype)    # (C, 3C)
    bp2 = bp.reshape(1, C).astype(x.dtype)
    wp = wp.astype(x.dtype)

    out = pl.pallas_call(
        mha_kernel,
        out_shape=jax.ShapeDtypeStruct((B, T, C), x.dtype),
        grid_spec=pltpu.PrefetchScalarGridSpec(
            num_scalar_prefetch=0,
            grid=(B // block_b,),
            in_specs=[
                pl.BlockSpec((block_b, T, C), lambda b: (b, 0, 0)),
                pl.BlockSpec((C, 3 * C), lambda b: (0, 0)),
                pl.BlockSpec((C, C), lambda b: (0, 0)),
                pl.BlockSpec((1, C), lambda b: (0, 0)),
            ],
            out_specs=pl.BlockSpec((block_b, T, C), lambda b: (b, 0, 0)),
        ),
        compiler_params=pltpu.CompilerParams(
            dimension_semantics=("parallel",),
            # Explicit scoped-VMEM budget so larger blocks compile on v5e's
            # 16 MiB default; footprint here is only a few MiB.
            vmem_limit_bytes=32 * 1024 * 1024,
        ),
    )(x, wqkv, wp, bp2)

    if pad_t:
        out = out[:, :T0, :]
    return out


def reference(x, wq, wk, wv, wp, bp):
    B, T, C = x.shape
    q = x @ wq
    k = x @ wk
    v = x @ wv
    keep = jnp.tril(jnp.ones((T, T), bool))
    outs = []
    for h in range(num_heads):
        sl = slice(h * head_size, (h + 1) * head_size)
        wei = q[..., sl] @ jnp.swapaxes(k[..., sl], -1, -2)
        wei = jnp.where(keep, wei, -jnp.inf) * (C ** 0.5)
        wei = jax.nn.softmax(wei, axis=-1)
        outs.append(wei @ v[..., sl])
    cat = jnp.concatenate(outs, axis=-1)
    return cat @ wp + bp


if __name__ == "__main__":
    key = jax.random.PRNGKey(0)
    B, T, C = 2, 8, n_embd  # T <= block_size

    ks = jax.random.split(key, 7)
    x = jax.random.normal(ks[0], (B, T, C), jnp.float32)

    # PyTorch Linear weights are (out, in); build them that way then transpose
    # to (in, out) for the kernel.  Per-head q/k/v weights are concatenated
    # along the output dim (== torch.cat of head outputs along -1).
    def lin_w(k, out_dim, in_dim):
        bound = 1.0 / (in_dim ** 0.5)
        return jax.random.uniform(k, (out_dim, in_dim), jnp.float32, -bound, bound)

    wq_heads = [lin_w(kk, head_size, n_embd) for kk in jax.random.split(ks[1], num_heads)]
    wk_heads = [lin_w(kk, head_size, n_embd) for kk in jax.random.split(ks[2], num_heads)]
    wv_heads = [lin_w(kk, head_size, n_embd) for kk in jax.random.split(ks[3], num_heads)]
    wq = jnp.concatenate([w.T for w in wq_heads], axis=1)   # (C, C), (in, out)
    wk = jnp.concatenate([w.T for w in wk_heads], axis=1)
    wv = jnp.concatenate([w.T for w in wv_heads], axis=1)
    wp = lin_w(ks[4], n_embd, n_embd).T                      # (in, out)
    bp = jax.random.uniform(ks[5], (n_embd,), jnp.float32,
                            -1.0 / (n_embd ** 0.5), 1.0 / (n_embd ** 0.5))

    out = multi_head_attention(x, wq, wk, wv, wp, bp)
    out = jax.block_until_ready(out)

    ref = reference(x, wq, wk, wv, wp, bp)
    assert out.shape == (B, T, C)
    assert bool(jnp.allclose(out, ref, atol=2e-3, rtol=2e-3)), "mismatch vs reference"
    print("KERNEL_OK")
</pallas_src>

<mosaic_0001>
module attributes {stable_mosaic.version = 11 : i64} {
  func.func @mha_kernel(%arg0: i32, %arg1: memref<1x8x128xf32, #tpu.memory_space<vmem>>, %arg2: memref<128x384xf32, #tpu.memory_space<vmem>>, %arg3: memref<128x128xf32, #tpu.memory_space<vmem>>, %arg4: memref<1x128xf32, #tpu.memory_space<vmem>>, %arg5: memref<1x8x128xf32, #tpu.memory_space<vmem>>) attributes {dimension_semantics = [#tpu.dimension_semantics<parallel>], iteration_bounds = array<i64: 2>, scalar_prefetch = 0 : i64, scratch_operands = 0 : i64, tpu.core_type = #tpu.core_type<tc>, window_params = [{transform_indices = @transform_0, window_bounds = array<i64: 1, 8, 128>}, {pipeline_mode = #tpu.pipeline_mode<synchronous>, transform_indices = @transform_1, window_bounds = array<i64: 128, 384>}, {pipeline_mode = #tpu.pipeline_mode<synchronous>, transform_indices = @transform_2, window_bounds = array<i64: 128, 128>}, {pipeline_mode = #tpu.pipeline_mode<synchronous>, transform_indices = @transform_3, window_bounds = array<i64: 1, 128>}, {transform_indices = @transform_4, window_bounds = array<i64: 1, 8, 128>}]} {
    %c0 = arith.constant 0 : index
    %c0_0 = arith.constant 0 : index
    %c0_1 = arith.constant 0 : index
    %0 = vector.load %arg1[%c0, %c0_0, %c0_1] : memref<1x8x128xf32, #tpu.memory_space<vmem>>, vector<1x8x128xf32>
    %1 = vector.shape_cast %0 : vector<1x8x128xf32> to vector<8x128xf32>
    %c0_2 = arith.constant 0 : index
    %c0_3 = arith.constant 0 : index
    %2 = vector.load %arg2[%c0_2, %c0_3] : memref<128x384xf32, #tpu.memory_space<vmem>>, vector<128x384xf32>
    %cst = arith.constant dense<0.000000e+00> : vector<8x384xf32>
    %3 = tpu.matmul %1, %2, %cst {dimension_numbers = #tpu.dot_dimension_numbers<[1], [0], [0], [1], [0, 0, 1, 1], [], []>, precision = #tpu.contract_precision<fp32>} : vector<8x128xf32>, vector<128x384xf32>, vector<8x384xf32> -> vector<8x384xf32>
    %4 = tpu.iota {dimensions = array<i32: 0>} : vector<8x8xi32>
    %5 = tpu.iota {dimensions = array<i32: 1>} : vector<8x8xi32>
    %6 = arith.cmpi sge, %4, %5 : vector<8x8xi32>
    %7 = vector.extract_strided_slice %3 {offsets = [0, 0], sizes = [8, 32], strides = [1, 1]} : vector<8x384xf32> to vector<8x32xf32>
    %8 = vector.shape_cast %7 : vector<8x32xf32> to vector<1x8x32xf32>
    %9 = vector.extract_strided_slice %3 {offsets = [0, 128], sizes = [8, 32], strides = [1, 1]} : vector<8x384xf32> to vector<8x32xf32>
    %10 = vector.shape_cast %9 : vector<8x32xf32> to vector<1x8x32xf32>
    %11 = vector.extract_strided_slice %3 {offsets = [0, 256], sizes = [8, 32], strides = [1, 1]} : vector<8x384xf32> to vector<8x32xf32>
    %12 = vector.shape_cast %11 : vector<8x32xf32> to vector<1x8x32xf32>
    "tpu.trace_start"() <{level = 10 : i32, message = "bqd,bkd->bqk"}> : () -> ()
    %cst_4 = arith.constant dense<0.000000e+00> : vector<1x8x8xf32>
    %13 = tpu.matmul %8, %10, %cst_4 {dimension_numbers = #tpu.dot_dimension_numbers<[2], [2], [1], [1], [0, 0, 0, 1, 1, 1], [0], [0]>, precision = #tpu.contract_precision<fp32>} : vector<1x8x32xf32>, vector<1x8x32xf32>, vector<1x8x8xf32> -> vector<1x8x8xf32>
    %cst_5 = arith.constant 0xFF800000 : f32
    "tpu.trace_stop"() : () -> ()
    %14 = vector.shape_cast %6 : vector<8x8xi1> to vector<1x8x8xi1>
    %15 = vector.broadcast %cst_5 : f32 to vector<1x8x8xf32>
    %16 = arith.select %14, %13, %15 : vector<1x8x8xi1>, vector<1x8x8xf32>
    %cst_6 = arith.constant dense<0xFF800000> : vector<1x8xf32>
    %17 = vector.multi_reduction <maximumf>, %16, %cst_6 [2] : vector<1x8x8xf32> to vector<1x8xf32>
    %18 = vector.shape_cast %17 : vector<1x8xf32> to vector<1x8x1xf32>
    %19 = vector.broadcast %18 : vector<1x8x1xf32> to vector<1x8x8xf32>
    %20 = arith.subf %16, %19 : vector<1x8x8xf32>
    %21 = math.exp %20 : vector<1x8x8xf32>
    %cst_7 = arith.constant dense<0.000000e+00> : vector<1x8xf32>
    %22 = vector.multi_reduction <add>, %21, %cst_7 [2] : vector<1x8x8xf32> to vector<1x8xf32>
    %23 = vector.shape_cast %22 : vector<1x8xf32> to vector<1x8x1xf32>
    %24 = vector.broadcast %23 : vector<1x8x1xf32> to vector<1x8x8xf32>
    %25 = arith.divf %21, %24 : vector<1x8x8xf32>
    "tpu.trace_start"() <{level = 10 : i32, message = "bqk,bkd->bqd"}> : () -> ()
    %cst_8 = arith.constant dense<0.000000e+00> : vector<1x8x32xf32>
    %26 = tpu.matmul %25, %12, %cst_8 {dimension_numbers = #tpu.dot_dimension_numbers<[2], [1], [1], [2], [0, 0, 0, 1, 1, 2], [0], [0]>, precision = #tpu.contract_precision<fp32>} : vector<1x8x8xf32>, vector<1x8x32xf32>, vector<1x8x32xf32> -> vector<1x8x32xf32>
    "tpu.trace_stop"() : () -> ()
    %27 = vector.extract_strided_slice %3 {offsets = [0, 32], sizes = [8, 32], strides = [1, 1]} : vector<8x384xf32> to vector<8x32xf32>
    %28 = vector.shape_cast %27 : vector<8x32xf32> to vector<1x8x32xf32>
    %29 = vector.extract_strided_slice %3 {offsets = [0, 160], sizes = [8, 32], strides = [1, 1]} : vector<8x384xf32> to vector<8x32xf32>
    %30 = vector.shape_cast %29 : vector<8x32xf32> to vector<1x8x32xf32>
    %31 = vector.extract_strided_slice %3 {offsets = [0, 288], sizes = [8, 32], strides = [1, 1]} : vector<8x384xf32> to vector<8x32xf32>
    %32 = vector.shape_cast %31 : vector<8x32xf32> to vector<1x8x32xf32>
    "tpu.trace_start"() <{level = 10 : i32, message = "bqd,bkd->bqk"}> : () -> ()
    %cst_9 = arith.constant dense<0.000000e+00> : vector<1x8x8xf32>
    %33 = tpu.matmul %28, %30, %cst_9 {dimension_numbers = #tpu.dot_dimension_numbers<[2], [2], [1], [1], [0, 0, 0, 1, 1, 1], [0], [0]>, precision = #tpu.contract_precision<fp32>} : vector<1x8x32xf32>, vector<1x8x32xf32>, vector<1x8x8xf32> -> vector<1x8x8xf32>
    %cst_10 = arith.constant 0xFF800000 : f32
    "tpu.trace_stop"() : () -> ()
    %34 = vector.shape_cast %6 : vector<8x8xi1> to vector<1x8x8xi1>
    %35 = vector.broadcast %cst_10 : f32 to vector<1x8x8xf32>
    %36 = arith.select %34, %33, %35 : vector<1x8x8xi1>, vector<1x8x8xf32>
    %cst_11 = arith.constant dense<0xFF800000> : vector<1x8xf32>
    %37 = vector.multi_reduction <maximumf>, %36, %cst_11 [2] : vector<1x8x8xf32> to vector<1x8xf32>
    %38 = vector.shape_cast %37 : vector<1x8xf32> to vector<1x8x1xf32>
    %39 = vector.broadcast %38 : vector<1x8x1xf32> to vector<1x8x8xf32>
    %40 = arith.subf %36, %39 : vector<1x8x8xf32>
    %41 = math.exp %40 : vector<1x8x8xf32>
    %cst_12 = arith.constant dense<0.000000e+00> : vector<1x8xf32>
    %42 = vector.multi_reduction <add>, %41, %cst_12 [2] : vector<1x8x8xf32> to vector<1x8xf32>
    %43 = vector.shape_cast %42 : vector<1x8xf32> to vector<1x8x1xf32>
    %44 = vector.broadcast %43 : vector<1x8x1xf32> to vector<1x8x8xf32>
    %45 = arith.divf %41, %44 : vector<1x8x8xf32>
    "tpu.trace_start"() <{level = 10 : i32, message = "bqk,bkd->bqd"}> : () -> ()
    %cst_13 = arith.constant dense<0.000000e+00> : vector<1x8x32xf32>
    %46 = tpu.matmul %45, %32, %cst_13 {dimension_numbers = #tpu.dot_dimension_numbers<[2], [1], [1], [2], [0, 0, 0, 1, 1, 2], [0], [0]>, precision = #tpu.contract_precision<fp32>} : vector<1x8x8xf32>, vector<1x8x32xf32>, vector<1x8x32xf32> -> vector<1x8x32xf32>
    "tpu.trace_stop"() : () -> ()
    %47 = vector.extract_strided_slice %3 {offsets = [0, 64], sizes = [8, 32], strides = [1, 1]} : vector<8x384xf32> to vector<8x32xf32>
    %48 = vector.shape_cast %47 : vector<8x32xf32> to vector<1x8x32xf32>
    %49 = vector.extract_strided_slice %3 {offsets = [0, 192], sizes = [8, 32], strides = [1, 1]} : vector<8x384xf32> to vector<8x32xf32>
    %50 = vector.shape_cast %49 : vector<8x32xf32> to vector<1x8x32xf32>
    %51 = vector.extract_strided_slice %3 {offsets = [0, 320], sizes = [8, 32], strides = [1, 1]} : vector<8x384xf32> to vector<8x32xf32>
    %52 = vector.shape_cast %51 : vector<8x32xf32> to vector<1x8x32xf32>
    "tpu.trace_start"() <{level = 10 : i32, message = "bqd,bkd->bqk"}> : () -> ()
    %cst_14 = arith.constant dense<0.000000e+00> : vector<1x8x8xf32>
    %53 = tpu.matmul %48, %50, %cst_14 {dimension_numbers = #tpu.dot_dimension_numbers<[2], [2], [1], [1], [0, 0, 0, 1, 1, 1], [0], [0]>, precision = #tpu.contract_precision<fp32>} : vector<1x8x32xf32>, vector<1x8x32xf32>, vector<1x8x8xf32> -> vector<1x8x8xf32>
    %cst_15 = arith.constant 0xFF800000 : f32
    "tpu.trace_stop"() : () -> ()
    %54 = vector.shape_cast %6 : vector<8x8xi1> to vector<1x8x8xi1>
    %55 = vector.broadcast %cst_15 : f32 to vector<1x8x8xf32>
    %56 = arith.select %54, %53, %55 : vector<1x8x8xi1>, vector<1x8x8xf32>
    %cst_16 = arith.constant dense<0xFF800000> : vector<1x8xf32>
    %57 = vector.multi_reduction <maximumf>, %56, %cst_16 [2] : vector<1x8x8xf32> to vector<1x8xf32>
    %58 = vector.shape_cast %57 : vector<1x8xf32> to vector<1x8x1xf32>
    %59 = vector.broadcast %58 : vector<1x8x1xf32> to vector<1x8x8xf32>
    %60 = arith.subf %56, %59 : vector<1x8x8xf32>
    %61 = math.exp %60 : vector<1x8x8xf32>
    %cst_17 = arith.constant dense<0.000000e+00> : vector<1x8xf32>
    %62 = vector.multi_reduction <add>, %61, %cst_17 [2] : vector<1x8x8xf32> to vector<1x8xf32>
    %63 = vector.shape_cast %62 : vector<1x8xf32> to vector<1x8x1xf32>
    %64 = vector.broadcast %63 : vector<1x8x1xf32> to vector<1x8x8xf32>
    %65 = arith.divf %61, %64 : vector<1x8x8xf32>
    "tpu.trace_start"() <{level = 10 : i32, message = "bqk,bkd->bqd"}> : () -> ()
    %cst_18 = arith.constant dense<0.000000e+00> : vector<1x8x32xf32>
    %66 = tpu.matmul %65, %52, %cst_18 {dimension_numbers = #tpu.dot_dimension_numbers<[2], [1], [1], [2], [0, 0, 0, 1, 1, 2], [0], [0]>, precision = #tpu.contract_precision<fp32>} : vector<1x8x8xf32>, vector<1x8x32xf32>, vector<1x8x32xf32> -> vector<1x8x32xf32>
    "tpu.trace_stop"() : () -> ()
    %67 = vector.extract_strided_slice %3 {offsets = [0, 96], sizes = [8, 32], strides = [1, 1]} : vector<8x384xf32> to vector<8x32xf32>
    %68 = vector.shape_cast %67 : vector<8x32xf32> to vector<1x8x32xf32>
    %69 = vector.extract_strided_slice %3 {offsets = [0, 224], sizes = [8, 32], strides = [1, 1]} : vector<8x384xf32> to vector<8x32xf32>
    %70 = vector.shape_cast %69 : vector<8x32xf32> to vector<1x8x32xf32>
    %71 = vector.extract_strided_slice %3 {offsets = [0, 352], sizes = [8, 32], strides = [1, 1]} : vector<8x384xf32> to vector<8x32xf32>
    %72 = vector.shape_cast %71 : vector<8x32xf32> to vector<1x8x32xf32>
    "tpu.trace_start"() <{level = 10 : i32, message = "bqd,bkd->bqk"}> : () -> ()
    %cst_19 = arith.constant dense<0.000000e+00> : vector<1x8x8xf32>
    %73 = tpu.matmul %68, %70, %cst_19 {dimension_numbers = #tpu.dot_dimension_numbers<[2], [2], [1], [1], [0, 0, 0, 1, 1, 1], [0], [0]>, precision = #tpu.contract_precision<fp32>} : vector<1x8x32xf32>, vector<1x8x32xf32>, vector<1x8x8xf32> -> vector<1x8x8xf32>
    %cst_20 = arith.constant 0xFF800000 : f32
    "tpu.trace_stop"() : () -> ()
    %74 = vector.shape_cast %6 : vector<8x8xi1> to vector<1x8x8xi1>
    %75 = vector.broadcast %cst_20 : f32 to vector<1x8x8xf32>
    %76 = arith.select %74, %73, %75 : vector<1x8x8xi1>, vector<1x8x8xf32>
    %cst_21 = arith.constant dense<0xFF800000> : vector<1x8xf32>
    %77 = vector.multi_reduction <maximumf>, %76, %cst_21 [2] : vector<1x8x8xf32> to vector<1x8xf32>
    %78 = vector.shape_cast %77 : vector<1x8xf32> to vector<1x8x1xf32>
    %79 = vector.broadcast %78 : vector<1x8x1xf32> to vector<1x8x8xf32>
    %80 = arith.subf %76, %79 : vector<1x8x8xf32>
    %81 = math.exp %80 : vector<1x8x8xf32>
    %cst_22 = arith.constant dense<0.000000e+00> : vector<1x8xf32>
    %82 = vector.multi_reduction <add>, %81, %cst_22 [2] : vector<1x8x8xf32> to vector<1x8xf32>
    %83 = vector.shape_cast %82 : vector<1x8xf32> to vector<1x8x1xf32>
    %84 = vector.broadcast %83 : vector<1x8x1xf32> to vector<1x8x8xf32>
    %85 = arith.divf %81, %84 : vector<1x8x8xf32>
    "tpu.trace_start"() <{level = 10 : i32, message = "bqk,bkd->bqd"}> : () -> ()
    %cst_23 = arith.constant dense<0.000000e+00> : vector<1x8x32xf32>
    %86 = tpu.matmul %85, %72, %cst_23 {dimension_numbers = #tpu.dot_dimension_numbers<[2], [1], [1], [2], [0, 0, 0, 1, 1, 2], [0], [0]>, precision = #tpu.contract_precision<fp32>} : vector<1x8x8xf32>, vector<1x8x32xf32>, vector<1x8x32xf32> -> vector<1x8x32xf32>
    "tpu.trace_stop"() : () -> ()
    %87 = tpu.concatenate %26, %46, %66, %86 in 2 : vector<1x8x32xf32>, vector<1x8x32xf32>, vector<1x8x32xf32>, vector<1x8x32xf32> -> vector<1x8x128xf32>
    %88 = vector.shape_cast %87 : vector<1x8x128xf32> to vector<8x128xf32>
    %c0_24 = arith.constant 0 : index
    %c0_25 = arith.constant 0 : index
    %89 = vector.load %arg3[%c0_24, %c0_25] : memref<128x128xf32, #tpu.memory_space<vmem>>, vector<128x128xf32>
    %cst_26 = arith.constant dense<0.000000e+00> : vector<8x128xf32>
    %90 = tpu.matmul %88, %89, %cst_26 {dimension_numbers = #tpu.dot_dimension_numbers<[1], [0], [0], [1], [0, 0, 1, 1], [], []>, precision = #tpu.contract_precision<fp32>} : vector<8x128xf32>, vector<128x128xf32>, vector<8x128xf32> -> vector<8x128xf32>
    %c0_27 = arith.constant 0 : index
    %c0_28 = arith.constant 0 : index
    %91 = vector.load %arg4[%c0_27, %c0_28] : memref<1x128xf32, #tpu.memory_space<vmem>>, vector<1x128xf32>
    %92 = vector.broadcast %91 : vector<1x128xf32> to vector<8x128xf32>
    %93 = arith.addf %90, %92 : vector<8x128xf32>
    %94 = vector.shape_cast %93 : vector<8x128xf32> to vector<1x8x128xf32>
    %c0_29 = arith.constant 0 : index
    %c0_30 = arith.constant 0 : index
    %c0_31 = arith.constant 0 : index
    %95 = vector.load %arg5[%c0_29, %c0_30, %c0_31] : memref<1x8x128xf32, #tpu.memory_space<vmem>>, vector<1x8x128xf32>
    tpu.vector_store %arg5[%c0_29, %c0_30, %c0_31], %94 {strides = array<i32>} : memref<1x8x128xf32, #tpu.memory_space<vmem>>, vector<1x8x128xf32>,
    return
  }
  func.func @transform_0(%arg0: i32) -> (i32, i32, i32) {
    %c0_i32 = arith.constant 0 : i32
    %c0_i32_0 = arith.constant 0 : i32
    %c0_i32_1 = arith.constant 0 : i32
    return %arg0, %c0_i32, %c0_i32_0 : i32, i32, i32
  }
  func.func @transform_1(%arg0: i32) -> (i32, i32) {
    %c0_i32 = arith.constant 0 : i32
    %c0_i32_0 = arith.constant 0 : i32
    %c0_i32_1 = arith.constant 0 : i32
    return %c0_i32, %c0_i32_0 : i32, i32
  }
  func.func @transform_2(%arg0: i32) -> (i32, i32) {
    %c0_i32 = arith.constant 0 : i32
    %c0_i32_0 = arith.constant 0 : i32
    %c0_i32_1 = arith.constant 0 : i32
    return %c0_i32, %c0_i32_0 : i32, i32
  }
  func.func @transform_3(%arg0: i32) -> (i32, i32) {
    %c0_i32 = arith.constant 0 : i32
    %c0_i32_0 = arith.constant 0 : i32
    %c0_i32_1 = arith.constant 0 : i32
    return %c0_i32, %c0_i32_0 : i32, i32
  }
  func.func @transform_4(%arg0: i32) -> (i32, i32, i32) {
    %c0_i32 = arith.constant 0 : i32
    %c0_i32_0 = arith.constant 0 : i32
    %c0_i32_1 = arith.constant 0 : i32
    return %arg0, %c0_i32, %c0_i32_0 : i32, i32, i32
  }
}

</mosaic_0001>

<llo_original>
// kernel: tpu_custom_call.1
$region0: #{tpu_custom_call.1}
  #allocation0 [shape = 'u32[]', space=smem, size = 0x4, offset = 0x4, fixed_abs, tag = 'smem constant byte address 0x4 - core index']
  #allocation1 [shape = 'u32[144,128]{1,0:T(1,128)}', space=vmem, size = 0x12000, scoped, tag = 'internal scratch']
  %s0 = inlined_call_operand.hbm [shape: f32[2,8,128], index: 0, kind: input, shape index: {}]
  %s1 = inlined_call_operand.hbm [shape: f32[128,384], index: 1, kind: input, shape index: {}]
  %s2 = inlined_call_operand.hbm [shape: f32[128,128], index: 2, kind: input, shape index: {}]
  %s3 = inlined_call_operand.vmem [shape: f32[1,128], index: 3, kind: input, shape index: {}]
  %s4 = inlined_call_operand.hbm [shape: f32[2,8,128], index: 4, kind: output, shape index: {}]
  %s5 = sld [smem:[#allocation0]]
  $region61: #{tpu_custom_call.1} parent=0
    _
  %s7 = ssub.s32 1, %s5
  %s8 = scalar_select 0, %s7, %s5
  $region1: #{tpu_custom_call.1} parent=0
    #allocation2 [shape = 'u8[8192]{0}', space=vmem, size = 0x2000, scoped, tag = 'input window, operand 0']
    #allocation3 [shape = 's32[2]{0}', space=sflag, size = 0x8, scoped, tag = 'scoped memory for tpu_custom_call.1']
    #allocation4 [shape = 's32[2]{0}', space=sflag, size = 0x8, scoped, tag = 'scoped memory for tpu_custom_call.1']
    #allocation5 [shape = 'u8[196608]{0}', space=vmem, size = 0x30000, scoped, tag = 'input window, operand 1, single buffered']
    #allocation6 [shape = 's32[1]{0}', space=sflag, size = 0x4, scoped, tag = 'scoped memory for tpu_custom_call.1']
    #allocation7 [shape = 'u8[65536]{0}', space=vmem, size = 0x10000, scoped, tag = 'input window, operand 2, single buffered']
    #allocation8 [shape = 'u8[8192]{0}', space=vmem, size = 0x2000, scoped, tag = 'output window, operand 0']
    %9 = vsyncpa [#allocation3], 0
    %s10 = scalar_lea.sflag [#allocation3], 1
    %11 = vsyncpa %s10, 0
    %12 = vsyncpa [#allocation6], 0
    %13 = vsyncpa [#allocation4], 0
    %s14 = scalar_lea.sflag [#allocation4], 1
    %15 = vsyncpa %s14, 0
    loop: start=0, step=1, limit=4
    $region2: #{tpu_custom_call.1} parent=1 // loop_pre_header
      _
    $region3: #{tpu_custom_call.1} parent=1 // loop_header
      %s17 = sphi 0, %s21
      %p18 = scmp.ge.s32.totalorder %s17, 4
      %s27 = sphi 0, %s29
      %s30 = sphi 0, %s27
      %s31 = sphi 0, %s30
      %s47 = sphi 0, %s31
      %s51 = sphi 0, %s51
      %s53 = sphi 0, %s51
      %s54 = sphi 0, %s53
      %s68 = sphi 0, %s54
      %s72 = sphi 0, %s72
      %s74 = sphi 0, %s72
      %s75 = sphi 0, %s74
      %s89 = sphi 0, %s75
      %s93 = sphi 0, %s93
      %s95 = sphi 0, %s93
      %s96 = sphi 0, %s95
      %s110 = sphi 0, %s96
      %s116 = sphi 0, %s118
      %s119 = sphi 0, %s116
      %s120 = sphi 0, %s119
      %s136 = sphi 0, %s120
    $region4: #{tpu_custom_call.1} parent=1 // loop_header_branch
      %20 = sbr.rel (%p18) target = $region8
    $region5: #{tpu_custom_call.1} parent=1 // loop_body
      %s22 = ssub.s32 %s17, 1
      %s23 = ssub.s32 %s17, 2
      %s24 = sadd.s32 %s17, 1
      %s25 = ssub.s32 %s17, %s24
      %p26 = scmp.eq.s32.totalorder %s25, 0
      %s28 = sadd.s32 %s27, 1
      %s29 = scalar_select %p26, %s27, %s28
      %p32 = pneg %p26
      %p33 = scmp.eq.s32.totalorder %s17, 1
      %p34 = por %p32, %p33
      %p35 = scmp.ne.s32.totalorder %s27, %s30
      %p36 = scmp.eq.s32.totalorder %s17, 0
      %p37 = por %p35, %p36
      %p38 = scmp.ne.s32.totalorder %s27, %s30
      %p39 = scmp.eq.s32.totalorder %s22, 1
      %p40 = por %p38, %p39
      %p41 = scmp.ne.s32.totalorder %s30, %s31
      %p42 = scmp.eq.s32.totalorder %s22, 0
      %p43 = por %p41, %p42
      %p44 = scmp.ne.s32.totalorder %s30, %s31
      %p45 = scmp.eq.s32.totalorder %s23, 1
      %p46 = por %p44, %p45
      %p48 = scmp.ne.s32.totalorder %s31, %s47
      %p49 = scmp.eq.s32.totalorder %s23, 0
      %p50 = por %p48, %p49
      %s52 = sadd.s32 %s51, 1
      %p55 = scmp.eq.s32.totalorder %s17, 1
      %p56 = scmp.ne.s32.totalorder %s51, %s53
      %p57 = scmp.eq.s32.totalorder %s17, 0
      %p58 = por %p56, %p57
      %p59 = scmp.ne.s32.totalorder %s51, %s53
      %p60 = scmp.eq.s32.totalorder %s22, 1
      %p61 = por %p59, %p60
      %p62 = scmp.ne.s32.totalorder %s53, %s54
      %p63 = scmp.eq.s32.totalorder %s22, 0
      %p64 = por %p62, %p63
      %p65 = scmp.ne.s32.totalorder %s53, %s54
      %p66 = scmp.eq.s32.totalorder %s23, 1
      %p67 = por %p65, %p66
      %p69 = scmp.ne.s32.totalorder %s54, %s68
      %p70 = scmp.eq.s32.totalorder %s23, 0
      %p71 = por %p69, %p70
      %s73 = sadd.s32 %s72, 1
      %p76 = scmp.eq.s32.totalorder %s17, 1
      %p77 = scmp.ne.s32.totalorder %s72, %s74
      %p78 = scmp.eq.s32.totalorder %s17, 0
      %p79 = por %p77, %p78
      %p80 = scmp.ne.s32.totalorder %s72, %s74
      %p81 = scmp.eq.s32.totalorder %s22, 1
      %p82 = por %p80, %p81
      %p83 = scmp.ne.s32.totalorder %s74, %s75
      %p84 = scmp.eq.s32.totalorder %s22, 0
      %p85 = por %p83, %p84
      %p86 = scmp.ne.s32.totalorder %s74, %s75
      %p87 = scmp.eq.s32.totalorder %s23, 1
      %p88 = por %p86, %p87
      %p90 = scmp.ne.s32.totalorder %s75, %s89
      %p91 = scmp.eq.s32.totalorder %s23, 0
      %p92 = por %p90, %p91
      %s94 = sadd.s32 %s93, 1
      %p97 = scmp.eq.s32.totalorder %s17, 1
      %p98 = scmp.ne.s32.totalorder %s93, %s95
      %p99 = scmp.eq.s32.totalorder %s17, 0
      %p100 = por %p98, %p99
      %p101 = scmp.ne.s32.totalorder %s93, %s95
      %p102 = scmp.eq.s32.totalorder %s22, 1
      %p103 = por %p101, %p102
      %p104 = scmp.ne.s32.totalorder %s95, %s96
      %p105 = scmp.eq.s32.totalorder %s22, 0
      %p106 = por %p104, %p105
      %p107 = scmp.ne.s32.totalorder %s95, %s96
      %p108 = scmp.eq.s32.totalorder %s23, 1
      %p109 = por %p107, %p108
      %p111 = scmp.ne.s32.totalorder %s96, %s110
      %p112 = scmp.eq.s32.totalorder %s23, 0
      %p113 = por %p111, %p112
      %s114 = ssub.s32 %s17, %s24
      %p115 = scmp.eq.s32.totalorder %s114, 0
      %s117 = sadd.s32 %s116, 1
      %s118 = scalar_select %p115, %s116, %s117
      %p121 = pneg %p115
      %p122 = scmp.eq.s32.totalorder %s17, 1
      %p123 = por %p121, %p122
      %p124 = scmp.ne.s32.totalorder %s116, %s119
      %p125 = scmp.eq.s32.totalorder %s17, 0
      %p126 = por %p124, %p125
      %p127 = scmp.ne.s32.totalorder %s116, %s119
      %p128 = scmp.eq.s32.totalorder %s22, 1
      %p129 = por %p127, %p128
      %p130 = scmp.ne.s32.totalorder %s119, %s120
      %p131 = scmp.eq.s32.totalorder %s22, 0
      %p132 = por %p130, %p131
      %p133 = scmp.ne.s32.totalorder %s119, %s120
      %p134 = scmp.eq.s32.totalorder %s23, 1
      %p135 = por %p133, %p134
      %p137 = scmp.ne.s32.totalorder %s120, %s136
      %p138 = scmp.eq.s32.totalorder %s23, 0
      %p139 = por %p137, %p138
      %p140 = scmp.le.s32.totalorder 1, %s17
      %p141 = scmp.lt.s32.totalorder %s17, 3
      %p142 = pnand %p140, %p141
      %p143 = pneg %p142
      // Predicated region
      $region9: #{tpu_custom_call.1} parent=5 // pred_check
        _
      $region10: #{tpu_custom_call.1} parent=5 // pred_check_branch
        %145 = sbr.rel (%p142) target = $region12
      $region11: #{tpu_custom_call.1} parent=5 // pred_region
        %s146 = ssub.s32 %s17, 1
        // Predicated region
        $region13: #{tpu_custom_call.1} parent=11 // pred_check
          %p147 = pneg %p64
        $region14: #{tpu_custom_call.1} parent=11 // pred_check_branch
          %149 = sbr.rel (%p147) target = $region16
        $region15: #{tpu_custom_call.1} parent=11 // pred_region
          %s151 = ssub.s32 6144, 6144
          %152 = vsyncadd [#allocation6], %s151
          %s153 = sshll.u32 [#allocation5], 4
          %s154 = int_to_ptr.vmem [resolvable:$true] %s153
          %159 = dma.hbm_to_vmem [thread:$0]  %s1, 6144, %s154, [#allocation6], 384, 384, 24
        $region16: #{tpu_custom_call.1} parent=11 // pred_fallthru
          _
        // Predicated region
        $region17: #{tpu_custom_call.1} parent=11 // pred_check
          %p160 = pneg %p85
        $region18: #{tpu_custom_call.1} parent=11 // pred_check_branch
          %162 = sbr.rel (%p160) target = $region20
        $region19: #{tpu_custom_call.1} parent=11 // pred_region
          %s164 = ssub.s32 2048, 2048
          %165 = vsyncadd [#allocation6], %s164
          %s166 = sshll.u32 [#allocation7], 4
          %s167 = int_to_ptr.vmem [resolvable:$true] %s166
          %172 = dma.hbm_to_vmem [thread:$0]  %s2, 2048, %s167, [#allocation6], 128, 128, 8
        $region20: #{tpu_custom_call.1} parent=11 // pred_fallthru
          _
        // Predicated region
        $region21: #{tpu_custom_call.1} parent=11 // pred_check
          %p173 = pneg %p106
        $region22: #{tpu_custom_call.1} parent=11 // pred_check_branch
          %175 = sbr.rel (%p173) target = $region24
        $region23: #{tpu_custom_call.1} parent=11 // pred_region
          _
        $region24: #{tpu_custom_call.1} parent=11 // pred_fallthru
          _
      $region12: #{tpu_custom_call.1} parent=5 // pred_fallthru
        _
      %p176 = scmp.lt.s32.totalorder %s17, 2
      // Predicated region
      $region25: #{tpu_custom_call.1} parent=5 // pred_check
        %p177 = pneg %p176
      $region26: #{tpu_custom_call.1} parent=5 // pred_check_branch
        %179 = sbr.rel (%p177) target = $region28
      $region27: #{tpu_custom_call.1} parent=5 // pred_region
        // Predicated region
        $region29: #{tpu_custom_call.1} parent=27 // pred_check
          %p180 = pneg %p37
        $region30: #{tpu_custom_call.1} parent=27 // pred_check_branch
          %182 = sbr.rel (%p180) target = $region32
        $region31: #{tpu_custom_call.1} parent=27 // pred_region
          %s183 = sand.u32 %s27, 1
          %s184 = scalar_lea.sflag [#allocation3], %s183
          %s185 = sand.u32 %s27, 1
          %s186 = smul.addr %s185, 8
          %s187 = scalar_lea.vmem [#allocation2], %s186
          %s189 = ssub.s32 128, 128
          %190 = vsyncadd %s184, %s189
          %s191 = smul.addr %s17, 128
          %s192 = scalar_lea.hbm %s0, %s191
          %s194 = sshll.u32 %s187, 4
          %s195 = int_to_ptr.vmem [resolvable:$true] %s194
          %197 = dma.hbm_to_vmem [thread:$0]  %s192, 128, %s195, %s184
        $region32: #{tpu_custom_call.1} parent=27 // pred_fallthru
          _
      $region28: #{tpu_custom_call.1} parent=5 // pred_fallthru
        _
      %p198 = scmp.le.s32.totalorder 1, %s17
      %p199 = scmp.lt.s32.totalorder %s17, 3
      %p200 = pnand %p198, %p199
      %p201 = pneg %p200
      // Predicated region
      $region33: #{tpu_custom_call.1} parent=5 // pred_check
        _
      $region34: #{tpu_custom_call.1} parent=5 // pred_check_branch
        %203 = sbr.rel (%p200) target = $region36
      $region35: #{tpu_custom_call.1} parent=5 // pred_region
        %s204 = ssub.s32 %s17, 1
        %s205 = sand.u32 %s30, 1
        %s206 = scalar_lea.sflag [#allocation3], %s205
        %s207 = sand.u32 %s30, 1
        %s208 = smul.addr %s207, 8
        %s209 = scalar_lea.vmem [#allocation2], %s208
        // Predicated region
        $region37: #{tpu_custom_call.1} parent=35 // pred_check
          %p210 = pneg %p43
        $region38: #{tpu_custom_call.1} parent=35 // pred_check_branch
          %212 = sbr.rel (%p210) target = $region40
        $region39: #{tpu_custom_call.1} parent=35 // pred_region
          %213 = dma.done %s206, 128
        $region40: #{tpu_custom_call.1} parent=35 // pred_fallthru
          _
        // Predicated region
        $region41: #{tpu_custom_call.1} parent=35 // pred_check
          %p214 = pneg %p64
        $region42: #{tpu_custom_call.1} parent=35 // pred_check_branch
          %216 = sbr.rel (%p214) target = $region44
        $region43: #{tpu_custom_call.1} parent=35 // pred_region
          %217 = dma.done [#allocation6], 6144
        $region44: #{tpu_custom_call.1} parent=35 // pred_fallthru
          _
        // Predicated region
        $region45: #{tpu_custom_call.1} parent=35 // pred_check
          %p218 = pneg %p85
        $region46: #{tpu_custom_call.1} parent=35 // pred_check_branch
          %220 = sbr.rel (%p218) target = $region48
        $region47: #{tpu_custom_call.1} parent=35 // pred_region
          %221 = dma.done [#allocation6], 2048
        $region48: #{tpu_custom_call.1} parent=35 // pred_fallthru
          _
        %s222 = sand.u32 %s30, 1
        %s223 = scalar_lea.sflag [#allocation3], %s222
        %s224 = sand.u32 %s30, 1
        %s225 = smul.addr %s224, 8
        %s226 = scalar_lea.vmem [#allocation2], %s225
        %p227 = pneg %p43
        %p228 = pneg %p40
        %p229 = pneg %p64
        %p230 = pneg %p61
        %p231 = pneg %p85
        %p232 = pneg %p82
        %p233 = pneg %p106
        %p234 = pneg %p103
        %p235 = pneg %p132
        %p236 = pneg %p129
        %s237 = sand.u32 %s119, 1
        %s238 = scalar_lea.sflag [#allocation4], %s237
        %s239 = sand.u32 %s119, 1
        %s240 = smul.addr %s239, 8
        %s241 = scalar_lea.vmem [#allocation8], %s240
        %v242 = vld [vmem:[%s209] sm:$0xff]
        %v243 = vld [vmem:[#allocation5] sm:$0xff]
        %v244 = vld [vmem:[#allocation5 + $0x8] sm:$0xff]
        %v245 = vld [vmem:[#allocation5 + $0x10] sm:$0xff]
        %v246 = vld [vmem:[#allocation5 + $0x18] sm:$0xff]
        %v247 = vld [vmem:[#allocation5 + $0x20] sm:$0xff]
        %v248 = vld [vmem:[#allocation5 + $0x28] sm:$0xff]
        %v249 = vld [vmem:[#allocation5 + $0x30] sm:$0xff]
        %v250 = vld [vmem:[#allocation5 + $0x38] sm:$0xff]
        %v251 = vld [vmem:[#allocation5 + $0x40] sm:$0xff]
        %v252 = vld [vmem:[#allocation5 + $0x48] sm:$0xff]
        %v253 = vld [vmem:[#allocation5 + $0x50] sm:$0xff]
        %v254 = vld [vmem:[#allocation5 + $0x58] sm:$0xff]
        %v255 = vld [vmem:[#allocation5 + $0x60] sm:$0xff]
        %v256 = vld [vmem:[#allocation5 + $0x68] sm:$0xff]
        %v257 = vld [vmem:[#allocation5 + $0x70] sm:$0xff]
        %v258 = vld [vmem:[#allocation5 + $0x78] sm:$0xff]
        %v259 = vld [vmem:[#allocation5 + $0x80] sm:$0xff]
        %v260 = vld [vmem:[#allocation5 + $0x88] sm:$0xff]
        %v261 = vld [vmem:[#allocation5 + $0x90] sm:$0xff]
        %v262 = vld [vmem:[#allocation5 + $0x98] sm:$0xff]
        %v263 = vld [vmem:[#allocation5 + $0xa0] sm:$0xff]
        %v264 = vld [vmem:[#allocation5 + $0xa8] sm:$0xff]
        %v265 = vld [vmem:[#allocation5 + $0xb0] sm:$0xff]
        %v266 = vld [vmem:[#allocation5 + $0xb8] sm:$0xff]
        %v267 = vld [vmem:[#allocation5 + $0xc0] sm:$0xff]
        %v268 = vld [vmem:[#allocation5 + $0xc8] sm:$0xff]
        %v269 = vld [vmem:[#allocation5 + $0xd0] sm:$0xff]
        %v270 = vld [vmem:[#allocation5 + $0xd8] sm:$0xff]
        %v271 = vld [vmem:[#allocation5 + $0xe0] sm:$0xff]
        %v272 = vld [vmem:[#allocation5 + $0xe8] sm:$0xff]
        %v273 = vld [vmem:[#allocation5 + $0xf0] sm:$0xff]
        %v274 = vld [vmem:[#allocation5 + $0xf8] sm:$0xff]
        %v275 = vld [vmem:[#allocation5 + $0x100] sm:$0xff]
        %v276 = vld [vmem:[#allocation5 + $0x108] sm:$0xff]
        %v277 = vld [vmem:[#allocation5 + $0x110] sm:$0xff]
        %v278 = vld [vmem:[#allocation5 + $0x118] sm:$0xff]
        %v279 = vld [vmem:[#allocation5 + $0x120] sm:$0xff]
        %v280 = vld [vmem:[#allocation5 + $0x128] sm:$0xff]
        %v281 = vld [vmem:[#allocation5 + $0x130] sm:$0xff]
        %v282 = vld [vmem:[#allocation5 + $0x138] sm:$0xff]
        %v283 = vld [vmem:[#allocation5 + $0x140] sm:$0xff]
        %v284 = vld [vmem:[#allocation5 + $0x148] sm:$0xff]
        %v285 = vld [vmem:[#allocation5 + $0x150] sm:$0xff]
        %v286 = vld [vmem:[#allocation5 + $0x158] sm:$0xff]
        %v287 = vld [vmem:[#allocation5 + $0x160] sm:$0xff]
        %v288 = vld [vmem:[#allocation5 + $0x168] sm:$0xff]
        %v289 = vld [vmem:[#allocation5 + $0x170] sm:$0xff]
        %v290 = vld [vmem:[#allocation5 + $0x178] sm:$0xff]
        %v291 = vand.u32 %v244, 4294901760
        %292 = vmatprep.subr.mxu0 %v291
        %v293 = vand.u32 %v243, 4294901760
        %294 = vmatpush1.msra.mxu0 %v293
        %v295 = vand.u32 %v247, 4294901760
        %296 = vmatprep.subr.mxu0 %v295
        %v297 = vand.u32 %v246, 4294901760
        %298 = vmatpush1.msra.mxu0 %v297
        %v299 = vand.u32 %v250, 4294901760
        %300 = vmatprep.subr.mxu0 %v299
        %v301 = vand.u32 %v249, 4294901760
        %302 = vmatpush1.msra.mxu0 %v301
        %v303 = vand.u32 %v253, 4294901760
        %304 = vmatprep.subr.mxu0 %v303
        %v305 = vand.u32 %v252, 4294901760
        %306 = vmatpush1.msra.mxu0 %v305
        %v307 = vand.u32 %v256, 4294901760
        %308 = vmatprep.subr.mxu0 %v307
        %v309 = vand.u32 %v255, 4294901760
        %310 = vmatpush1.msra.mxu0 %v309
        %v311 = vand.u32 %v259, 4294901760
        %312 = vmatprep.subr.mxu0 %v311
        %v313 = vand.u32 %v258, 4294901760
        %314 = vmatpush1.msra.mxu0 %v313
        %v315 = vand.u32 %v262, 4294901760
        %316 = vmatprep.subr.mxu0 %v315
        %v317 = vand.u32 %v261, 4294901760
        %318 = vmatpush1.msra.mxu0 %v317
        %v319 = vand.u32 %v265, 4294901760
        %320 = vmatprep.subr.mxu0 %v319
        %v321 = vand.u32 %v264, 4294901760
        %322 = vmatpush1.msra.mxu0 %v321
        %v323 = vand.u32 %v268, 4294901760
        %324 = vmatprep.subr.mxu0 %v323
        %v325 = vand.u32 %v267, 4294901760
        %326 = vmatpush1.msra.mxu0 %v325
        %v327 = vand.u32 %v271, 4294901760
        %328 = vmatprep.subr.mxu0 %v327
        %v329 = vand.u32 %v270, 4294901760
        %330 = vmatpush1.msra.mxu0 %v329
        %v331 = vand.u32 %v274, 4294901760
        %332 = vmatprep.subr.mxu0 %v331
        %v333 = vand.u32 %v273, 4294901760
        %334 = vmatpush1.msra.mxu0 %v333
        %v335 = vand.u32 %v277, 4294901760
        %336 = vmatprep.subr.mxu0 %v335
        %v337 = vand.u32 %v276, 4294901760
        %338 = vmatpush1.msra.mxu0 %v337
        %v339 = vand.u32 %v280, 4294901760
        %340 = vmatprep.subr.mxu0 %v339
        %v341 = vand.u32 %v279, 4294901760
        %342 = vmatpush1.msra.mxu0 %v341
        %v343 = vand.u32 %v283, 4294901760
        %344 = vmatprep.subr.mxu0 %v343
        %v345 = vand.u32 %v282, 4294901760
        %346 = vmatpush1.msra.mxu0 %v345
        %v347 = vand.u32 %v286, 4294901760
        %348 = vmatprep.subr.mxu0 %v347
        %v349 = vand.u32 %v285, 4294901760
        %350 = vmatpush1.msra.mxu0 %v349
        %v351 = vand.u32 %v289, 4294901760
        %352 = vmatprep.subr.mxu0 %v351
        %v353 = vand.u32 %v288, 4294901760
        %354 = vmatpush1.msra.mxu0 %v353
        %355 = vmatprep.subr.mxu0 0.0
        %356 = vmatpush1.msra.mxu0 0.0
        %357 = vmatprep.subr.mxu0 0.0
        %358 = vmatpush1.msra.mxu0 0.0
        %359 = vmatprep.subr.mxu0 0.0
        %360 = vmatpush1.msra.mxu0 0.0
        %361 = vmatprep.subr.mxu0 0.0
        %362 = vmatpush1.msra.mxu0 0.0
        %363 = vmatprep.subr.mxu0 0.0
        %364 = vmatpush1.msra.mxu0 0.0
        %365 = vmatprep.subr.mxu0 0.0
        %366 = vmatpush1.msra.mxu0 0.0
        %367 = vmatprep.subr.mxu0 0.0
        %368 = vmatpush1.msra.mxu0 0.0
        %369 = vmatprep.subr.mxu0 0.0
        %370 = vmatpush1.msra.mxu0 0.0
        %371 = vmatprep.subr.mxu0 0.0
        %372 = vmatpush1.msra.mxu0 0.0
        %373 = vmatprep.subr.mxu0 0.0
        %374 = vmatpush1.msra.mxu0 0.0
        %375 = vmatprep.subr.mxu0 0.0
        %376 = vmatpush1.msra.mxu0 0.0
        %377 = vmatprep.subr.mxu0 0.0
        %378 = vmatpush1.msra.mxu0 0.0
        %379 = vmatprep.subr.mxu0 0.0
        %380 = vmatpush1.msra.mxu0 0.0
        %381 = vmatprep.subr.mxu0 0.0
        %382 = vmatpush1.msra.mxu0 0.0
        %383 = vmatprep.subr.mxu0 0.0
        %384 = vmatpush1.msra.mxu0 0.0
        %385 = vmatprep.subr.mxu0 0.0
        %386 = vmatpush1.msra.mxu0 0.0
        %387 = vmatprep.mubr.f32.mxu0 0.0
        %v388 = vand.u32 %v242, 4294901760
        %v389 = vsub.f32 %v242, %v388
        %v390 = vand.u32 %v389, 4294901760
        %v391 = vsub.f32 %v389, %v390
        %v392 = vand.u32 %v391, 4294901760
        %393 = vmatmul.mubr.f32.gmra.mrb[0].mxu0 %v392
        %v394 = vpop.f32.mrb[0].mxu0
        %v395 = vadd.f32 0.0, %v394
        %v396 = vpop.f32.mrb[0].mxu0
        %v397 = vadd.f32 0.0, %v396
        %398 = vdwg.mxu0
        %v399 = vand.u32 %v244, 4294901760
        %v400 = vsub.f32 %v244, %v399
        %v401 = vand.u32 %v400, 4294901760
        %v402 = vsub.f32 %v400, %v401
        %v403 = vand.u32 %v402, 4294901760
        %404 = vmatprep.subr.mxu0 %v403
        %v405 = vand.u32 %v243, 4294901760
        %v406 = vsub.f32 %v243, %v405
        %v407 = vand.u32 %v406, 4294901760
        %v408 = vsub.f32 %v406, %v407
        %v409 = vand.u32 %v408, 4294901760
        %410 = vmatpush1.msra.mxu0 %v409
        %v411 = vand.u32 %v247, 4294901760
        %v412 = vsub.f32 %v247, %v411
        %v413 = vand.u32 %v412, 4294901760
        %v414 = vsub.f32 %v412, %v413
        %v415 = vand.u32 %v414, 4294901760
        %416 = vmatprep.subr.mxu0 %v415
        %v417 = vand.u32 %v246, 4294901760
        %v418 = vsub.f32 %v246, %v417
        %v419 = vand.u32 %v418, 4294901760
        %v420 = vsub.f32 %v418, %v419
        %v421 = vand.u32 %v420, 4294901760
        %422 = vmatpush1.msra.mxu0 %v421
        %v423 = vand.u32 %v250, 4294901760
        %v424 = vsub.f32 %v250, %v423
        %v425 = vand.u32 %v424, 4294901760
        %v426 = vsub.f32 %v424, %v425
        %v427 = vand.u32 %v426, 4294901760
        %428 = vmatprep.subr.mxu0 %v427
        %v429 = vand.u32 %v249, 4294901760
        %v430 = vsub.f32 %v249, %v429
        %v431 = vand.u32 %v430, 4294901760
        %v432 = vsub.f32 %v430, %v431
        %v433 = vand.u32 %v432, 4294901760
        %434 = vmatpush1.msra.mxu0 %v433
        %v435 = vand.u32 %v253, 4294901760
        %v436 = vsub.f32 %v253, %v435
        %v437 = vand.u32 %v436, 4294901760
        %v438 = vsub.f32 %v436, %v437
        %v439 = vand.u32 %v438, 4294901760
        %440 = vmatprep.subr.mxu0 %v439
        %v441 = vand.u32 %v252, 4294901760
        %v442 = vsub.f32 %v252, %v441
        %v443 = vand.u32 %v442, 4294901760
        %v444 = vsub.f32 %v442, %v443
        %v445 = vand.u32 %v444, 4294901760
        %446 = vmatpush1.msra.mxu0 %v445
        %v447 = vand.u32 %v256, 4294901760
        %v448 = vsub.f32 %v256, %v447
        %v449 = vand.u32 %v448, 4294901760
        %v450 = vsub.f32 %v448, %v449
        %v451 = vand.u32 %v450, 4294901760
        %452 = vmatprep.subr.mxu0 %v451
        %v453 = vand.u32 %v255, 4294901760
        %v454 = vsub.f32 %v255, %v453
        %v455 = vand.u32 %v454, 4294901760
        %v456 = vsub.f32 %v454, %v455
        %v457 = vand.u32 %v456, 4294901760
        %458 = vmatpush1.msra.mxu0 %v457
        %v459 = vand.u32 %v259, 4294901760
        %v460 = vsub.f32 %v259, %v459
        %v461 = vand.u32 %v460, 4294901760
        %v462 = vsub.f32 %v460, %v461
        %v463 = vand.u32 %v462, 4294901760
        %464 = vmatprep.subr.mxu0 %v463
        %v465 = vand.u32 %v258, 4294901760
        %v466 = vsub.f32 %v258, %v465
        %v467 = vand.u32 %v466, 4294901760
        %v468 = vsub.f32 %v466, %v467
        %v469 = vand.u32 %v468, 4294901760
        %470 = vmatpush1.msra.mxu0 %v469
        %v471 = vand.u32 %v262, 4294901760
        %v472 = vsub.f32 %v262, %v471
        %v473 = vand.u32 %v472, 4294901760
        %v474 = vsub.f32 %v472, %v473
        %v475 = vand.u32 %v474, 4294901760
        %476 = vmatprep.subr.mxu0 %v475
        %v477 = vand.u32 %v261, 4294901760
        %v478 = vsub.f32 %v261, %v477
        %v479 = vand.u32 %v478, 4294901760
        %v480 = vsub.f32 %v478, %v479
        %v481 = vand.u32 %v480, 4294901760
        %482 = vmatpush1.msra.mxu0 %v481
        %v483 = vand.u32 %v265, 4294901760
        %v484 = vsub.f32 %v265, %v483
        %v485 = vand.u32 %v484, 4294901760
        %v486 = vsub.f32 %v484, %v485
        %v487 = vand.u32 %v486, 4294901760
        %488 = vmatprep.subr.mxu0 %v487
        %v489 = vand.u32 %v264, 4294901760
        %v490 = vsub.f32 %v264, %v489
        %v491 = vand.u32 %v490, 4294901760
        %v492 = vsub.f32 %v490, %v491
        %v493 = vand.u32 %v492, 4294901760
        %494 = vmatpush1.msra.mxu0 %v493
        %v495 = vand.u32 %v268, 4294901760
        %v496 = vsub.f32 %v268, %v495
        %v497 = vand.u32 %v496, 4294901760
        %v498 = vsub.f32 %v496, %v497
        %v499 = vand.u32 %v498, 4294901760
        %500 = vmatprep.subr.mxu0 %v499
        %v501 = vand.u32 %v267, 4294901760
        %v502 = vsub.f32 %v267, %v501
        %v503 = vand.u32 %v502, 4294901760
        %v504 = vsub.f32 %v502, %v503
        %v505 = vand.u32 %v504, 4294901760
        %506 = vmatpush1.msra.mxu0 %v505
        %v507 = vand.u32 %v271, 4294901760
        %v508 = vsub.f32 %v271, %v507
        %v509 = vand.u32 %v508, 4294901760
        %v510 = vsub.f32 %v508, %v509
        %v511 = vand.u32 %v510, 4294901760
        %512 = vmatprep.subr.mxu0 %v511
        %v513 = vand.u32 %v270, 4294901760
        %v514 = vsub.f32 %v270, %v513
        %v515 = vand.u32 %v514, 4294901760
        %v516 = vsub.f32 %v514, %v515
        %v517 = vand.u32 %v516, 4294901760
        %518 = vmatpush1.msra.mxu0 %v517
        %v519 = vand.u32 %v274, 4294901760
        %v520 = vsub.f32 %v274, %v519
        %v521 = vand.u32 %v520, 4294901760
        %v522 = vsub.f32 %v520, %v521
        %v523 = vand.u32 %v522, 4294901760
        %524 = vmatprep.subr.mxu0 %v523
        %v525 = vand.u32 %v273, 4294901760
        %v526 = vsub.f32 %v273, %v525
        %v527 = vand.u32 %v526, 4294901760
        %v528 = vsub.f32 %v526, %v527
        %v529 = vand.u32 %v528, 4294901760
        %530 = vmatpush1.msra.mxu0 %v529
        %v531 = vand.u32 %v277, 4294901760
        %v532 = vsub.f32 %v277, %v531
        %v533 = vand.u32 %v532, 4294901760
        %v534 = vsub.f32 %v532, %v533
        %v535 = vand.u32 %v534, 4294901760
        %536 = vmatprep.subr.mxu0 %v535
        %v537 = vand.u32 %v276, 4294901760
        %v538 = vsub.f32 %v276, %v537
        %v539 = vand.u32 %v538, 4294901760
        %v540 = vsub.f32 %v538, %v539
        %v541 = vand.u32 %v540, 4294901760
        %542 = vmatpush1.msra.mxu0 %v541
        %v543 = vand.u32 %v280, 4294901760
        %v544 = vsub.f32 %v280, %v543
        %v545 = vand.u32 %v544, 4294901760
        %v546 = vsub.f32 %v544, %v545
        %v547 = vand.u32 %v546, 4294901760
        %548 = vmatprep.subr.mxu0 %v547
        %v549 = vand.u32 %v279, 4294901760
        %v550 = vsub.f32 %v279, %v549
        %v551 = vand.u32 %v550, 4294901760
        %v552 = vsub.f32 %v550, %v551
        %v553 = vand.u32 %v552, 4294901760
        %554 = vmatpush1.msra.mxu0 %v553
        %v555 = vand.u32 %v283, 4294901760
        %v556 = vsub.f32 %v283, %v555
        %v557 = vand.u32 %v556, 4294901760
        %v558 = vsub.f32 %v556, %v557
        %v559 = vand.u32 %v558, 4294901760
        %560 = vmatprep.subr.mxu0 %v559
        %v561 = vand.u32 %v282, 4294901760
        %v562 = vsub.f32 %v282, %v561
        %v563 = vand.u32 %v562, 4294901760
        %v564 = vsub.f32 %v562, %v563
        %v565 = vand.u32 %v564, 4294901760
        %566 = vmatpush1.msra.mxu0 %v565
        %v567 = vand.u32 %v286, 4294901760
        %v568 = vsub.f32 %v286, %v567
        %v569 = vand.u32 %v568, 4294901760
        %v570 = vsub.f32 %v568, %v569
        %v571 = vand.u32 %v570, 4294901760
        %572 = vmatprep.subr.mxu0 %v571
        %v573 = vand.u32 %v285, 4294901760
        %v574 = vsub.f32 %v285, %v573
        %v575 = vand.u32 %v574, 4294901760
        %v576 = vsub.f32 %v574, %v575
        %v577 = vand.u32 %v576, 4294901760
        %578 = vmatpush1.msra.mxu0 %v577
        %v579 = vand.u32 %v289, 4294901760
        %v580 = vsub.f32 %v289, %v579
        %v581 = vand.u32 %v580, 4294901760
        %v582 = vsub.f32 %v580, %v581
        %v583 = vand.u32 %v582, 4294901760
        %584 = vmatprep.subr.mxu0 %v583
        %v585 = vand.u32 %v288, 4294901760
        %v586 = vsub.f32 %v288, %v585
        %v587 = vand.u32 %v586, 4294901760
        %v588 = vsub.f32 %v586, %v587
        %v589 = vand.u32 %v588, 4294901760
        %590 = vmatpush1.msra.mxu0 %v589
        %591 = vmatprep.subr.mxu0 0.0
        %592 = vmatpush1.msra.mxu0 0.0
        %593 = vmatprep.subr.mxu0 0.0
        %594 = vmatpush1.msra.mxu0 0.0
        %595 = vmatprep.subr.mxu0 0.0
        %596 = vmatpush1.msra.mxu0 0.0
        %597 = vmatprep.subr.mxu0 0.0
        %598 = vmatpush1.msra.mxu0 0.0
        %599 = vmatprep.subr.mxu0 0.0
        %600 = vmatpush1.msra.mxu0 0.0
        %601 = vmatprep.subr.mxu0 0.0
        %602 = vmatpush1.msra.mxu0 0.0
        %603 = vmatprep.subr.mxu0 0.0
        %604 = vmatpush1.msra.mxu0 0.0
        %605 = vmatprep.subr.mxu0 0.0
        %606 = vmatpush1.msra.mxu0 0.0
        %607 = vmatprep.subr.mxu0 0.0
        %608 = vmatpush1.msra.mxu0 0.0
        %609 = vmatprep.subr.mxu0 0.0
        %610 = vmatpush1.msra.mxu0 0.0
        %611 = vmatprep.subr.mxu0 0.0
        %612 = vmatpush1.msra.mxu0 0.0
        %613 = vmatprep.subr.mxu0 0.0
        %614 = vmatpush1.msra.mxu0 0.0
        %615 = vmatprep.subr.mxu0 0.0
        %616 = vmatpush1.msra.mxu0 0.0
        %617 = vmatprep.subr.mxu0 0.0
        %618 = vmatpush1.msra.mxu0 0.0
        %619 = vmatprep.subr.mxu0 0.0
        %620 = vmatpush1.msra.mxu0 0.0
        %621 = vmatprep.subr.mxu0 0.0
        %622 = vmatpush1.msra.mxu0 0.0
        %623 = vmatprep.mubr.f32.mxu0 0.0
        %v624 = vand.u32 %v242, 4294901760
        %625 = vmatmul.mubr.f32.gmra.mrb[0].mxu0 %v624
        %v626 = vpop.f32.mrb[0].mxu0
        %v627 = vadd.f32 %v395, %v626
        %v628 = vpop.f32.mrb[0].mxu0
        %v629 = vadd.f32 %v397, %v628
        %630 = vdwg.mxu0
        %v631 = vand.u32 %v244, 4294901760
        %v632 = vsub.f32 %v244, %v631
        %633 = vmatprep.subr.mxu0 %v632
        %v634 = vand.u32 %v243, 4294901760
        %v635 = vsub.f32 %v243, %v634
        %636 = vmatpush1.msra.mxu0 %v635
        %v637 = vand.u32 %v247, 4294901760
        %v638 = vsub.f32 %v247, %v637
        %639 = vmatprep.subr.mxu0 %v638
        %v640 = vand.u32 %v246, 4294901760
        %v641 = vsub.f32 %v246, %v640
        %642 = vmatpush1.msra.mxu0 %v641
        %v643 = vand.u32 %v250, 4294901760
        %v644 = vsub.f32 %v250, %v643
        %645 = vmatprep.subr.mxu0 %v644
        %v646 = vand.u32 %v249, 4294901760
        %v647 = vsub.f32 %v249, %v646
        %648 = vmatpush1.msra.mxu0 %v647
        %v649 = vand.u32 %v253, 4294901760
        %v650 = vsub.f32 %v253, %v649
        %651 = vmatprep.subr.mxu0 %v650
        %v652 = vand.u32 %v252, 4294901760
        %v653 = vsub.f32 %v252, %v652
        %654 = vmatpush1.msra.mxu0 %v653
        %v655 = vand.u32 %v256, 4294901760
        %v656 = vsub.f32 %v256, %v655
        %657 = vmatprep.subr.mxu0 %v656
        %v658 = vand.u32 %v255, 4294901760
        %v659 = vsub.f32 %v255, %v658
        %660 = vmatpush1.msra.mxu0 %v659
        %v661 = vand.u32 %v259, 4294901760
        %v662 = vsub.f32 %v259, %v661
        %663 = vmatprep.subr.mxu0 %v662
        %v664 = vand.u32 %v258, 4294901760
        %v665 = vsub.f32 %v258, %v664
        %666 = vmatpush1.msra.mxu0 %v665
        %v667 = vand.u32 %v262, 4294901760
        %v668 = vsub.f32 %v262, %v667
        %669 = vmatprep.subr.mxu0 %v668
        %v670 = vand.u32 %v261, 4294901760
        %v671 = vsub.f32 %v261, %v670
        %672 = vmatpush1.msra.mxu0 %v671
        %v673 = vand.u32 %v265, 4294901760
        %v674 = vsub.f32 %v265, %v673
        %675 = vmatprep.subr.mxu0 %v674
        %v676 = vand.u32 %v264, 4294901760
        %v677 = vsub.f32 %v264, %v676
        %678 = vmatpush1.msra.mxu0 %v677
        %v679 = vand.u32 %v268, 4294901760
        %v680 = vsub.f32 %v268, %v679
        %681 = vmatprep.subr.mxu0 %v680
        %v682 = vand.u32 %v267, 4294901760
        %v683 = vsub.f32 %v267, %v682
        %684 = vmatpush1.msra.mxu0 %v683
        %v685 = vand.u32 %v271, 4294901760
        %v686 = vsub.f32 %v271, %v685
        %687 = vmatprep.subr.mxu0 %v686
        %v688 = vand.u32 %v270, 4294901760
        %v689 = vsub.f32 %v270, %v688
        %690 = vmatpush1.msra.mxu0 %v689
        %v691 = vand.u32 %v274, 4294901760
        %v692 = vsub.f32 %v274, %v691
        %693 = vmatprep.subr.mxu0 %v692
        %v694 = vand.u32 %v273, 4294901760
        %v695 = vsub.f32 %v273, %v694
        %696 = vmatpush1.msra.mxu0 %v695
        %v697 = vand.u32 %v277, 4294901760
        %v698 = vsub.f32 %v277, %v697
        %699 = vmatprep.subr.mxu0 %v698
        %v700 = vand.u32 %v276, 4294901760
        %v701 = vsub.f32 %v276, %v700
        %702 = vmatpush1.msra.mxu0 %v701
        %v703 = vand.u32 %v280, 4294901760
        %v704 = vsub.f32 %v280, %v703
        %705 = vmatprep.subr.mxu0 %v704
        %v706 = vand.u32 %v279, 4294901760
        %v707 = vsub.f32 %v279, %v706
        %708 = vmatpush1.msra.mxu0 %v707
        %v709 = vand.u32 %v283, 4294901760
        %v710 = vsub.f32 %v283, %v709
        %711 = vmatprep.subr.mxu0 %v710
        %v712 = vand.u32 %v282, 4294901760
        %v713 = vsub.f32 %v282, %v712
        %714 = vmatpush1.msra.mxu0 %v713
        %v715 = vand.u32 %v286, 4294901760
        %v716 = vsub.f32 %v286, %v715
        %717 = vmatprep.subr.mxu0 %v716
        %v718 = vand.u32 %v285, 4294901760
        %v719 = vsub.f32 %v285, %v718
        %720 = vmatpush1.msra.mxu0 %v719
        %v721 = vand.u32 %v289, 4294901760
        %v722 = vsub.f32 %v289, %v721
        %723 = vmatprep.subr.mxu0 %v722
        %v724 = vand.u32 %v288, 4294901760
        %v725 = vsub.f32 %v288, %v724
        %726 = vmatpush1.msra.mxu0 %v725
        %727 = vmatprep.subr.mxu0 0.0
        %728 = vmatpush1.msra.mxu0 0.0
        %729 = vmatprep.subr.mxu0 0.0
        %730 = vmatpush1.msra.mxu0 0.0
        %731 = vmatprep.subr.mxu0 0.0
        %732 = vmatpush1.msra.mxu0 0.0
        %733 = vmatprep.subr.mxu0 0.0
        %734 = vmatpush1.msra.mxu0 0.0
        %735 = vmatprep.subr.mxu0 0.0
        %736 = vmatpush1.msra.mxu0 0.0
        %737 = vmatprep.subr.mxu0 0.0
        %738 = vmatpush1.msra.mxu0 0.0
        %739 = vmatprep.subr.mxu0 0.0
        %740 = vmatpush1.msra.mxu0 0.0
        %741 = vmatprep.subr.mxu0 0.0
        %742 = vmatpush1.msra.mxu0 0.0
        %743 = vmatprep.subr.mxu0 0.0
        %744 = vmatpush1.msra.mxu0 0.0
        %745 = vmatprep.subr.mxu0 0.0
        %746 = vmatpush1.msra.mxu0 0.0
        %747 = vmatprep.subr.mxu0 0.0
        %748 = vmatpush1.msra.mxu0 0.0
        %749 = vmatprep.subr.mxu0 0.0
        %750 = vmatpush1.msra.mxu0 0.0
        %751 = vmatprep.subr.mxu0 0.0
        %752 = vmatpush1.msra.mxu0 0.0
        %753 = vmatprep.subr.mxu0 0.0
        %754 = vmatpush1.msra.mxu0 0.0
        %755 = vmatprep.subr.mxu0 0.0
        %756 = vmatpush1.msra.mxu0 0.0
        %757 = vmatprep.subr.mxu0 0.0
        %758 = vmatpush1.msra.mxu0 0.0
        %759 = vmatprep.mubr.f32.mxu0 0.0
        %v760 = vand.u32 %v242, 4294901760
        %v761 = vsub.f32 %v242, %v760
        %762 = vmatmul.mubr.f32.gmra.mrb[0].mxu0 %v761
        %v763 = vpop.f32.mrb[0].mxu0
        %v764 = vadd.f32 %v627, %v763
        %v765 = vpop.f32.mrb[0].mxu0
        %v766 = vadd.f32 %v629, %v765
        %767 = vdwg.mxu0
        %v768 = vand.u32 %v244, 4294901760
        %769 = vmatprep.subr.mxu0 %v768
        %v770 = vand.u32 %v243, 4294901760
        %771 = vmatpush1.msra.mxu0 %v770
        %v772 = vand.u32 %v247, 4294901760
        %773 = vmatprep.subr.mxu0 %v772
        %v774 = vand.u32 %v246, 4294901760
        %775 = vmatpush1.msra.mxu0 %v774
        %v776 = vand.u32 %v250, 4294901760
        %777 = vmatprep.subr.mxu0 %v776
        %v778 = vand.u32 %v249, 4294901760
        %779 = vmatpush1.msra.mxu0 %v778
        %v780 = vand.u32 %v253, 4294901760
        %781 = vmatprep.subr.mxu0 %v780
        %v782 = vand.u32 %v252, 4294901760
        %783 = vmatpush1.msra.mxu0 %v782
        %v784 = vand.u32 %v256, 4294901760
        %785 = vmatprep.subr.mxu0 %v784
        %v786 = vand.u32 %v255, 4294901760
        %787 = vmatpush1.msra.mxu0 %v786
        %v788 = vand.u32 %v259, 4294901760
        %789 = vmatprep.subr.mxu0 %v788
        %v790 = vand.u32 %v258, 4294901760
        %791 = vmatpush1.msra.mxu0 %v790
        %v792 = vand.u32 %v262, 4294901760
        %793 = vmatprep.subr.mxu0 %v792
        %v794 = vand.u32 %v261, 4294901760
        %795 = vmatpush1.msra.mxu0 %v794
        %v796 = vand.u32 %v265, 4294901760
        %797 = vmatprep.subr.mxu0 %v796
        %v798 = vand.u32 %v264, 4294901760
        %799 = vmatpush1.msra.mxu0 %v798
        %v800 = vand.u32 %v268, 4294901760
        %801 = vmatprep.subr.mxu0 %v800
        %v802 = vand.u32 %v267, 4294901760
        %803 = vmatpush1.msra.mxu0 %v802
        %v804 = vand.u32 %v271, 4294901760
        %805 = vmatprep.subr.mxu0 %v804
        %v806 = vand.u32 %v270, 4294901760
        %807 = vmatpush1.msra.mxu0 %v806
        %v808 = vand.u32 %v274, 4294901760
        %809 = vmatprep.subr.mxu0 %v808
        %v810 = vand.u32 %v273, 4294901760
        %811 = vmatpush1.msra.mxu0 %v810
        %v812 = vand.u32 %v277, 4294901760
        %813 = vmatprep.subr.mxu0 %v812
        %v814 = vand.u32 %v276, 4294901760
        %815 = vmatpush1.msra.mxu0 %v814
        %v816 = vand.u32 %v280, 4294901760
        %817 = vmatprep.subr.mxu0 %v816
        %v818 = vand.u32 %v279, 4294901760
        %819 = vmatpush1.msra.mxu0 %v818
        %v820 = vand.u32 %v283, 4294901760
        %821 = vmatprep.subr.mxu0 %v820
        %v822 = vand.u32 %v282, 4294901760
        %823 = vmatpush1.msra.mxu0 %v822
        %v824 = vand.u32 %v286, 4294901760
        %825 = vmatprep.subr.mxu0 %v824
        %v826 = vand.u32 %v285, 4294901760
        %827 = vmatpush1.msra.mxu0 %v826
        %v828 = vand.u32 %v289, 4294901760
        %829 = vmatprep.subr.mxu0 %v828
        %v830 = vand.u32 %v288, 4294901760
        %831 = vmatpush1.msra.mxu0 %v830
        %832 = vmatprep.subr.mxu0 0.0
        %833 = vmatpush1.msra.mxu0 0.0
        %834 = vmatprep.subr.mxu0 0.0
        %835 = vmatpush1.msra.mxu0 0.0
        %836 = vmatprep.subr.mxu0 0.0
        %837 = vmatpush1.msra.mxu0 0.0
        %838 = vmatprep.subr.mxu0 0.0
        %839 = vmatpush1.msra.mxu0 0.0
        %840 = vmatprep.subr.mxu0 0.0
        %841 = vmatpush1.msra.mxu0 0.0
        %842 = vmatprep.subr.mxu0 0.0
        %843 = vmatpush1.msra.mxu0 0.0
        %844 = vmatprep.subr.mxu0 0.0
        %845 = vmatpush1.msra.mxu0 0.0
        %846 = vmatprep.subr.mxu0 0.0
        %847 = vmatpush1.msra.mxu0 0.0
        %848 = vmatprep.subr.mxu0 0.0
        %849 = vmatpush1.msra.mxu0 0.0
        %850 = vmatprep.subr.mxu0 0.0
        %851 = vmatpush1.msra.mxu0 0.0
        %852 = vmatprep.subr.mxu0 0.0
        %853 = vmatpush1.msra.mxu0 0.0
        %854 = vmatprep.subr.mxu0 0.0
        %855 = vmatpush1.msra.mxu0 0.0
        %856 = vmatprep.subr.mxu0 0.0
        %857 = vmatpush1.msra.mxu0 0.0
        %858 = vmatprep.subr.mxu0 0.0
        %859 = vmatpush1.msra.mxu0 0.0
        %860 = vmatprep.subr.mxu0 0.0
        %861 = vmatpush1.msra.mxu0 0.0
        %862 = vmatprep.subr.mxu0 0.0
        %863 = vmatpush1.msra.mxu0 0.0
        %864 = vmatprep.mubr.f32.mxu0 0.0
        %v865 = vand.u32 %v242, 4294901760
        %v866 = vsub.f32 %v242, %v865
        %v867 = vand.u32 %v866, 4294901760
        %868 = vmatmul.mubr.f32.gmra.mrb[0].mxu0 %v867
        %v869 = vpop.f32.mrb[0].mxu0
        %v870 = vadd.f32 %v764, %v869
        %v871 = vpop.f32.mrb[0].mxu0
        %v872 = vadd.f32 %v766, %v871
        %873 = vdwg.mxu0
        %v874 = vand.u32 %v244, 4294901760
        %v875 = vsub.f32 %v244, %v874
        %v876 = vand.u32 %v875, 4294901760
        %877 = vmatprep.subr.mxu0 %v876
        %v878 = vand.u32 %v243, 4294901760
        %v879 = vsub.f32 %v243, %v878
        %v880 = vand.u32 %v879, 4294901760
        %881 = vmatpush1.msra.mxu0 %v880
        %v882 = vand.u32 %v247, 4294901760
        %v883 = vsub.f32 %v247, %v882
        %v884 = vand.u32 %v883, 4294901760
        %885 = vmatprep.subr.mxu0 %v884
        %v886 = vand.u32 %v246, 4294901760
        %v887 = vsub.f32 %v246, %v886
        %v888 = vand.u32 %v887, 4294901760
        %889 = vmatpush1.msra.mxu0 %v888
        %v890 = vand.u32 %v250, 4294901760
        %v891 = vsub.f32 %v250, %v890
        %v892 = vand.u32 %v891, 4294901760
        %893 = vmatprep.subr.mxu0 %v892
        %v894 = vand.u32 %v249, 4294901760
        %v895 = vsub.f32 %v249, %v894
        %v896 = vand.u32 %v895, 4294901760
        %897 = vmatpush1.msra.mxu0 %v896
        %v898 = vand.u32 %v253, 4294901760
        %v899 = vsub.f32 %v253, %v898
        %v900 = vand.u32 %v899, 4294901760
        %901 = vmatprep.subr.mxu0 %v900
        %v902 = vand.u32 %v252, 4294901760
        %v903 = vsub.f32 %v252, %v902
        %v904 = vand.u32 %v903, 4294901760
        %905 = vmatpush1.msra.mxu0 %v904
        %v906 = vand.u32 %v256, 4294901760
        %v907 = vsub.f32 %v256, %v906
        %v908 = vand.u32 %v907, 4294901760
        %909 = vmatprep.subr.mxu0 %v908
        %v910 = vand.u32 %v255, 4294901760
        %v911 = vsub.f32 %v255, %v910
        %v912 = vand.u32 %v911, 4294901760
        %913 = vmatpush1.msra.mxu0 %v912
        %v914 = vand.u32 %v259, 4294901760
        %v915 = vsub.f32 %v259, %v914
        %v916 = vand.u32 %v915, 4294901760
        %917 = vmatprep.subr.mxu0 %v916
        %v918 = vand.u32 %v258, 4294901760
        %v919 = vsub.f32 %v258, %v918
        %v920 = vand.u32 %v919, 4294901760
        %921 = vmatpush1.msra.mxu0 %v920
        %v922 = vand.u32 %v262, 4294901760
        %v923 = vsub.f32 %v262, %v922
        %v924 = vand.u32 %v923, 4294901760
        %925 = vmatprep.subr.mxu0 %v924
        %v926 = vand.u32 %v261, 4294901760
        %v927 = vsub.f32 %v261, %v926
        %v928 = vand.u32 %v927, 4294901760
        %929 = vmatpush1.msra.mxu0 %v928
        %v930 = vand.u32 %v265, 4294901760
        %v931 = vsub.f32 %v265, %v930
        %v932 = vand.u32 %v931, 4294901760
        %933 = vmatprep.subr.mxu0 %v932
        %v934 = vand.u32 %v264, 4294901760
        %v935 = vsub.f32 %v264, %v934
        %v936 = vand.u32 %v935, 4294901760
        %937 = vmatpush1.msra.mxu0 %v936
        %v938 = vand.u32 %v268, 4294901760
        %v939 = vsub.f32 %v268, %v938
        %v940 = vand.u32 %v939, 4294901760
        %941 = vmatprep.subr.mxu0 %v940
        %v942 = vand.u32 %v267, 4294901760
        %v943 = vsub.f32 %v267, %v942
        %v944 = vand.u32 %v943, 4294901760
        %945 = vmatpush1.msra.mxu0 %v944
        %v946 = vand.u32 %v271, 4294901760
        %v947 = vsub.f32 %v271, %v946
        %v948 = vand.u32 %v947, 4294901760
        %949 = vmatprep.subr.mxu0 %v948
        %v950 = vand.u32 %v270, 4294901760
        %v951 = vsub.f32 %v270, %v950
        %v952 = vand.u32 %v951, 4294901760
        %953 = vmatpush1.msra.mxu0 %v952
        %v954 = vand.u32 %v274, 4294901760
        %v955 = vsub.f32 %v274, %v954
        %v956 = vand.u32 %v955, 4294901760
        %957 = vmatprep.subr.mxu0 %v956
        %v958 = vand.u32 %v273, 4294901760
        %v959 = vsub.f32 %v273, %v958
        %v960 = vand.u32 %v959, 4294901760
        %961 = vmatpush1.msra.mxu0 %v960
        %v962 = vand.u32 %v277, 4294901760
        %v963 = vsub.f32 %v277, %v962
        %v964 = vand.u32 %v963, 4294901760
        %965 = vmatprep.subr.mxu0 %v964
        %v966 = vand.u32 %v276, 4294901760
        %v967 = vsub.f32 %v276, %v966
        %v968 = vand.u32 %v967, 4294901760
        %969 = vmatpush1.msra.mxu0 %v968
        %v970 = vand.u32 %v280, 4294901760
        %v971 = vsub.f32 %v280, %v970
        %v972 = vand.u32 %v971, 4294901760
        %973 = vmatprep.subr.mxu0 %v972
        %v974 = vand.u32 %v279, 4294901760
        %v975 = vsub.f32 %v279, %v974
        %v976 = vand.u32 %v975, 4294901760
        %977 = vmatpush1.msra.mxu0 %v976
        %v978 = vand.u32 %v283, 4294901760
        %v979 = vsub.f32 %v283, %v978
        %v980 = vand.u32 %v979, 4294901760
        %981 = vmatprep.subr.mxu0 %v980
        %v982 = vand.u32 %v282, 4294901760
        %v983 = vsub.f32 %v282, %v982
        %v984 = vand.u32 %v983, 4294901760
        %985 = vmatpush1.msra.mxu0 %v984
        %v986 = vand.u32 %v286, 4294901760
        %v987 = vsub.f32 %v286, %v986
        %v988 = vand.u32 %v987, 4294901760
        %989 = vmatprep.subr.mxu0 %v988
        %v990 = vand.u32 %v285, 4294901760
        %v991 = vsub.f32 %v285, %v990
        %v992 = vand.u32 %v991, 4294901760
        %993 = vmatpush1.msra.mxu0 %v992
        %v994 = vand.u32 %v289, 4294901760
        %v995 = vsub.f32 %v289, %v994
        %v996 = vand.u32 %v995, 4294901760
        %997 = vmatprep.subr.mxu0 %v996
        %v998 = vand.u32 %v288, 4294901760
        %v999 = vsub.f32 %v288, %v998
        %v1000 = vand.u32 %v999, 4294901760
        %1001 = vmatpush1.msra.mxu0 %v1000
        %1002 = vmatprep.subr.mxu0 0.0
        %1003 = vmatpush1.msra.mxu0 0.0
        %1004 = vmatprep.subr.mxu0 0.0
        %1005 = vmatpush1.msra.mxu0 0.0
        %1006 = vmatprep.subr.mxu0 0.0
        %1007 = vmatpush1.msra.mxu0 0.0
        %1008 = vmatprep.subr.mxu0 0.0
        %1009 = vmatpush1.msra.mxu0 0.0
        %1010 = vmatprep.subr.mxu0 0.0
        %1011 = vmatpush1.msra.mxu0 0.0
        %1012 = vmatprep.subr.mxu0 0.0
        %1013 = vmatpush1.msra.mxu0 0.0
        %1014 = vmatprep.subr.mxu0 0.0
        %1015 = vmatpush1.msra.mxu0 0.0
        %1016 = vmatprep.subr.mxu0 0.0
        %1017 = vmatpush1.msra.mxu0 0.0
        %1018 = vmatprep.subr.mxu0 0.0
        %1019 = vmatpush1.msra.mxu0 0.0
        %1020 = vmatprep.subr.mxu0 0.0
        %1021 = vmatpush1.msra.mxu0 0.0
        %1022 = vmatprep.subr.mxu0 0.0
        %1023 = vmatpush1.msra.mxu0 0.0
        %1024 = vmatprep.subr.mxu0 0.0
        %1025 = vmatpush1.msra.mxu0 0.0
        %1026 = vmatprep.subr.mxu0 0.0
        %1027 = vmatpush1.msra.mxu0 0.0
        %1028 = vmatprep.subr.mxu0 0.0
        %1029 = vmatpush1.msra.mxu0 0.0
        %1030 = vmatprep.subr.mxu0 0.0
        %1031 = vmatpush1.msra.mxu0 0.0
        %1032 = vmatprep.subr.mxu0 0.0
        %1033 = vmatpush1.msra.mxu0 0.0
        %1034 = vmatprep.mubr.f32.mxu0 0.0
        %v1035 = vand.u32 %v242, 4294901760
        %1036 = vmatmul.mubr.f32.gmra.mrb[0].mxu0 %v1035
        %v1037 = vpop.f32.mrb[0].mxu0
        %v1038 = vadd.f32 %v870, %v1037
        %v1039 = vpop.f32.mrb[0].mxu0
        %v1040 = vadd.f32 %v872, %v1039
        %1041 = vdwg.mxu0
        %v1042 = vand.u32 %v244, 4294901760
        %1043 = vmatprep.subr.mxu0 %v1042
        %v1044 = vand.u32 %v243, 4294901760
        %1045 = vmatpush1.msra.mxu0 %v1044
        %v1046 = vand.u32 %v247, 4294901760
        %1047 = vmatprep.subr.mxu0 %v1046
        %v1048 = vand.u32 %v246, 4294901760
        %1049 = vmatpush1.msra.mxu0 %v1048
        %v1050 = vand.u32 %v250, 4294901760
        %1051 = vmatprep.subr.mxu0 %v1050
        %v1052 = vand.u32 %v249, 4294901760
        %1053 = vmatpush1.msra.mxu0 %v1052
        %v1054 = vand.u32 %v253, 4294901760
        %1055 = vmatprep.subr.mxu0 %v1054
        %v1056 = vand.u32 %v252, 4294901760
        %1057 = vmatpush1.msra.mxu0 %v1056
        %v1058 = vand.u32 %v256, 4294901760
        %1059 = vmatprep.subr.mxu0 %v1058
        %v1060 = vand.u32 %v255, 4294901760
        %1061 = vmatpush1.msra.mxu0 %v1060
        %v1062 = vand.u32 %v259, 4294901760
        %1063 = vmatprep.subr.mxu0 %v1062
        %v1064 = vand.u32 %v258, 4294901760
        %1065 = vmatpush1.msra.mxu0 %v1064
        %v1066 = vand.u32 %v262, 4294901760
        %1067 = vmatprep.subr.mxu0 %v1066
        %v1068 = vand.u32 %v261, 4294901760
        %1069 = vmatpush1.msra.mxu0 %v1068
        %v1070 = vand.u32 %v265, 4294901760
        %1071 = vmatprep.subr.mxu0 %v1070
        %v1072 = vand.u32 %v264, 4294901760
        %1073 = vmatpush1.msra.mxu0 %v1072
        %v1074 = vand.u32 %v268, 4294901760
        %1075 = vmatprep.subr.mxu0 %v1074
        %v1076 = vand.u32 %v267, 4294901760
        %1077 = vmatpush1.msra.mxu0 %v1076
        %v1078 = vand.u32 %v271, 4294901760
        %1079 = vmatprep.subr.mxu0 %v1078
        %v1080 = vand.u32 %v270, 4294901760
        %1081 = vmatpush1.msra.mxu0 %v1080
        %v1082 = vand.u32 %v274, 4294901760
        %1083 = vmatprep.subr.mxu0 %v1082
        %v1084 = vand.u32 %v273, 4294901760
        %1085 = vmatpush1.msra.mxu0 %v1084
        %v1086 = vand.u32 %v277, 4294901760
        %1087 = vmatprep.subr.mxu0 %v1086
        %v1088 = vand.u32 %v276, 4294901760
        %1089 = vmatpush1.msra.mxu0 %v1088
        %v1090 = vand.u32 %v280, 4294901760
        %1091 = vmatprep.subr.mxu0 %v1090
        %v1092 = vand.u32 %v279, 4294901760
        %1093 = vmatpush1.msra.mxu0 %v1092
        %v1094 = vand.u32 %v283, 4294901760
        %1095 = vmatprep.subr.mxu0 %v1094
        %v1096 = vand.u32 %v282, 4294901760
        %1097 = vmatpush1.msra.mxu0 %v1096
        %v1098 = vand.u32 %v286, 4294901760
        %1099 = vmatprep.subr.mxu0 %v1098
        %v1100 = vand.u32 %v285, 4294901760
        %1101 = vmatpush1.msra.mxu0 %v1100
        %v1102 = vand.u32 %v289, 4294901760
        %1103 = vmatprep.subr.mxu0 %v1102
        %v1104 = vand.u32 %v288, 4294901760
        %1105 = vmatpush1.msra.mxu0 %v1104
        %1106 = vmatprep.subr.mxu0 0.0
        %1107 = vmatpush1.msra.mxu0 0.0
        %1108 = vmatprep.subr.mxu0 0.0
        %1109 = vmatpush1.msra.mxu0 0.0
        %1110 = vmatprep.subr.mxu0 0.0
        %1111 = vmatpush1.msra.mxu0 0.0
        %1112 = vmatprep.subr.mxu0 0.0
        %1113 = vmatpush1.msra.mxu0 0.0
        %1114 = vmatprep.subr.mxu0 0.0
        %1115 = vmatpush1.msra.mxu0 0.0
        %1116 = vmatprep.subr.mxu0 0.0
        %1117 = vmatpush1.msra.mxu0 0.0
        %1118 = vmatprep.subr.mxu0 0.0
        %1119 = vmatpush1.msra.mxu0 0.0
        %1120 = vmatprep.subr.mxu0 0.0
        %1121 = vmatpush1.msra.mxu0 0.0
        %1122 = vmatprep.subr.mxu0 0.0
        %1123 = vmatpush1.msra.mxu0 0.0
        %1124 = vmatprep.subr.mxu0 0.0
        %1125 = vmatpush1.msra.mxu0 0.0
        %1126 = vmatprep.subr.mxu0 0.0
        %1127 = vmatpush1.msra.mxu0 0.0
        %1128 = vmatprep.subr.mxu0 0.0
        %1129 = vmatpush1.msra.mxu0 0.0
        %1130 = vmatprep.subr.mxu0 0.0
        %1131 = vmatpush1.msra.mxu0 0.0
        %1132 = vmatprep.subr.mxu0 0.0
        %1133 = vmatpush1.msra.mxu0 0.0
        %1134 = vmatprep.subr.mxu0 0.0
        %1135 = vmatpush1.msra.mxu0 0.0
        %1136 = vmatprep.subr.mxu0 0.0
        %1137 = vmatpush1.msra.mxu0 0.0
        %1138 = vmatprep.mubr.f32.mxu0 0.0
        %v1139 = vand.u32 %v242, 4294901760
        %1140 = vmatmul.mubr.f32.gmra.mrb[0].mxu0 %v1139
        %v1141 = vpop.f32.mrb[0].mxu0
        %v1142 = vadd.f32 %v1038, %v1141
        %v1143 = vpop.f32.mrb[0].mxu0
        %v1144 = vadd.f32 %v1040, %v1143
        %1145 = vdwg.mxu0
        %1146 = vmatprep.subr.mxu0 0.0
        %v1147 = vand.u32 %v245, 4294901760
        %1148 = vmatpush1.msra.mxu0 %v1147
        %1149 = vmatprep.subr.mxu0 0.0
        %v1150 = vand.u32 %v248, 4294901760
        %1151 = vmatpush1.msra.mxu0 %v1150
        %1152 = vmatprep.subr.mxu0 0.0
        %v1153 = vand.u32 %v251, 4294901760
        %1154 = vmatpush1.msra.mxu0 %v1153
        %1155 = vmatprep.subr.mxu0 0.0
        %v1156 = vand.u32 %v254, 4294901760
        %1157 = vmatpush1.msra.mxu0 %v1156
        %1158 = vmatprep.subr.mxu0 0.0
        %v1159 = vand.u32 %v257, 4294901760
        %1160 = vmatpush1.msra.mxu0 %v1159
        %1161 = vmatprep.subr.mxu0 0.0
        %v1162 = vand.u32 %v260, 4294901760
        %1163 = vmatpush1.msra.mxu0 %v1162
        %1164 = vmatprep.subr.mxu0 0.0
        %v1165 = vand.u32 %v263, 4294901760
        %1166 = vmatpush1.msra.mxu0 %v1165
        %1167 = vmatprep.subr.mxu0 0.0
        %v1168 = vand.u32 %v266, 4294901760
        %1169 = vmatpush1.msra.mxu0 %v1168
        %1170 = vmatprep.subr.mxu0 0.0
        %v1171 = vand.u32 %v269, 4294901760
        %1172 = vmatpush1.msra.mxu0 %v1171
        %1173 = vmatprep.subr.mxu0 0.0
        %v1174 = vand.u32 %v272, 4294901760
        %1175 = vmatpush1.msra.mxu0 %v1174
        %1176 = vmatprep.subr.mxu0 0.0
        %v1177 = vand.u32 %v275, 4294901760
        %1178 = vmatpush1.msra.mxu0 %v1177
        %1179 = vmatprep.subr.mxu0 0.0
        %v1180 = vand.u32 %v278, 4294901760
        %1181 = vmatpush1.msra.mxu0 %v1180
        %1182 = vmatprep.subr.mxu0 0.0
        %v1183 = vand.u32 %v281, 4294901760
        %1184 = vmatpush1.msra.mxu0 %v1183
        %1185 = vmatprep.subr.mxu0 0.0
        %v1186 = vand.u32 %v284, 4294901760
        %1187 = vmatpush1.msra.mxu0 %v1186
        %1188 = vmatprep.subr.mxu0 0.0
        %v1189 = vand.u32 %v287, 4294901760
        %1190 = vmatpush1.msra.mxu0 %v1189
        %1191 = vmatprep.subr.mxu0 0.0
        %v1192 = vand.u32 %v290, 4294901760
        %1193 = vmatpush1.msra.mxu0 %v1192
        %1194 = vmatprep.subr.mxu0 0.0
        %1195 = vmatpush1.msra.mxu0 0.0
        %1196 = vmatprep.subr.mxu0 0.0
        %1197 = vmatpush1.msra.mxu0 0.0
        %1198 = vmatprep.subr.mxu0 0.0
        %1199 = vmatpush1.msra.mxu0 0.0
        %1200 = vmatprep.subr.mxu0 0.0
        %1201 = vmatpush1.msra.mxu0 0.0
        %1202 = vmatprep.subr.mxu0 0.0
        %1203 = vmatpush1.msra.mxu0 0.0
        %1204 = vmatprep.subr.mxu0 0.0
        %1205 = vmatpush1.msra.mxu0 0.0
        %1206 = vmatprep.subr.mxu0 0.0
        %1207 = vmatpush1.msra.mxu0 0.0
        %1208 = vmatprep.subr.mxu0 0.0
        %1209 = vmatpush1.msra.mxu0 0.0
        %1210 = vmatprep.subr.mxu0 0.0
        %1211 = vmatpush1.msra.mxu0 0.0
        %1212 = vmatprep.subr.mxu0 0.0
        %1213 = vmatpush1.msra.mxu0 0.0
        %1214 = vmatprep.subr.mxu0 0.0
        %1215 = vmatpush1.msra.mxu0 0.0
        %1216 = vmatprep.subr.mxu0 0.0
        %1217 = vmatpush1.msra.mxu0 0.0
        %1218 = vmatprep.subr.mxu0 0.0
        %1219 = vmatpush1.msra.mxu0 0.0
        %1220 = vmatprep.subr.mxu0 0.0
        %1221 = vmatpush1.msra.mxu0 0.0
        %1222 = vmatprep.subr.mxu0 0.0
        %1223 = vmatpush1.msra.mxu0 0.0
        %1224 = vmatprep.subr.mxu0 0.0
        %1225 = vmatpush1.msra.mxu0 0.0
        %1226 = vmatprep.mubr.f32.mxu0 0.0
        %v1227 = vand.u32 %v242, 4294901760
        %v1228 = vsub.f32 %v242, %v1227
        %v1229 = vand.u32 %v1228, 4294901760
        %v1230 = vsub.f32 %v1228, %v1229
        %v1231 = vand.u32 %v1230, 4294901760
        %1232 = vmatmul.mubr.f32.gmra.mrb[0].mxu0 %v1231
        %v1233 = vpop.f32.mrb[0].mxu0
        %v1234 = vadd.f32 0.0, %v1233
        %v1235 = vpop.f32.mrb[0].mxu0
        %1236 = vdwg.mxu0
        %1237 = vmatprep.subr.mxu0 0.0
        %v1238 = vand.u32 %v245, 4294901760
        %v1239 = vsub.f32 %v245, %v1238
        %v1240 = vand.u32 %v1239, 4294901760
        %v1241 = vsub.f32 %v1239, %v1240
        %v1242 = vand.u32 %v1241, 4294901760
        %1243 = vmatpush1.msra.mxu0 %v1242
        %1244 = vmatprep.subr.mxu0 0.0
        %v1245 = vand.u32 %v248, 4294901760
        %v1246 = vsub.f32 %v248, %v1245
        %v1247 = vand.u32 %v1246, 4294901760
        %v1248 = vsub.f32 %v1246, %v1247
        %v1249 = vand.u32 %v1248, 4294901760
        %1250 = vmatpush1.msra.mxu0 %v1249
        %1251 = vmatprep.subr.mxu0 0.0
        %v1252 = vand.u32 %v251, 4294901760
        %v1253 = vsub.f32 %v251, %v1252
        %v1254 = vand.u32 %v1253, 4294901760
        %v1255 = vsub.f32 %v1253, %v1254
        %v1256 = vand.u32 %v1255, 4294901760
        %1257 = vmatpush1.msra.mxu0 %v1256
        %1258 = vmatprep.subr.mxu0 0.0
        %v1259 = vand.u32 %v254, 4294901760
        %v1260 = vsub.f32 %v254, %v1259
        %v1261 = vand.u32 %v1260, 4294901760
        %v1262 = vsub.f32 %v1260, %v1261
        %v1263 = vand.u32 %v1262, 4294901760
        %1264 = vmatpush1.msra.mxu0 %v1263
        %1265 = vmatprep.subr.mxu0 0.0
        %v1266 = vand.u32 %v257, 4294901760
        %v1267 = vsub.f32 %v257, %v1266
        %v1268 = vand.u32 %v1267, 4294901760
        %v1269 = vsub.f32 %v1267, %v1268
        %v1270 = vand.u32 %v1269, 4294901760
        %1271 = vmatpush1.msra.mxu0 %v1270
        %1272 = vmatprep.subr.mxu0 0.0
        %v1273 = vand.u32 %v260, 4294901760
        %v1274 = vsub.f32 %v260, %v1273
        %v1275 = vand.u32 %v1274, 4294901760
        %v1276 = vsub.f32 %v1274, %v1275
        %v1277 = vand.u32 %v1276, 4294901760
        %1278 = vmatpush1.msra.mxu0 %v1277
        %1279 = vmatprep.subr.mxu0 0.0
        %v1280 = vand.u32 %v263, 4294901760
        %v1281 = vsub.f32 %v263, %v1280
        %v1282 = vand.u32 %v1281, 4294901760
        %v1283 = vsub.f32 %v1281, %v1282
        %v1284 = vand.u32 %v1283, 4294901760
        %1285 = vmatpush1.msra.mxu0 %v1284
        %1286 = vmatprep.subr.mxu0 0.0
        %v1287 = vand.u32 %v266, 4294901760
        %v1288 = vsub.f32 %v266, %v1287
        %v1289 = vand.u32 %v1288, 4294901760
        %v1290 = vsub.f32 %v1288, %v1289
        %v1291 = vand.u32 %v1290, 4294901760
        %1292 = vmatpush1.msra.mxu0 %v1291
        %1293 = vmatprep.subr.mxu0 0.0
        %v1294 = vand.u32 %v269, 4294901760
        %v1295 = vsub.f32 %v269, %v1294
        %v1296 = vand.u32 %v1295, 4294901760
        %v1297 = vsub.f32 %v1295, %v1296
        %v1298 = vand.u32 %v1297, 4294901760
        %1299 = vmatpush1.msra.mxu0 %v1298
        %1300 = vmatprep.subr.mxu0 0.0
        %v1301 = vand.u32 %v272, 4294901760
        %v1302 = vsub.f32 %v272, %v1301
        %v1303 = vand.u32 %v1302, 4294901760
        %v1304 = vsub.f32 %v1302, %v1303
        %v1305 = vand.u32 %v1304, 4294901760
        %1306 = vmatpush1.msra.mxu0 %v1305
        %1307 = vmatprep.subr.mxu0 0.0
        %v1308 = vand.u32 %v275, 4294901760
        %v1309 = vsub.f32 %v275, %v1308
        %v1310 = vand.u32 %v1309, 4294901760
        %v1311 = vsub.f32 %v1309, %v1310
        %v1312 = vand.u32 %v1311, 4294901760
        %1313 = vmatpush1.msra.mxu0 %v1312
        %1314 = vmatprep.subr.mxu0 0.0
        %v1315 = vand.u32 %v278, 4294901760
        %v1316 = vsub.f32 %v278, %v1315
        %v1317 = vand.u32 %v1316, 4294901760
        %v1318 = vsub.f32 %v1316, %v1317
        %v1319 = vand.u32 %v1318, 4294901760
        %1320 = vmatpush1.msra.mxu0 %v1319
        %1321 = vmatprep.subr.mxu0 0.0
        %v1322 = vand.u32 %v281, 4294901760
        %v1323 = vsub.f32 %v281, %v1322
        %v1324 = vand.u32 %v1323, 4294901760
        %v1325 = vsub.f32 %v1323, %v1324
        %v1326 = vand.u32 %v1325, 4294901760
        %1327 = vmatpush1.msra.mxu0 %v1326
        %1328 = vmatprep.subr.mxu0 0.0
        %v1329 = vand.u32 %v284, 4294901760
        %v1330 = vsub.f32 %v284, %v1329
        %v1331 = vand.u32 %v1330, 4294901760
        %v1332 = vsub.f32 %v1330, %v1331
        %v1333 = vand.u32 %v1332, 4294901760
        %1334 = vmatpush1.msra.mxu0 %v1333
        %1335 = vmatprep.subr.mxu0 0.0
        %v1336 = vand.u32 %v287, 4294901760
        %v1337 = vsub.f32 %v287, %v1336
        %v1338 = vand.u32 %v1337, 4294901760
        %v1339 = vsub.f32 %v1337, %v1338
        %v1340 = vand.u32 %v1339, 4294901760
        %1341 = vmatpush1.msra.mxu0 %v1340
        %1342 = vmatprep.subr.mxu0 0.0
        %v1343 = vand.u32 %v290, 4294901760
        %v1344 = vsub.f32 %v290, %v1343
        %v1345 = vand.u32 %v1344, 4294901760
        %v1346 = vsub.f32 %v1344, %v1345
        %v1347 = vand.u32 %v1346, 4294901760
        %1348 = vmatpush1.msra.mxu0 %v1347
        %1349 = vmatprep.subr.mxu0 0.0
        %1350 = vmatpush1.msra.mxu0 0.0
        %1351 = vmatprep.subr.mxu0 0.0
        %1352 = vmatpush1.msra.mxu0 0.0
        %1353 = vmatprep.subr.mxu0 0.0
        %1354 = vmatpush1.msra.mxu0 0.0
        %1355 = vmatprep.subr.mxu0 0.0
        %1356 = vmatpush1.msra.mxu0 0.0
        %1357 = vmatprep.subr.mxu0 0.0
        %1358 = vmatpush1.msra.mxu0 0.0
        %1359 = vmatprep.subr.mxu0 0.0
        %1360 = vmatpush1.msra.mxu0 0.0
        %1361 = vmatprep.subr.mxu0 0.0
        %1362 = vmatpush1.msra.mxu0 0.0
        %1363 = vmatprep.subr.mxu0 0.0
        %1364 = vmatpush1.msra.mxu0 0.0
        %1365 = vmatprep.subr.mxu0 0.0
        %1366 = vmatpush1.msra.mxu0 0.0
        %1367 = vmatprep.subr.mxu0 0.0
        %1368 = vmatpush1.msra.mxu0 0.0
        %1369 = vmatprep.subr.mxu0 0.0
        %1370 = vmatpush1.msra.mxu0 0.0
        %1371 = vmatprep.subr.mxu0 0.0
        %1372 = vmatpush1.msra.mxu0 0.0
        %1373 = vmatprep.subr.mxu0 0.0
        %1374 = vmatpush1.msra.mxu0 0.0
        %1375 = vmatprep.subr.mxu0 0.0
        %1376 = vmatpush1.msra.mxu0 0.0
        %1377 = vmatprep.subr.mxu0 0.0
        %1378 = vmatpush1.msra.mxu0 0.0
        %1379 = vmatprep.subr.mxu0 0.0
        %1380 = vmatpush1.msra.mxu0 0.0
        %1381 = vmatprep.mubr.f32.mxu0 0.0
        %v1382 = vand.u32 %v242, 4294901760
        %1383 = vmatmul.mubr.f32.gmra.mrb[0].mxu0 %v1382
        %v1384 = vpop.f32.mrb[0].mxu0
        %v1385 = vadd.f32 %v1234, %v1384
        %v1386 = vpop.f32.mrb[0].mxu0
        %1387 = vdwg.mxu0
        %1388 = vmatprep.subr.mxu0 0.0
        %v1389 = vand.u32 %v245, 4294901760
        %v1390 = vsub.f32 %v245, %v1389
        %1391 = vmatpush1.msra.mxu0 %v1390
        %1392 = vmatprep.subr.mxu0 0.0
        %v1393 = vand.u32 %v248, 4294901760
        %v1394 = vsub.f32 %v248, %v1393
        %1395 = vmatpush1.msra.mxu0 %v1394
        %1396 = vmatprep.subr.mxu0 0.0
        %v1397 = vand.u32 %v251, 4294901760
        %v1398 = vsub.f32 %v251, %v1397
        %1399 = vmatpush1.msra.mxu0 %v1398
        %1400 = vmatprep.subr.mxu0 0.0
        %v1401 = vand.u32 %v254, 4294901760
        %v1402 = vsub.f32 %v254, %v1401
        %1403 = vmatpush1.msra.mxu0 %v1402
        %1404 = vmatprep.subr.mxu0 0.0
        %v1405 = vand.u32 %v257, 4294901760
        %v1406 = vsub.f32 %v257, %v1405
        %1407 = vmatpush1.msra.mxu0 %v1406
        %1408 = vmatprep.subr.mxu0 0.0
        %v1409 = vand.u32 %v260, 4294901760
        %v1410 = vsub.f32 %v260, %v1409
        %1411 = vmatpush1.msra.mxu0 %v1410
        %1412 = vmatprep.subr.mxu0 0.0
        %v1413 = vand.u32 %v263, 4294901760
        %v1414 = vsub.f32 %v263, %v1413
        %1415 = vmatpush1.msra.mxu0 %v1414
        %1416 = vmatprep.subr.mxu0 0.0
        %v1417 = vand.u32 %v266, 4294901760
        %v1418 = vsub.f32 %v266, %v1417
        %1419 = vmatpush1.msra.mxu0 %v1418
        %1420 = vmatprep.subr.mxu0 0.0
        %v1421 = vand.u32 %v269, 4294901760
        %v1422 = vsub.f32 %v269, %v1421
        %1423 = vmatpush1.msra.mxu0 %v1422
        %1424 = vmatprep.subr.mxu0 0.0
        %v1425 = vand.u32 %v272, 4294901760
        %v1426 = vsub.f32 %v272, %v1425
        %1427 = vmatpush1.msra.mxu0 %v1426
        %1428 = vmatprep.subr.mxu0 0.0
        %v1429 = vand.u32 %v275, 4294901760
        %v1430 = vsub.f32 %v275, %v1429
        %1431 = vmatpush1.msra.mxu0 %v1430
        %1432 = vmatprep.subr.mxu0 0.0
        %v1433 = vand.u32 %v278, 4294901760
        %v1434 = vsub.f32 %v278, %v1433
        %1435 = vmatpush1.msra.mxu0 %v1434
        %1436 = vmatprep.subr.mxu0 0.0
        %v1437 = vand.u32 %v281, 4294901760
        %v1438 = vsub.f32 %v281, %v1437
        %1439 = vmatpush1.msra.mxu0 %v1438
        %1440 = vmatprep.subr.mxu0 0.0
        %v1441 = vand.u32 %v284, 4294901760
        %v1442 = vsub.f32 %v284, %v1441
        %1443 = vmatpush1.msra.mxu0 %v1442
        %1444 = vmatprep.subr.mxu0 0.0
        %v1445 = vand.u32 %v287, 4294901760
        %v1446 = vsub.f32 %v287, %v1445
        %1447 = vmatpush1.msra.mxu0 %v1446
        %1448 = vmatprep.subr.mxu0 0.0
        %v1449 = vand.u32 %v290, 4294901760
        %v1450 = vsub.f32 %v290, %v1449
        %1451 = vmatpush1.msra.mxu0 %v1450
        %1452 = vmatprep.subr.mxu0 0.0
        %1453 = vmatpush1.msra.mxu0 0.0
        %1454 = vmatprep.subr.mxu0 0.0
        %1455 = vmatpush1.msra.mxu0 0.0
        %1456 = vmatprep.subr.mxu0 0.0
        %1457 = vmatpush1.msra.mxu0 0.0
        %1458 = vmatprep.subr.mxu0 0.0
        %1459 = vmatpush1.msra.mxu0 0.0
        %1460 = vmatprep.subr.mxu0 0.0
        %1461 = vmatpush1.msra.mxu0 0.0
        %1462 = vmatprep.subr.mxu0 0.0
        %1463 = vmatpush1.msra.mxu0 0.0
        %1464 = vmatprep.subr.mxu0 0.0
        %1465 = vmatpush1.msra.mxu0 0.0
        %1466 = vmatprep.subr.mxu0 0.0
        %1467 = vmatpush1.msra.mxu0 0.0
        %1468 = vmatprep.subr.mxu0 0.0
        %1469 = vmatpush1.msra.mxu0 0.0
        %1470 = vmatprep.subr.mxu0 0.0
        %1471 = vmatpush1.msra.mxu0 0.0
        %1472 = vmatprep.subr.mxu0 0.0
        %1473 = vmatpush1.msra.mxu0 0.0
        %1474 = vmatprep.subr.mxu0 0.0
        %1475 = vmatpush1.msra.mxu0 0.0
        %1476 = vmatprep.subr.mxu0 0.0
        %1477 = vmatpush1.msra.mxu0 0.0
        %1478 = vmatprep.subr.mxu0 0.0
        %1479 = vmatpush1.msra.mxu0 0.0
        %1480 = vmatprep.subr.mxu0 0.0
        %1481 = vmatpush1.msra.mxu0 0.0
        %1482 = vmatprep.subr.mxu0 0.0
        %1483 = vmatpush1.msra.mxu0 0.0
        %1484 = vmatprep.mubr.f32.mxu0 0.0
        %v1485 = vand.u32 %v242, 4294901760
        %v1486 = vsub.f32 %v242, %v1485
        %1487 = vmatmul.mubr.f32.gmra.mrb[0].mxu0 %v1486
        %v1488 = vpop.f32.mrb[0].mxu0
        %v1489 = vadd.f32 %v1385, %v1488
        %v1490 = vpop.f32.mrb[0].mxu0
        %1491 = vdwg.mxu0
        %1492 = vmatprep.subr.mxu0 0.0
        %v1493 = vand.u32 %v245, 4294901760
        %1494 = vmatpush1.msra.mxu0 %v1493
        %1495 = vmatprep.subr.mxu0 0.0
        %v1496 = vand.u32 %v248, 4294901760
        %1497 = vmatpush1.msra.mxu0 %v1496
        %1498 = vmatprep.subr.mxu0 0.0
        %v1499 = vand.u32 %v251, 4294901760
        %1500 = vmatpush1.msra.mxu0 %v1499
        %1501 = vmatprep.subr.mxu0 0.0
        %v1502 = vand.u32 %v254, 4294901760
        %1503 = vmatpush1.msra.mxu0 %v1502
        %1504 = vmatprep.subr.mxu0 0.0
        %v1505 = vand.u32 %v257, 4294901760
        %1506 = vmatpush1.msra.mxu0 %v1505
        %1507 = vmatprep.subr.mxu0 0.0
        %v1508 = vand.u32 %v260, 4294901760
        %1509 = vmatpush1.msra.mxu0 %v1508
        %1510 = vmatprep.subr.mxu0 0.0
        %v1511 = vand.u32 %v263, 4294901760
        %1512 = vmatpush1.msra.mxu0 %v1511
        %1513 = vmatprep.subr.mxu0 0.0
        %v1514 = vand.u32 %v266, 4294901760
        %1515 = vmatpush1.msra.mxu0 %v1514
        %1516 = vmatprep.subr.mxu0 0.0
        %v1517 = vand.u32 %v269, 4294901760
        %1518 = vmatpush1.msra.mxu0 %v1517
        %1519 = vmatprep.subr.mxu0 0.0
        %v1520 = vand.u32 %v272, 4294901760
        %1521 = vmatpush1.msra.mxu0 %v1520
        %1522 = vmatprep.subr.mxu0 0.0
        %v1523 = vand.u32 %v275, 4294901760
        %1524 = vmatpush1.msra.mxu0 %v1523
        %1525 = vmatprep.subr.mxu0 0.0
        %v1526 = vand.u32 %v278, 4294901760
        %1527 = vmatpush1.msra.mxu0 %v1526
        %1528 = vmatprep.subr.mxu0 0.0
        %v1529 = vand.u32 %v281, 4294901760
        %1530 = vmatpush1.msra.mxu0 %v1529
        %1531 = vmatprep.subr.mxu0 0.0
        %v1532 = vand.u32 %v284, 4294901760
        %1533 = vmatpush1.msra.mxu0 %v1532
        %1534 = vmatprep.subr.mxu0 0.0
        %v1535 = vand.u32 %v287, 4294901760
        %1536 = vmatpush1.msra.mxu0 %v1535
        %1537 = vmatprep.subr.mxu0 0.0
        %v1538 = vand.u32 %v290, 4294901760
        %1539 = vmatpush1.msra.mxu0 %v1538
        %1540 = vmatprep.subr.mxu0 0.0
        %1541 = vmatpush1.msra.mxu0 0.0
        %1542 = vmatprep.subr.mxu0 0.0
        %1543 = vmatpush1.msra.mxu0 0.0
        %1544 = vmatprep.subr.mxu0 0.0
        %1545 = vmatpush1.msra.mxu0 0.0
        %1546 = vmatprep.subr.mxu0 0.0
        %1547 = vmatpush1.msra.mxu0 0.0
        %1548 = vmatprep.subr.mxu0 0.0
        %1549 = vmatpush1.msra.mxu0 0.0
        %1550 = vmatprep.subr.mxu0 0.0
        %1551 = vmatpush1.msra.mxu0 0.0
        %1552 = vmatprep.subr.mxu0 0.0
        %1553 = vmatpush1.msra.mxu0 0.0
        %1554 = vmatprep.subr.mxu0 0.0
        %1555 = vmatpush1.msra.mxu0 0.0
        %1556 = vmatprep.subr.mxu0 0.0
        %1557 = vmatpush1.msra.mxu0 0.0
        %1558 = vmatprep.subr.mxu0 0.0
        %1559 = vmatpush1.msra.mxu0 0.0
        %1560 = vmatprep.subr.mxu0 0.0
        %1561 = vmatpush1.msra.mxu0 0.0
        %1562 = vmatprep.subr.mxu0 0.0
        %1563 = vmatpush1.msra.mxu0 0.0
        %1564 = vmatprep.subr.mxu0 0.0
        %1565 = vmatpush1.msra.mxu0 0.0
        %1566 = vmatprep.subr.mxu0 0.0
        %1567 = vmatpush1.msra.mxu0 0.0
        %1568 = vmatprep.subr.mxu0 0.0
        %1569 = vmatpush1.msra.mxu0 0.0
        %1570 = vmatprep.subr.mxu0 0.0
        %1571 = vmatpush1.msra.mxu0 0.0
        %1572 = vmatprep.mubr.f32.mxu0 0.0
        %v1573 = vand.u32 %v242, 4294901760
        %v1574 = vsub.f32 %v242, %v1573
        %v1575 = vand.u32 %v1574, 4294901760
        %1576 = vmatmul.mubr.f32.gmra.mrb[0].mxu0 %v1575
        %v1577 = vpop.f32.mrb[0].mxu0
        %v1578 = vadd.f32 %v1489, %v1577
        %v1579 = vpop.f32.mrb[0].mxu0
        %1580 = vdwg.mxu0
        %1581 = vmatprep.subr.mxu0 0.0
        %v1582 = vand.u32 %v245, 4294901760
        %v1583 = vsub.f32 %v245, %v1582
        %v1584 = vand.u32 %v1583, 4294901760
        %1585 = vmatpush1.msra.mxu0 %v1584
        %1586 = vmatprep.subr.mxu0 0.0
        %v1587 = vand.u32 %v248, 4294901760
        %v1588 = vsub.f32 %v248, %v1587
        %v1589 = vand.u32 %v1588, 4294901760
        %1590 = vmatpush1.msra.mxu0 %v1589
        %1591 = vmatprep.subr.mxu0 0.0
        %v1592 = vand.u32 %v251, 4294901760
        %v1593 = vsub.f32 %v251, %v1592
        %v1594 = vand.u32 %v1593, 4294901760
        %1595 = vmatpush1.msra.mxu0 %v1594
        %1596 = vmatprep.subr.mxu0 0.0
        %v1597 = vand.u32 %v254, 4294901760
        %v1598 = vsub.f32 %v254, %v1597
        %v1599 = vand.u32 %v1598, 4294901760
        %1600 = vmatpush1.msra.mxu0 %v1599
        %1601 = vmatprep.subr.mxu0 0.0
        %v1602 = vand.u32 %v257, 4294901760
        %v1603 = vsub.f32 %v257, %v1602
        %v1604 = vand.u32 %v1603, 4294901760
        %1605 = vmatpush1.msra.mxu0 %v1604
        %1606 = vmatprep.subr.mxu0 0.0
        %v1607 = vand.u32 %v260, 4294901760
        %v1608 = vsub.f32 %v260, %v1607
        %v1609 = vand.u32 %v1608, 4294901760
        %1610 = vmatpush1.msra.mxu0 %v1609
        %1611 = vmatprep.subr.mxu0 0.0
        %v1612 = vand.u32 %v263, 4294901760
        %v1613 = vsub.f32 %v263, %v1612
        %v1614 = vand.u32 %v1613, 4294901760
        %1615 = vmatpush1.msra.mxu0 %v1614
        %1616 = vmatprep.subr.mxu0 0.0
        %v1617 = vand.u32 %v266, 4294901760
        %v1618 = vsub.f32 %v266, %v1617
        %v1619 = vand.u32 %v1618, 4294901760
        %1620 = vmatpush1.msra.mxu0 %v1619
        %1621 = vmatprep.subr.mxu0 0.0
        %v1622 = vand.u32 %v269, 4294901760
        %v1623 = vsub.f32 %v269, %v1622
        %v1624 = vand.u32 %v1623, 4294901760
        %1625 = vmatpush1.msra.mxu0 %v1624
        %1626 = vmatprep.subr.mxu0 0.0
        %v1627 = vand.u32 %v272, 4294901760
        %v1628 = vsub.f32 %v272, %v1627
        %v1629 = vand.u32 %v1628, 4294901760
        %1630 = vmatpush1.msra.mxu0 %v1629
        %1631 = vmatprep.subr.mxu0 0.0
        %v1632 = vand.u32 %v275, 4294901760
        %v1633 = vsub.f32 %v275, %v1632
        %v1634 = vand.u32 %v1633, 4294901760
        %1635 = vmatpush1.msra.mxu0 %v1634
        %1636 = vmatprep.subr.mxu0 0.0
        %v1637 = vand.u32 %v278, 4294901760
        %v1638 = vsub.f32 %v278, %v1637
        %v1639 = vand.u32 %v1638, 4294901760
        %1640 = vmatpush1.msra.mxu0 %v1639
        %1641 = vmatprep.subr.mxu0 0.0
        %v1642 = vand.u32 %v281, 4294901760
        %v1643 = vsub.f32 %v281, %v1642
        %v1644 = vand.u32 %v1643, 4294901760
        %1645 = vmatpush1.msra.mxu0 %v1644
        %1646 = vmatprep.subr.mxu0 0.0
        %v1647 = vand.u32 %v284, 4294901760
        %v1648 = vsub.f32 %v284, %v1647
        %v1649 = vand.u32 %v1648, 4294901760
        %1650 = vmatpush1.msra.mxu0 %v1649
        %1651 = vmatprep.subr.mxu0 0.0
        %v1652 = vand.u32 %v287, 4294901760
        %v1653 = vsub.f32 %v287, %v1652
        %v1654 = vand.u32 %v1653, 4294901760
        %1655 = vmatpush1.msra.mxu0 %v1654
        %1656 = vmatprep.subr.mxu0 0.0
        %v1657 = vand.u32 %v290, 4294901760
        %v1658 = vsub.f32 %v290, %v1657
        %v1659 = vand.u32 %v1658, 4294901760
        %1660 = vmatpush1.msra.mxu0 %v1659
        %1661 = vmatprep.subr.mxu0 0.0
        %1662 = vmatpush1.msra.mxu0 0.0
        %1663 = vmatprep.subr.mxu0 0.0
        %1664 = vmatpush1.msra.mxu0 0.0
        %1665 = vmatprep.subr.mxu0 0.0
        %1666 = vmatpush1.msra.mxu0 0.0
        %1667 = vmatprep.subr.mxu0 0.0
        %1668 = vmatpush1.msra.mxu0 0.0
        %1669 = vmatprep.subr.mxu0 0.0
        %1670 = vmatpush1.msra.mxu0 0.0
        %1671 = vmatprep.subr.mxu0 0.0
        %1672 = vmatpush1.msra.mxu0 0.0
        %1673 = vmatprep.subr.mxu0 0.0
        %1674 = vmatpush1.msra.mxu0 0.0
        %1675 = vmatprep.subr.mxu0 0.0
        %1676 = vmatpush1.msra.mxu0 0.0
        %1677 = vmatprep.subr.mxu0 0.0
        %1678 = vmatpush1.msra.mxu0 0.0
        %1679 = vmatprep.subr.mxu0 0.0
        %1680 = vmatpush1.msra.mxu0 0.0
        %1681 = vmatprep.subr.mxu0 0.0
        %1682 = vmatpush1.msra.mxu0 0.0
        %1683 = vmatprep.subr.mxu0 0.0
        %1684 = vmatpush1.msra.mxu0 0.0
        %1685 = vmatprep.subr.mxu0 0.0
        %1686 = vmatpush1.msra.mxu0 0.0
        %1687 = vmatprep.subr.mxu0 0.0
        %1688 = vmatpush1.msra.mxu0 0.0
        %1689 = vmatprep.subr.mxu0 0.0
        %1690 = vmatpush1.msra.mxu0 0.0
        %1691 = vmatprep.subr.mxu0 0.0
        %1692 = vmatpush1.msra.mxu0 0.0
        %1693 = vmatprep.mubr.f32.mxu0 0.0
        %v1694 = vand.u32 %v242, 4294901760
        %1695 = vmatmul.mubr.f32.gmra.mrb[0].mxu0 %v1694
        %v1696 = vpop.f32.mrb[0].mxu0
        %v1697 = vadd.f32 %v1578, %v1696
        %v1698 = vpop.f32.mrb[0].mxu0
        %1699 = vdwg.mxu0
        %1700 = vmatprep.subr.mxu0 0.0
        %v1701 = vand.u32 %v245, 4294901760
        %1702 = vmatpush1.msra.mxu0 %v1701
        %1703 = vmatprep.subr.mxu0 0.0
        %v1704 = vand.u32 %v248, 4294901760
        %1705 = vmatpush1.msra.mxu0 %v1704
        %1706 = vmatprep.subr.mxu0 0.0
        %v1707 = vand.u32 %v251, 4294901760
        %1708 = vmatpush1.msra.mxu0 %v1707
        %1709 = vmatprep.subr.mxu0 0.0
        %v1710 = vand.u32 %v254, 4294901760
        %1711 = vmatpush1.msra.mxu0 %v1710
        %1712 = vmatprep.subr.mxu0 0.0
        %v1713 = vand.u32 %v257, 4294901760
        %1714 = vmatpush1.msra.mxu0 %v1713
        %1715 = vmatprep.subr.mxu0 0.0
        %v1716 = vand.u32 %v260, 4294901760
        %1717 = vmatpush1.msra.mxu0 %v1716
        %1718 = vmatprep.subr.mxu0 0.0
        %v1719 = vand.u32 %v263, 4294901760
        %1720 = vmatpush1.msra.mxu0 %v1719
        %1721 = vmatprep.subr.mxu0 0.0
        %v1722 = vand.u32 %v266, 4294901760
        %1723 = vmatpush1.msra.mxu0 %v1722
        %1724 = vmatprep.subr.mxu0 0.0
        %v1725 = vand.u32 %v269, 4294901760
        %1726 = vmatpush1.msra.mxu0 %v1725
        %1727 = vmatprep.subr.mxu0 0.0
        %v1728 = vand.u32 %v272, 4294901760
        %1729 = vmatpush1.msra.mxu0 %v1728
        %1730 = vmatprep.subr.mxu0 0.0
        %v1731 = vand.u32 %v275, 4294901760
        %1732 = vmatpush1.msra.mxu0 %v1731
        %1733 = vmatprep.subr.mxu0 0.0
        %v1734 = vand.u32 %v278, 4294901760
        %1735 = vmatpush1.msra.mxu0 %v1734
        %1736 = vmatprep.subr.mxu0 0.0
        %v1737 = vand.u32 %v281, 4294901760
        %1738 = vmatpush1.msra.mxu0 %v1737
        %1739 = vmatprep.subr.mxu0 0.0
        %v1740 = vand.u32 %v284, 4294901760
        %1741 = vmatpush1.msra.mxu0 %v1740
        %1742 = vmatprep.subr.mxu0 0.0
        %v1743 = vand.u32 %v287, 4294901760
        %1744 = vmatpush1.msra.mxu0 %v1743
        %1745 = vmatprep.subr.mxu0 0.0
        %v1746 = vand.u32 %v290, 4294901760
        %1747 = vmatpush1.msra.mxu0 %v1746
        %1748 = vmatprep.subr.mxu0 0.0
        %1749 = vmatpush1.msra.mxu0 0.0
        %1750 = vmatprep.subr.mxu0 0.0
        %1751 = vmatpush1.msra.mxu0 0.0
        %1752 = vmatprep.subr.mxu0 0.0
        %1753 = vmatpush1.msra.mxu0 0.0
        %1754 = vmatprep.subr.mxu0 0.0
        %1755 = vmatpush1.msra.mxu0 0.0
        %1756 = vmatprep.subr.mxu0 0.0
        %1757 = vmatpush1.msra.mxu0 0.0
        %1758 = vmatprep.subr.mxu0 0.0
        %1759 = vmatpush1.msra.mxu0 0.0
        %1760 = vmatprep.subr.mxu0 0.0
        %1761 = vmatpush1.msra.mxu0 0.0
        %1762 = vmatprep.subr.mxu0 0.0
        %1763 = vmatpush1.msra.mxu0 0.0
        %1764 = vmatprep.subr.mxu0 0.0
        %1765 = vmatpush1.msra.mxu0 0.0
        %1766 = vmatprep.subr.mxu0 0.0
        %1767 = vmatpush1.msra.mxu0 0.0
        %1768 = vmatprep.subr.mxu0 0.0
        %1769 = vmatpush1.msra.mxu0 0.0
        %1770 = vmatprep.subr.mxu0 0.0
        %1771 = vmatpush1.msra.mxu0 0.0
        %1772 = vmatprep.subr.mxu0 0.0
        %1773 = vmatpush1.msra.mxu0 0.0
        %1774 = vmatprep.subr.mxu0 0.0
        %1775 = vmatpush1.msra.mxu0 0.0
        %1776 = vmatprep.subr.mxu0 0.0
        %1777 = vmatpush1.msra.mxu0 0.0
        %1778 = vmatprep.subr.mxu0 0.0
        %1779 = vmatpush1.msra.mxu0 0.0
        %1780 = vmatprep.mubr.f32.mxu0 0.0
        %v1781 = vand.u32 %v242, 4294901760
        %1782 = vmatmul.mubr.f32.gmra.mrb[0].mxu0 %v1781
        %v1783 = vpop.f32.mrb[0].mxu0
        %v1784 = vadd.f32 %v1697, %v1783
        %v1785 = vpop.f32.mrb[0].mxu0
        %1786 = vdwg.mxu0
        %v1787 = vlaneseq
        %v1788 = vshrl.u32 %v1787, 7
        %v1789 = vlaneseq
        %v1790 = vand.u32 %v1789, 127
        %vm1791 = vcmp.ge.s32.totalorder %v1788, %v1790
        %vm1792 = vcmask 261120
        %v1794 = vsel %vm1792, %v1142, 0
        %v1797 = vsel %vm1792, %v1144, 0
        %1799 = vmatprep.subr.mxu0 0.0
        %v1800 = vand.u32 %v1797, 4294901760
        %1801 = vmatpush1.xpose.msra.mxu0 %v1800
        %1802 = vmatprep.subr.mxu0 0.0
        %1803 = vmatpush1.xpose.msra.mxu0 0.0
        %1804 = vmatprep.subr.mxu0 0.0
        %1805 = vmatpush1.xpose.msra.mxu0 0.0
        %1806 = vmatprep.subr.mxu0 0.0
        %1807 = vmatpush1.xpose.msra.mxu0 0.0
        %1808 = vmatprep.subr.mxu0 0.0
        %1809 = vmatpush1.xpose.msra.mxu0 0.0
        %1810 = vmatprep.subr.mxu0 0.0
        %1811 = vmatpush1.xpose.msra.mxu0 0.0
        %1812 = vmatprep.subr.mxu0 0.0
        %1813 = vmatpush1.xpose.msra.mxu0 0.0
        %1814 = vmatprep.subr.mxu0 0.0
        %1815 = vmatpush1.xpose.msra.mxu0 0.0
        %1816 = vmatprep.subr.mxu0 0.0
        %1817 = vmatpush1.xpose.msra.mxu0 0.0
        %1818 = vmatprep.subr.mxu0 0.0
        %1819 = vmatpush1.xpose.msra.mxu0 0.0
        %1820 = vmatprep.subr.mxu0 0.0
        %1821 = vmatpush1.xpose.msra.mxu0 0.0
        %1822 = vmatprep.subr.mxu0 0.0
        %1823 = vmatpush1.xpose.msra.mxu0 0.0
        %1824 = vmatprep.subr.mxu0 0.0
        %1825 = vmatpush1.xpose.msra.mxu0 0.0
        %1826 = vmatprep.subr.mxu0 0.0
        %1827 = vmatpush1.xpose.msra.mxu0 0.0
        %1828 = vmatprep.subr.mxu0 0.0
        %1829 = vmatpush1.xpose.msra.mxu0 0.0
        %1830 = vmatprep.subr.mxu0 0.0
        %1831 = vmatpush1.xpose.msra.mxu0 0.0
        %1832 = vmatprep.subr.mxu0 0.0
        %1833 = vmatpush1.xpose.msra.mxu0 0.0
        %1834 = vmatprep.subr.mxu0 0.0
        %1835 = vmatpush1.xpose.msra.mxu0 0.0
        %1836 = vmatprep.subr.mxu0 0.0
        %1837 = vmatpush1.xpose.msra.mxu0 0.0
        %1838 = vmatprep.subr.mxu0 0.0
        %1839 = vmatpush1.xpose.msra.mxu0 0.0
        %1840 = vmatprep.subr.mxu0 0.0
        %1841 = vmatpush1.xpose.msra.mxu0 0.0
        %1842 = vmatprep.subr.mxu0 0.0
        %1843 = vmatpush1.xpose.msra.mxu0 0.0
        %1844 = vmatprep.subr.mxu0 0.0
        %1845 = vmatpush1.xpose.msra.mxu0 0.0
        %1846 = vmatprep.subr.mxu0 0.0
        %1847 = vmatpush1.xpose.msra.mxu0 0.0
        %1848 = vmatprep.subr.mxu0 0.0
        %1849 = vmatpush1.xpose.msra.mxu0 0.0
        %1850 = vmatprep.subr.mxu0 0.0
        %1851 = vmatpush1.xpose.msra.mxu0 0.0
        %1852 = vmatprep.subr.mxu0 0.0
        %1853 = vmatpush1.xpose.msra.mxu0 0.0
        %1854 = vmatprep.subr.mxu0 0.0
        %1855 = vmatpush1.xpose.msra.mxu0 0.0
        %1856 = vmatprep.subr.mxu0 0.0
        %1857 = vmatpush1.xpose.msra.mxu0 0.0
        %1858 = vmatprep.subr.mxu0 0.0
        %1859 = vmatpush1.xpose.msra.mxu0 0.0
        %1860 = vmatprep.subr.mxu0 0.0
        %1861 = vmatpush1.xpose.msra.mxu0 0.0
        %1862 = vmatprep.subr.mxu0 0.0
        %1863 = vmatpush1.xpose.msra.mxu0 0.0
        %1864 = vmatprep.mubr.f32.mxu0 0.0
        %v1865 = vand.u32 %v1794, 4294901760
        %v1866 = vsub.f32 %v1794, %v1865
        %v1867 = vand.u32 %v1866, 4294901760
        %v1868 = vsub.f32 %v1866, %v1867
        %v1869 = vand.u32 %v1868, 4294901760
        %1870 = vmatmul.mubr.f32.gmra.mrb[0].mxu0 %v1869
        %v1871 = vpop.f32.mrb[0].mxu0
        %v1872 = vadd.f32 0.0, %v1871
        %v1873 = vpop.f32.mrb[0].mxu0
        %1874 = vdwg.mxu0
        %1875 = vmatprep.subr.mxu0 0.0
        %v1876 = vand.u32 %v1797, 4294901760
        %v1877 = vsub.f32 %v1797, %v1876
        %v1878 = vand.u32 %v1877, 4294901760
        %v1879 = vsub.f32 %v1877, %v1878
        %v1880 = vand.u32 %v1879, 4294901760
        %1881 = vmatpush1.xpose.msra.mxu0 %v1880
        %1882 = vmatprep.subr.mxu0 0.0
        %1883 = vmatpush1.xpose.msra.mxu0 0.0
        %1884 = vmatprep.subr.mxu0 0.0
        %1885 = vmatpush1.xpose.msra.mxu0 0.0
        %1886 = vmatprep.subr.mxu0 0.0
        %1887 = vmatpush1.xpose.msra.mxu0 0.0
        %1888 = vmatprep.subr.mxu0 0.0
        %1889 = vmatpush1.xpose.msra.mxu0 0.0
        %1890 = vmatprep.subr.mxu0 0.0
        %1891 = vmatpush1.xpose.msra.mxu0 0.0
        %1892 = vmatprep.subr.mxu0 0.0
        %1893 = vmatpush1.xpose.msra.mxu0 0.0
        %1894 = vmatprep.subr.mxu0 0.0
        %1895 = vmatpush1.xpose.msra.mxu0 0.0
        %1896 = vmatprep.subr.mxu0 0.0
        %1897 = vmatpush1.xpose.msra.mxu0 0.0
        %1898 = vmatprep.subr.mxu0 0.0
        %1899 = vmatpush1.xpose.msra.mxu0 0.0
        %1900 = vmatprep.subr.mxu0 0.0
        %1901 = vmatpush1.xpose.msra.mxu0 0.0
        %1902 = vmatprep.subr.mxu0 0.0
        %1903 = vmatpush1.xpose.msra.mxu0 0.0
        %1904 = vmatprep.subr.mxu0 0.0
        %1905 = vmatpush1.xpose.msra.mxu0 0.0
        %1906 = vmatprep.subr.mxu0 0.0
        %1907 = vmatpush1.xpose.msra.mxu0 0.0
        %1908 = vmatprep.subr.mxu0 0.0
        %1909 = vmatpush1.xpose.msra.mxu0 0.0
        %1910 = vmatprep.subr.mxu0 0.0
        %1911 = vmatpush1.xpose.msra.mxu0 0.0
        %1912 = vmatprep.subr.mxu0 0.0
        %1913 = vmatpush1.xpose.msra.mxu0 0.0
        %1914 = vmatprep.subr.mxu0 0.0
        %1915 = vmatpush1.xpose.msra.mxu0 0.0
        %1916 = vmatprep.subr.mxu0 0.0
        %1917 = vmatpush1.xpose.msra.mxu0 0.0
        %1918 = vmatprep.subr.mxu0 0.0
        %1919 = vmatpush1.xpose.msra.mxu0 0.0
        %1920 = vmatprep.subr.mxu0 0.0
        %1921 = vmatpush1.xpose.msra.mxu0 0.0
        %1922 = vmatprep.subr.mxu0 0.0
        %1923 = vmatpush1.xpose.msra.mxu0 0.0
        %1924 = vmatprep.subr.mxu0 0.0
        %1925 = vmatpush1.xpose.msra.mxu0 0.0
        %1926 = vmatprep.subr.mxu0 0.0
        %1927 = vmatpush1.xpose.msra.mxu0 0.0
        %1928 = vmatprep.subr.mxu0 0.0
        %1929 = vmatpush1.xpose.msra.mxu0 0.0
        %1930 = vmatprep.subr.mxu0 0.0
        %1931 = vmatpush1.xpose.msra.mxu0 0.0
        %1932 = vmatprep.subr.mxu0 0.0
        %1933 = vmatpush1.xpose.msra.mxu0 0.0
        %1934 = vmatprep.subr.mxu0 0.0
        %1935 = vmatpush1.xpose.msra.mxu0 0.0
        %1936 = vmatprep.subr.mxu0 0.0
        %1937 = vmatpush1.xpose.msra.mxu0 0.0
        %1938 = vmatprep.subr.mxu0 0.0
        %1939 = vmatpush1.xpose.msra.mxu0 0.0
        %1940 = vmatprep.subr.mxu0 0.0
        %1941 = vmatpush1.xpose.msra.mxu0 0.0
        %1942 = vmatprep.subr.mxu0 0.0
        %1943 = vmatpush1.xpose.msra.mxu0 0.0
        %1944 = vmatprep.mubr.f32.mxu0 0.0
        %v1945 = vand.u32 %v1794, 4294901760
        %1946 = vmatmul.mubr.f32.gmra.mrb[0].mxu0 %v1945
        %v1947 = vpop.f32.mrb[0].mxu0
        %v1948 = vadd.f32 %v1872, %v1947
        %v1949 = vpop.f32.mrb[0].mxu0
        %1950 = vdwg.mxu0
        %1951 = vmatprep.subr.mxu0 0.0
        %v1952 = vand.u32 %v1797, 4294901760
        %v1953 = vsub.f32 %v1797, %v1952
        %1954 = vmatpush1.xpose.msra.mxu0 %v1953
        %1955 = vmatprep.subr.mxu0 0.0
        %1956 = vmatpush1.xpose.msra.mxu0 0.0
        %1957 = vmatprep.subr.mxu0 0.0
        %1958 = vmatpush1.xpose.msra.mxu0 0.0
        %1959 = vmatprep.subr.mxu0 0.0
        %1960 = vmatpush1.xpose.msra.mxu0 0.0
        %1961 = vmatprep.subr.mxu0 0.0
        %1962 = vmatpush1.xpose.msra.mxu0 0.0
        %1963 = vmatprep.subr.mxu0 0.0
        %1964 = vmatpush1.xpose.msra.mxu0 0.0
        %1965 = vmatprep.subr.mxu0 0.0
        %1966 = vmatpush1.xpose.msra.mxu0 0.0
        %1967 = vmatprep.subr.mxu0 0.0
        %1968 = vmatpush1.xpose.msra.mxu0 0.0
        %1969 = vmatprep.subr.mxu0 0.0
        %1970 = vmatpush1.xpose.msra.mxu0 0.0
        %1971 = vmatprep.subr.mxu0 0.0
        %1972 = vmatpush1.xpose.msra.mxu0 0.0
        %1973 = vmatprep.subr.mxu0 0.0
        %1974 = vmatpush1.xpose.msra.mxu0 0.0
        %1975 = vmatprep.subr.mxu0 0.0
        %1976 = vmatpush1.xpose.msra.mxu0 0.0
        %1977 = vmatprep.subr.mxu0 0.0
        %1978 = vmatpush1.xpose.msra.mxu0 0.0
        %1979 = vmatprep.subr.mxu0 0.0
        %1980 = vmatpush1.xpose.msra.mxu0 0.0
        %1981 = vmatprep.subr.mxu0 0.0
        %1982 = vmatpush1.xpose.msra.mxu0 0.0
        %1983 = vmatprep.subr.mxu0 0.0
        %1984 = vmatpush1.xpose.msra.mxu0 0.0
        %1985 = vmatprep.subr.mxu0 0.0
        %1986 = vmatpush1.xpose.msra.mxu0 0.0
        %1987 = vmatprep.subr.mxu0 0.0
        %1988 = vmatpush1.xpose.msra.mxu0 0.0
        %1989 = vmatprep.subr.mxu0 0.0
        %1990 = vmatpush1.xpose.msra.mxu0 0.0
        %1991 = vmatprep.subr.mxu0 0.0
        %1992 = vmatpush1.xpose.msra.mxu0 0.0
        %1993 = vmatprep.subr.mxu0 0.0
        %1994 = vmatpush1.xpose.msra.mxu0 0.0
        %1995 = vmatprep.subr.mxu0 0.0
        %1996 = vmatpush1.xpose.msra.mxu0 0.0
        %1997 = vmatprep.subr.mxu0 0.0
        %1998 = vmatpush1.xpose.msra.mxu0 0.0
        %1999 = vmatprep.subr.mxu0 0.0
        %2000 = vmatpush1.xpose.msra.mxu0 0.0
        %2001 = vmatprep.subr.mxu0 0.0
        %2002 = vmatpush1.xpose.msra.mxu0 0.0
        %2003 = vmatprep.subr.mxu0 0.0
        %2004 = vmatpush1.xpose.msra.mxu0 0.0
        %2005 = vmatprep.subr.mxu0 0.0
        %2006 = vmatpush1.xpose.msra.mxu0 0.0
        %2007 = vmatprep.subr.mxu0 0.0
        %2008 = vmatpush1.xpose.msra.mxu0 0.0
        %2009 = vmatprep.subr.mxu0 0.0
        %2010 = vmatpush1.xpose.msra.mxu0 0.0
        %2011 = vmatprep.subr.mxu0 0.0
        %2012 = vmatpush1.xpose.msra.mxu0 0.0
        %2013 = vmatprep.subr.mxu0 0.0
        %2014 = vmatpush1.xpose.msra.mxu0 0.0
        %2015 = vmatprep.subr.mxu0 0.0
        %2016 = vmatpush1.xpose.msra.mxu0 0.0
        %2017 = vmatprep.mubr.f32.mxu0 0.0
        %v2018 = vand.u32 %v1794, 4294901760
        %v2019 = vsub.f32 %v1794, %v2018
        %2020 = vmatmul.mubr.f32.gmra.mrb[0].mxu0 %v2019
        %v2021 = vpop.f32.mrb[0].mxu0
        %v2022 = vadd.f32 %v1948, %v2021
        %v2023 = vpop.f32.mrb[0].mxu0
        %2024 = vdwg.mxu0
        %2025 = vmatprep.subr.mxu0 0.0
        %v2026 = vand.u32 %v1797, 4294901760
        %2027 = vmatpush1.xpose.msra.mxu0 %v2026
        %2028 = vmatprep.subr.mxu0 0.0
        %2029 = vmatpush1.xpose.msra.mxu0 0.0
        %2030 = vmatprep.subr.mxu0 0.0
        %2031 = vmatpush1.xpose.msra.mxu0 0.0
        %2032 = vmatprep.subr.mxu0 0.0
        %2033 = vmatpush1.xpose.msra.mxu0 0.0
        %2034 = vmatprep.subr.mxu0 0.0
        %2035 = vmatpush1.xpose.msra.mxu0 0.0
        %2036 = vmatprep.subr.mxu0 0.0
        %2037 = vmatpush1.xpose.msra.mxu0 0.0
        %2038 = vmatprep.subr.mxu0 0.0
        %2039 = vmatpush1.xpose.msra.mxu0 0.0
        %2040 = vmatprep.subr.mxu0 0.0
        %2041 = vmatpush1.xpose.msra.mxu0 0.0
        %2042 = vmatprep.subr.mxu0 0.0
        %2043 = vmatpush1.xpose.msra.mxu0 0.0
        %2044 = vmatprep.subr.mxu0 0.0
        %2045 = vmatpush1.xpose.msra.mxu0 0.0
        %2046 = vmatprep.subr.mxu0 0.0
        %2047 = vmatpush1.xpose.msra.mxu0 0.0
        %2048 = vmatprep.subr.mxu0 0.0
        %2049 = vmatpush1.xpose.msra.mxu0 0.0
        %2050 = vmatprep.subr.mxu0 0.0
        %2051 = vmatpush1.xpose.msra.mxu0 0.0
        %2052 = vmatprep.subr.mxu0 0.0
        %2053 = vmatpush1.xpose.msra.mxu0 0.0
        %2054 = vmatprep.subr.mxu0 0.0
        %2055 = vmatpush1.xpose.msra.mxu0 0.0
        %2056 = vmatprep.subr.mxu0 0.0
        %2057 = vmatpush1.xpose.msra.mxu0 0.0
        %2058 = vmatprep.subr.mxu0 0.0
        %2059 = vmatpush1.xpose.msra.mxu0 0.0
        %2060 = vmatprep.subr.mxu0 0.0
        %2061 = vmatpush1.xpose.msra.mxu0 0.0
        %2062 = vmatprep.subr.mxu0 0.0
        %2063 = vmatpush1.xpose.msra.mxu0 0.0
        %2064 = vmatprep.subr.mxu0 0.0
        %2065 = vmatpush1.xpose.msra.mxu0 0.0
        %2066 = vmatprep.subr.mxu0 0.0
        %2067 = vmatpush1.xpose.msra.mxu0 0.0
        %2068 = vmatprep.subr.mxu0 0.0
        %2069 = vmatpush1.xpose.msra.mxu0 0.0
        %2070 = vmatprep.subr.mxu0 0.0
        %2071 = vmatpush1.xpose.msra.mxu0 0.0
        %2072 = vmatprep.subr.mxu0 0.0
        %2073 = vmatpush1.xpose.msra.mxu0 0.0
        %2074 = vmatprep.subr.mxu0 0.0
        %2075 = vmatpush1.xpose.msra.mxu0 0.0
        %2076 = vmatprep.subr.mxu0 0.0
        %2077 = vmatpush1.xpose.msra.mxu0 0.0
        %2078 = vmatprep.subr.mxu0 0.0
        %2079 = vmatpush1.xpose.msra.mxu0 0.0
        %2080 = vmatprep.subr.mxu0 0.0
        %2081 = vmatpush1.xpose.msra.mxu0 0.0
        %2082 = vmatprep.subr.mxu0 0.0
        %2083 = vmatpush1.xpose.msra.mxu0 0.0
        %2084 = vmatprep.subr.mxu0 0.0
        %2085 = vmatpush1.xpose.msra.mxu0 0.0
        %2086 = vmatprep.subr.mxu0 0.0
        %2087 = vmatpush1.xpose.msra.mxu0 0.0
        %2088 = vmatprep.subr.mxu0 0.0
        %2089 = vmatpush1.xpose.msra.mxu0 0.0
        %2090 = vmatprep.mubr.f32.mxu0 0.0
        %v2091 = vand.u32 %v1794, 4294901760
        %v2092 = vsub.f32 %v1794, %v2091
        %v2093 = vand.u32 %v2092, 4294901760
        %2094 = vmatmul.mubr.f32.gmra.mrb[0].mxu0 %v2093
        %v2095 = vpop.f32.mrb[0].mxu0
        %v2096 = vadd.f32 %v2022, %v2095
        %v2097 = vpop.f32.mrb[0].mxu0
        %2098 = vdwg.mxu0
        %2099 = vmatprep.subr.mxu0 0.0
        %v2100 = vand.u32 %v1797, 4294901760
        %v2101 = vsub.f32 %v1797, %v2100
        %v2102 = vand.u32 %v2101, 4294901760
        %2103 = vmatpush1.xpose.msra.mxu0 %v2102
        %2104 = vmatprep.subr.mxu0 0.0
        %2105 = vmatpush1.xpose.msra.mxu0 0.0
        %2106 = vmatprep.subr.mxu0 0.0
        %2107 = vmatpush1.xpose.msra.mxu0 0.0
        %2108 = vmatprep.subr.mxu0 0.0
        %2109 = vmatpush1.xpose.msra.mxu0 0.0
        %2110 = vmatprep.subr.mxu0 0.0
        %2111 = vmatpush1.xpose.msra.mxu0 0.0
        %2112 = vmatprep.subr.mxu0 0.0
        %2113 = vmatpush1.xpose.msra.mxu0 0.0
        %2114 = vmatprep.subr.mxu0 0.0
        %2115 = vmatpush1.xpose.msra.mxu0 0.0
        %2116 = vmatprep.subr.mxu0 0.0
        %2117 = vmatpush1.xpose.msra.mxu0 0.0
        %2118 = vmatprep.subr.mxu0 0.0
        %2119 = vmatpush1.xpose.msra.mxu0 0.0
        %2120 = vmatprep.subr.mxu0 0.0
        %2121 = vmatpush1.xpose.msra.mxu0 0.0
        %2122 = vmatprep.subr.mxu0 0.0
        %2123 = vmatpush1.xpose.msra.mxu0 0.0
        %2124 = vmatprep.subr.mxu0 0.0
        %2125 = vmatpush1.xpose.msra.mxu0 0.0
        %2126 = vmatprep.subr.mxu0 0.0
        %2127 = vmatpush1.xpose.msra.mxu0 0.0
        %2128 = vmatprep.subr.mxu0 0.0
        %2129 = vmatpush1.xpose.msra.mxu0 0.0
        %2130 = vmatprep.subr.mxu0 0.0
        %2131 = vmatpush1.xpose.msra.mxu0 0.0
        %2132 = vmatprep.subr.mxu0 0.0
        %2133 = vmatpush1.xpose.msra.mxu0 0.0
        %2134 = vmatprep.subr.mxu0 0.0
        %2135 = vmatpush1.xpose.msra.mxu0 0.0
        %2136 = vmatprep.subr.mxu0 0.0
        %2137 = vmatpush1.xpose.msra.mxu0 0.0
        %2138 = vmatprep.subr.mxu0 0.0
        %2139 = vmatpush1.xpose.msra.mxu0 0.0
        %2140 = vmatprep.subr.mxu0 0.0
        %2141 = vmatpush1.xpose.msra.mxu0 0.0
        %2142 = vmatprep.subr.mxu0 0.0
        %2143 = vmatpush1.xpose.msra.mxu0 0.0
        %2144 = vmatprep.subr.mxu0 0.0
        %2145 = vmatpush1.xpose.msra.mxu0 0.0
        %2146 = vmatprep.subr.mxu0 0.0
        %2147 = vmatpush1.xpose.msra.mxu0 0.0
        %2148 = vmatprep.subr.mxu0 0.0
        %2149 = vmatpush1.xpose.msra.mxu0 0.0
        %2150 = vmatprep.subr.mxu0 0.0
        %2151 = vmatpush1.xpose.msra.mxu0 0.0
        %2152 = vmatprep.subr.mxu0 0.0
        %2153 = vmatpush1.xpose.msra.mxu0 0.0
        %2154 = vmatprep.subr.mxu0 0.0
        %2155 = vmatpush1.xpose.msra.mxu0 0.0
        %2156 = vmatprep.subr.mxu0 0.0
        %2157 = vmatpush1.xpose.msra.mxu0 0.0
        %2158 = vmatprep.subr.mxu0 0.0
        %2159 = vmatpush1.xpose.msra.mxu0 0.0
        %2160 = vmatprep.subr.mxu0 0.0
        %2161 = vmatpush1.xpose.msra.mxu0 0.0
        %2162 = vmatprep.subr.mxu0 0.0
        %2163 = vmatpush1.xpose.msra.mxu0 0.0
        %2164 = vmatprep.subr.mxu0 0.0
        %2165 = vmatpush1.xpose.msra.mxu0 0.0
        %2166 = vmatprep.mubr.f32.mxu0 0.0
        %v2167 = vand.u32 %v1794, 4294901760
        %2168 = vmatmul.mubr.f32.gmra.mrb[0].mxu0 %v2167
        %v2169 = vpop.f32.mrb[0].mxu0
        %v2170 = vadd.f32 %v2096, %v2169
        %v2171 = vpop.f32.mrb[0].mxu0
        %2172 = vdwg.mxu0
        %2173 = vmatprep.subr.mxu0 0.0
        %v2174 = vand.u32 %v1797, 4294901760
        %2175 = vmatpush1.xpose.msra.mxu0 %v2174
        %2176 = vmatprep.subr.mxu0 0.0
        %2177 = vmatpush1.xpose.msra.mxu0 0.0
        %2178 = vmatprep.subr.mxu0 0.0
        %2179 = vmatpush1.xpose.msra.mxu0 0.0
        %2180 = vmatprep.subr.mxu0 0.0
        %2181 = vmatpush1.xpose.msra.mxu0 0.0
        %2182 = vmatprep.subr.mxu0 0.0
        %2183 = vmatpush1.xpose.msra.mxu0 0.0
        %2184 = vmatprep.subr.mxu0 0.0
        %2185 = vmatpush1.xpose.msra.mxu0 0.0
        %2186 = vmatprep.subr.mxu0 0.0
        %2187 = vmatpush1.xpose.msra.mxu0 0.0
        %2188 = vmatprep.subr.mxu0 0.0
        %2189 = vmatpush1.xpose.msra.mxu0 0.0
        %2190 = vmatprep.subr.mxu0 0.0
        %2191 = vmatpush1.xpose.msra.mxu0 0.0
        %2192 = vmatprep.subr.mxu0 0.0
        %2193 = vmatpush1.xpose.msra.mxu0 0.0
        %2194 = vmatprep.subr.mxu0 0.0
        %2195 = vmatpush1.xpose.msra.mxu0 0.0
        %2196 = vmatprep.subr.mxu0 0.0
        %2197 = vmatpush1.xpose.msra.mxu0 0.0
        %2198 = vmatprep.subr.mxu0 0.0
        %2199 = vmatpush1.xpose.msra.mxu0 0.0
        %2200 = vmatprep.subr.mxu0 0.0
        %2201 = vmatpush1.xpose.msra.mxu0 0.0
        %2202 = vmatprep.subr.mxu0 0.0
        %2203 = vmatpush1.xpose.msra.mxu0 0.0
        %2204 = vmatprep.subr.mxu0 0.0
        %2205 = vmatpush1.xpose.msra.mxu0 0.0
        %2206 = vmatprep.subr.mxu0 0.0
        %2207 = vmatpush1.xpose.msra.mxu0 0.0
        %2208 = vmatprep.subr.mxu0 0.0
        %2209 = vmatpush1.xpose.msra.mxu0 0.0
        %2210 = vmatprep.subr.mxu0 0.0
        %2211 = vmatpush1.xpose.msra.mxu0 0.0
        %2212 = vmatprep.subr.mxu0 0.0
        %2213 = vmatpush1.xpose.msra.mxu0 0.0
        %2214 = vmatprep.subr.mxu0 0.0
        %2215 = vmatpush1.xpose.msra.mxu0 0.0
        %2216 = vmatprep.subr.mxu0 0.0
        %2217 = vmatpush1.xpose.msra.mxu0 0.0
        %2218 = vmatprep.subr.mxu0 0.0
        %2219 = vmatpush1.xpose.msra.mxu0 0.0
        %2220 = vmatprep.subr.mxu0 0.0
        %2221 = vmatpush1.xpose.msra.mxu0 0.0
        %2222 = vmatprep.subr.mxu0 0.0
        %2223 = vmatpush1.xpose.msra.mxu0 0.0
        %2224 = vmatprep.subr.mxu0 0.0
        %2225 = vmatpush1.xpose.msra.mxu0 0.0
        %2226 = vmatprep.subr.mxu0 0.0
        %2227 = vmatpush1.xpose.msra.mxu0 0.0
        %2228 = vmatprep.subr.mxu0 0.0
        %2229 = vmatpush1.xpose.msra.mxu0 0.0
        %2230 = vmatprep.subr.mxu0 0.0
        %2231 = vmatpush1.xpose.msra.mxu0 0.0
        %2232 = vmatprep.subr.mxu0 0.0
        %2233 = vmatpush1.xpose.msra.mxu0 0.0
        %2234 = vmatprep.subr.mxu0 0.0
        %2235 = vmatpush1.xpose.msra.mxu0 0.0
        %2236 = vmatprep.subr.mxu0 0.0
        %2237 = vmatpush1.xpose.msra.mxu0 0.0
        %2238 = vmatprep.mubr.f32.mxu0 0.0
        %v2239 = vand.u32 %v1794, 4294901760
        %2240 = vmatmul.mubr.f32.gmra.mrb[0].mxu0 %v2239
        %v2241 = vpop.f32.mrb[0].mxu0
        %v2242 = vadd.f32 %v2170, %v2241
        %v2243 = vpop.f32.mrb[0].mxu0
        %2244 = vdwg.mxu0
        %v2245 = vsel %vm1791, %v2242, -inf
        %vm2246 = vcmask 64512
        %v2247 = vsel %vm2246, %v2245, -inf
        %2248 = vmax.xlane.f32.xlu0 %v2247
        %v2249 = vpop.xlane.xlu0 %2248
        %v2250 = vsub.f32 %v2245, %v2249
        %v2251 = vmul.f32 %v2250, 1.442695
        %v2252 = vpow.pop %v2251
        %v2253 = vsel %vm2246, %v2252, 0.0
        %2254 = vadd.xlane.f32.xlu0 %v2253
        %v2255 = vpop.xlane.xlu0 %2254
        %v2256 = vrcp.pop %v2255
        %v2257 = vmul.f32 %v2252, %v2256
        %v2259 = vsel %vm2246, %v2257, 0
        %2261 = vmatprep.subr.mxu0 0.0
        %v2262 = vand.u32 %v1784, 4294901760
        %2263 = vmatpush1.msra.mxu0 %v2262
        %2264 = vmatprep.subr.mxu0 0.0
        %2265 = vmatpush1.msra.mxu0 0.0
        %2266 = vmatprep.subr.mxu0 0.0
        %2267 = vmatpush1.msra.mxu0 0.0
        %2268 = vmatprep.subr.mxu0 0.0
        %2269 = vmatpush1.msra.mxu0 0.0
        %2270 = vmatprep.subr.mxu0 0.0
        %2271 = vmatpush1.msra.mxu0 0.0
        %2272 = vmatprep.subr.mxu0 0.0
        %2273 = vmatpush1.msra.mxu0 0.0
        %2274 = vmatprep.subr.mxu0 0.0
        %2275 = vmatpush1.msra.mxu0 0.0
        %2276 = vmatprep.subr.mxu0 0.0
        %2277 = vmatpush1.msra.mxu0 0.0
        %2278 = vmatprep.subr.mxu0 0.0
        %2279 = vmatpush1.msra.mxu0 0.0
        %2280 = vmatprep.subr.mxu0 0.0
        %2281 = vmatpush1.msra.mxu0 0.0
        %2282 = vmatprep.subr.mxu0 0.0
        %2283 = vmatpush1.msra.mxu0 0.0
        %2284 = vmatprep.subr.mxu0 0.0
        %2285 = vmatpush1.msra.mxu0 0.0
        %2286 = vmatprep.subr.mxu0 0.0
        %2287 = vmatpush1.msra.mxu0 0.0
        %2288 = vmatprep.subr.mxu0 0.0
        %2289 = vmatpush1.msra.mxu0 0.0
        %2290 = vmatprep.subr.mxu0 0.0
        %2291 = vmatpush1.msra.mxu0 0.0
        %2292 = vmatprep.subr.mxu0 0.0
        %2293 = vmatpush1.msra.mxu0 0.0
        %2294 = vmatprep.subr.mxu0 0.0
        %2295 = vmatpush1.msra.mxu0 0.0
        %2296 = vmatprep.subr.mxu0 0.0
        %2297 = vmatpush1.msra.mxu0 0.0
        %2298 = vmatprep.subr.mxu0 0.0
        %2299 = vmatpush1.msra.mxu0 0.0
        %2300 = vmatprep.subr.mxu0 0.0
        %2301 = vmatpush1.msra.mxu0 0.0
        %2302 = vmatprep.subr.mxu0 0.0
        %2303 = vmatpush1.msra.mxu0 0.0
        %2304 = vmatprep.subr.mxu0 0.0
        %2305 = vmatpush1.msra.mxu0 0.0
        %2306 = vmatprep.subr.mxu0 0.0
        %2307 = vmatpush1.msra.mxu0 0.0
        %2308 = vmatprep.subr.mxu0 0.0
        %2309 = vmatpush1.msra.mxu0 0.0
        %2310 = vmatprep.subr.mxu0 0.0
        %2311 = vmatpush1.msra.mxu0 0.0
        %2312 = vmatprep.subr.mxu0 0.0
        %2313 = vmatpush1.msra.mxu0 0.0
        %2314 = vmatprep.subr.mxu0 0.0
        %2315 = vmatpush1.msra.mxu0 0.0
        %2316 = vmatprep.subr.mxu0 0.0
        %2317 = vmatpush1.msra.mxu0 0.0
        %2318 = vmatprep.subr.mxu0 0.0
        %2319 = vmatpush1.msra.mxu0 0.0
        %2320 = vmatprep.subr.mxu0 0.0
        %2321 = vmatpush1.msra.mxu0 0.0
        %2322 = vmatprep.subr.mxu0 0.0
        %2323 = vmatpush1.msra.mxu0 0.0
        %2324 = vmatprep.subr.mxu0 0.0
        %2325 = vmatpush1.msra.mxu0 0.0
        %2326 = vmatprep.mubr.f32.mxu0 0.0
        %v2327 = vand.u32 %v2259, 4294901760
        %v2328 = vsub.f32 %v2259, %v2327
        %v2329 = vand.u32 %v2328, 4294901760
        %v2330 = vsub.f32 %v2328, %v2329
        %v2331 = vand.u32 %v2330, 4294901760
        %2332 = vmatmul.mubr.f32.gmra.mrb[0].mxu0 %v2331
        %v2333 = vpop.f32.mrb[0].mxu0
        %v2334 = vadd.f32 0.0, %v2333
        %v2335 = vpop.f32.mrb[0].mxu0
        %2336 = vdwg.mxu0
        %2337 = vmatprep.subr.mxu0 0.0
        %v2338 = vand.u32 %v1784, 4294901760
        %v2339 = vsub.f32 %v1784, %v2338
        %v2340 = vand.u32 %v2339, 4294901760
        %v2341 = vsub.f32 %v2339, %v2340
        %v2342 = vand.u32 %v2341, 4294901760
        %2343 = vmatpush1.msra.mxu0 %v2342
        %2344 = vmatprep.subr.mxu0 0.0
        %2345 = vmatpush1.msra.mxu0 0.0
        %2346 = vmatprep.subr.mxu0 0.0
        %2347 = vmatpush1.msra.mxu0 0.0
        %2348 = vmatprep.subr.mxu0 0.0
        %2349 = vmatpush1.msra.mxu0 0.0
        %2350 = vmatprep.subr.mxu0 0.0
        %2351 = vmatpush1.msra.mxu0 0.0
        %2352 = vmatprep.subr.mxu0 0.0
        %2353 = vmatpush1.msra.mxu0 0.0
        %2354 = vmatprep.subr.mxu0 0.0
        %2355 = vmatpush1.msra.mxu0 0.0
        %2356 = vmatprep.subr.mxu0 0.0
        %2357 = vmatpush1.msra.mxu0 0.0
        %2358 = vmatprep.subr.mxu0 0.0
        %2359 = vmatpush1.msra.mxu0 0.0
        %2360 = vmatprep.subr.mxu0 0.0
        %2361 = vmatpush1.msra.mxu0 0.0
        %2362 = vmatprep.subr.mxu0 0.0
        %2363 = vmatpush1.msra.mxu0 0.0
        %2364 = vmatprep.subr.mxu0 0.0
        %2365 = vmatpush1.msra.mxu0 0.0
        %2366 = vmatprep.subr.mxu0 0.0
        %2367 = vmatpush1.msra.mxu0 0.0
        %2368 = vmatprep.subr.mxu0 0.0
        %2369 = vmatpush1.msra.mxu0 0.0
        %2370 = vmatprep.subr.mxu0 0.0
        %2371 = vmatpush1.msra.mxu0 0.0
        %2372 = vmatprep.subr.mxu0 0.0
        %2373 = vmatpush1.msra.mxu0 0.0
        %2374 = vmatprep.subr.mxu0 0.0
        %2375 = vmatpush1.msra.mxu0 0.0
        %2376 = vmatprep.subr.mxu0 0.0
        %2377 = vmatpush1.msra.mxu0 0.0
        %2378 = vmatprep.subr.mxu0 0.0
        %2379 = vmatpush1.msra.mxu0 0.0
        %2380 = vmatprep.subr.mxu0 0.0
        %2381 = vmatpush1.msra.mxu0 0.0
        %2382 = vmatprep.subr.mxu0 0.0
        %2383 = vmatpush1.msra.mxu0 0.0
        %2384 = vmatprep.subr.mxu0 0.0
        %2385 = vmatpush1.msra.mxu0 0.0
        %2386 = vmatprep.subr.mxu0 0.0
        %2387 = vmatpush1.msra.mxu0 0.0
        %2388 = vmatprep.subr.mxu0 0.0
        %2389 = vmatpush1.msra.mxu0 0.0
        %2390 = vmatprep.subr.mxu0 0.0
        %2391 = vmatpush1.msra.mxu0 0.0
        %2392 = vmatprep.subr.mxu0 0.0
        %2393 = vmatpush1.msra.mxu0 0.0
        %2394 = vmatprep.subr.mxu0 0.0
        %2395 = vmatpush1.msra.mxu0 0.0
        %2396 = vmatprep.subr.mxu0 0.0
        %2397 = vmatpush1.msra.mxu0 0.0
        %2398 = vmatprep.subr.mxu0 0.0
        %2399 = vmatpush1.msra.mxu0 0.0
        %2400 = vmatprep.subr.mxu0 0.0
        %2401 = vmatpush1.msra.mxu0 0.0
        %2402 = vmatprep.subr.mxu0 0.0
        %2403 = vmatpush1.msra.mxu0 0.0
        %2404 = vmatprep.subr.mxu0 0.0
        %2405 = vmatpush1.msra.mxu0 0.0
        %2406 = vmatprep.mubr.f32.mxu0 0.0
        %v2407 = vand.u32 %v2259, 4294901760
        %2408 = vmatmul.mubr.f32.gmra.mrb[0].mxu0 %v2407
        %v2409 = vpop.f32.mrb[0].mxu0
        %v2410 = vadd.f32 %v2334, %v2409
        %v2411 = vpop.f32.mrb[0].mxu0
        %2412 = vdwg.mxu0
        %2413 = vmatprep.subr.mxu0 0.0
        %v2414 = vand.u32 %v1784, 4294901760
        %v2415 = vsub.f32 %v1784, %v2414
        %2416 = vmatpush1.msra.mxu0 %v2415
        %2417 = vmatprep.subr.mxu0 0.0
        %2418 = vmatpush1.msra.mxu0 0.0
        %2419 = vmatprep.subr.mxu0 0.0
        %2420 = vmatpush1.msra.mxu0 0.0
        %2421 = vmatprep.subr.mxu0 0.0
        %2422 = vmatpush1.msra.mxu0 0.0
        %2423 = vmatprep.subr.mxu0 0.0
        %2424 = vmatpush1.msra.mxu0 0.0
        %2425 = vmatprep.subr.mxu0 0.0
        %2426 = vmatpush1.msra.mxu0 0.0
        %2427 = vmatprep.subr.mxu0 0.0
        %2428 = vmatpush1.msra.mxu0 0.0
        %2429 = vmatprep.subr.mxu0 0.0
        %2430 = vmatpush1.msra.mxu0 0.0
        %2431 = vmatprep.subr.mxu0 0.0
        %2432 = vmatpush1.msra.mxu0 0.0
        %2433 = vmatprep.subr.mxu0 0.0
        %2434 = vmatpush1.msra.mxu0 0.0
        %2435 = vmatprep.subr.mxu0 0.0
        %2436 = vmatpush1.msra.mxu0 0.0
        %2437 = vmatprep.subr.mxu0 0.0
        %2438 = vmatpush1.msra.mxu0 0.0
        %2439 = vmatprep.subr.mxu0 0.0
        %2440 = vmatpush1.msra.mxu0 0.0
        %2441 = vmatprep.subr.mxu0 0.0
        %2442 = vmatpush1.msra.mxu0 0.0
        %2443 = vmatprep.subr.mxu0 0.0
        %2444 = vmatpush1.msra.mxu0 0.0
        %2445 = vmatprep.subr.mxu0 0.0
        %2446 = vmatpush1.msra.mxu0 0.0
        %2447 = vmatprep.subr.mxu0 0.0
        %2448 = vmatpush1.msra.mxu0 0.0
        %2449 = vmatprep.subr.mxu0 0.0
        %2450 = vmatpush1.msra.mxu0 0.0
        %2451 = vmatprep.subr.mxu0 0.0
        %2452 = vmatpush1.msra.mxu0 0.0
        %2453 = vmatprep.subr.mxu0 0.0
        %2454 = vmatpush1.msra.mxu0 0.0
        %2455 = vmatprep.subr.mxu0 0.0
        %2456 = vmatpush1.msra.mxu0 0.0
        %2457 = vmatprep.subr.mxu0 0.0
        %2458 = vmatpush1.msra.mxu0 0.0
        %2459 = vmatprep.subr.mxu0 0.0
        %2460 = vmatpush1.msra.mxu0 0.0
        %2461 = vmatprep.subr.mxu0 0.0
        %2462 = vmatpush1.msra.mxu0 0.0
        %2463 = vmatprep.subr.mxu0 0.0
        %2464 = vmatpush1.msra.mxu0 0.0
        %2465 = vmatprep.subr.mxu0 0.0
        %2466 = vmatpush1.msra.mxu0 0.0
        %2467 = vmatprep.subr.mxu0 0.0
        %2468 = vmatpush1.msra.mxu0 0.0
        %2469 = vmatprep.subr.mxu0 0.0
        %2470 = vmatpush1.msra.mxu0 0.0
        %2471 = vmatprep.subr.mxu0 0.0
        %2472 = vmatpush1.msra.mxu0 0.0
        %2473 = vmatprep.subr.mxu0 0.0
        %2474 = vmatpush1.msra.mxu0 0.0
        %2475 = vmatprep.subr.mxu0 0.0
        %2476 = vmatpush1.msra.mxu0 0.0
        %2477 = vmatprep.subr.mxu0 0.0
        %2478 = vmatpush1.msra.mxu0 0.0
        %2479 = vmatprep.mubr.f32.mxu0 0.0
        %v2480 = vand.u32 %v2259, 4294901760
        %v2481 = vsub.f32 %v2259, %v2480
        %2482 = vmatmul.mubr.f32.gmra.mrb[0].mxu0 %v2481
        %v2483 = vpop.f32.mrb[0].mxu0
        %v2484 = vadd.f32 %v2410, %v2483
        %v2485 = vpop.f32.mrb[0].mxu0
        %2486 = vdwg.mxu0
        %2487 = vmatprep.subr.mxu0 0.0
        %v2488 = vand.u32 %v1784, 4294901760
        %2489 = vmatpush1.msra.mxu0 %v2488
        %2490 = vmatprep.subr.mxu0 0.0
        %2491 = vmatpush1.msra.mxu0 0.0
        %2492 = vmatprep.subr.mxu0 0.0
        %2493 = vmatpush1.msra.mxu0 0.0
        %2494 = vmatprep.subr.mxu0 0.0
        %2495 = vmatpush1.msra.mxu0 0.0
        %2496 = vmatprep.subr.mxu0 0.0
        %2497 = vmatpush1.msra.mxu0 0.0
        %2498 = vmatprep.subr.mxu0 0.0
        %2499 = vmatpush1.msra.mxu0 0.0
        %2500 = vmatprep.subr.mxu0 0.0
        %2501 = vmatpush1.msra.mxu0 0.0
        %2502 = vmatprep.subr.mxu0 0.0
        %2503 = vmatpush1.msra.mxu0 0.0
        %2504 = vmatprep.subr.mxu0 0.0
        %2505 = vmatpush1.msra.mxu0 0.0
        %2506 = vmatprep.subr.mxu0 0.0
        %2507 = vmatpush1.msra.mxu0 0.0
        %2508 = vmatprep.subr.mxu0 0.0
        %2509 = vmatpush1.msra.mxu0 0.0
        %2510 = vmatprep.subr.mxu0 0.0
        %2511 = vmatpush1.msra.mxu0 0.0
        %2512 = vmatprep.subr.mxu0 0.0
        %2513 = vmatpush1.msra.mxu0 0.0
        %2514 = vmatprep.subr.mxu0 0.0
        %2515 = vmatpush1.msra.mxu0 0.0
        %2516 = vmatprep.subr.mxu0 0.0
        %2517 = vmatpush1.msra.mxu0 0.0
        %2518 = vmatprep.subr.mxu0 0.0
        %2519 = vmatpush1.msra.mxu0 0.0
        %2520 = vmatprep.subr.mxu0 0.0
        %2521 = vmatpush1.msra.mxu0 0.0
        %2522 = vmatprep.subr.mxu0 0.0
        %2523 = vmatpush1.msra.mxu0 0.0
        %2524 = vmatprep.subr.mxu0 0.0
        %2525 = vmatpush1.msra.mxu0 0.0
        %2526 = vmatprep.subr.mxu0 0.0
        %2527 = vmatpush1.msra.mxu0 0.0
        %2528 = vmatprep.subr.mxu0 0.0
        %2529 = vmatpush1.msra.mxu0 0.0
        %2530 = vmatprep.subr.mxu0 0.0
        %2531 = vmatpush1.msra.mxu0 0.0
        %2532 = vmatprep.subr.mxu0 0.0
        %2533 = vmatpush1.msra.mxu0 0.0
        %2534 = vmatprep.subr.mxu0 0.0
        %2535 = vmatpush1.msra.mxu0 0.0
        %2536 = vmatprep.subr.mxu0 0.0
        %2537 = vmatpush1.msra.mxu0 0.0
        %2538 = vmatprep.subr.mxu0 0.0
        %2539 = vmatpush1.msra.mxu0 0.0
        %2540 = vmatprep.subr.mxu0 0.0
        %2541 = vmatpush1.msra.mxu0 0.0
        %2542 = vmatprep.subr.mxu0 0.0
        %2543 = vmatpush1.msra.mxu0 0.0
        %2544 = vmatprep.subr.mxu0 0.0
        %2545 = vmatpush1.msra.mxu0 0.0
        %2546 = vmatprep.subr.mxu0 0.0
        %2547 = vmatpush1.msra.mxu0 0.0
        %2548 = vmatprep.subr.mxu0 0.0
        %2549 = vmatpush1.msra.mxu0 0.0
        %2550 = vmatprep.subr.mxu0 0.0
        %2551 = vmatpush1.msra.mxu0 0.0
        %2552 = vmatprep.mubr.f32.mxu0 0.0
        %v2553 = vand.u32 %v2259, 4294901760
        %v2554 = vsub.f32 %v2259, %v2553
        %v2555 = vand.u32 %v2554, 4294901760
        %2556 = vmatmul.mubr.f32.gmra.mrb[0].mxu0 %v2555
        %v2557 = vpop.f32.mrb[0].mxu0
        %v2558 = vadd.f32 %v2484, %v2557
        %v2559 = vpop.f32.mrb[0].mxu0
        %2560 = vdwg.mxu0
        %2561 = vmatprep.subr.mxu0 0.0
        %v2562 = vand.u32 %v1784, 4294901760
        %v2563 = vsub.f32 %v1784, %v2562
        %v2564 = vand.u32 %v2563, 4294901760
        %2565 = vmatpush1.msra.mxu0 %v2564
        %2566 = vmatprep.subr.mxu0 0.0
        %2567 = vmatpush1.msra.mxu0 0.0
        %2568 = vmatprep.subr.mxu0 0.0
        %2569 = vmatpush1.msra.mxu0 0.0
        %2570 = vmatprep.subr.mxu0 0.0
        %2571 = vmatpush1.msra.mxu0 0.0
        %2572 = vmatprep.subr.mxu0 0.0
        %2573 = vmatpush1.msra.mxu0 0.0
        %2574 = vmatprep.subr.mxu0 0.0
        %2575 = vmatpush1.msra.mxu0 0.0
        %2576 = vmatprep.subr.mxu0 0.0
        %2577 = vmatpush1.msra.mxu0 0.0
        %2578 = vmatprep.subr.mxu0 0.0
        %2579 = vmatpush1.msra.mxu0 0.0
        %2580 = vmatprep.subr.mxu0 0.0
        %2581 = vmatpush1.msra.mxu0 0.0
        %2582 = vmatprep.subr.mxu0 0.0
        %2583 = vmatpush1.msra.mxu0 0.0
        %2584 = vmatprep.subr.mxu0 0.0
        %2585 = vmatpush1.msra.mxu0 0.0
        %2586 = vmatprep.subr.mxu0 0.0
        %2587 = vmatpush1.msra.mxu0 0.0
        %2588 = vmatprep.subr.mxu0 0.0
        %2589 = vmatpush1.msra.mxu0 0.0
        %2590 = vmatprep.subr.mxu0 0.0
        %2591 = vmatpush1.msra.mxu0 0.0
        %2592 = vmatprep.subr.mxu0 0.0
        %2593 = vmatpush1.msra.mxu0 0.0
        %2594 = vmatprep.subr.mxu0 0.0
        %2595 = vmatpush1.msra.mxu0 0.0
        %2596 = vmatprep.subr.mxu0 0.0
        %2597 = vmatpush1.msra.mxu0 0.0
        %2598 = vmatprep.subr.mxu0 0.0
        %2599 = vmatpush1.msra.mxu0 0.0
        %2600 = vmatprep.subr.mxu0 0.0
        %2601 = vmatpush1.msra.mxu0 0.0
        %2602 = vmatprep.subr.mxu0 0.0
        %2603 = vmatpush1.msra.mxu0 0.0
        %2604 = vmatprep.subr.mxu0 0.0
        %2605 = vmatpush1.msra.mxu0 0.0
        %2606 = vmatprep.subr.mxu0 0.0
        %2607 = vmatpush1.msra.mxu0 0.0
        %2608 = vmatprep.subr.mxu0 0.0
        %2609 = vmatpush1.msra.mxu0 0.0
        %2610 = vmatprep.subr.mxu0 0.0
        %2611 = vmatpush1.msra.mxu0 0.0
        %2612 = vmatprep.subr.mxu0 0.0
        %2613 = vmatpush1.msra.mxu0 0.0
        %2614 = vmatprep.subr.mxu0 0.0
        %2615 = vmatpush1.msra.mxu0 0.0
        %2616 = vmatprep.subr.mxu0 0.0
        %2617 = vmatpush1.msra.mxu0 0.0
        %2618 = vmatprep.subr.mxu0 0.0
        %2619 = vmatpush1.msra.mxu0 0.0
        %2620 = vmatprep.subr.mxu0 0.0
        %2621 = vmatpush1.msra.mxu0 0.0
        %2622 = vmatprep.subr.mxu0 0.0
        %2623 = vmatpush1.msra.mxu0 0.0
        %2624 = vmatprep.subr.mxu0 0.0
        %2625 = vmatpush1.msra.mxu0 0.0
        %2626 = vmatprep.subr.mxu0 0.0
        %2627 = vmatpush1.msra.mxu0 0.0
        %2628 = vmatprep.mubr.f32.mxu0 0.0
        %v2629 = vand.u32 %v2259, 4294901760
        %2630 = vmatmul.mubr.f32.gmra.mrb[0].mxu0 %v2629
        %v2631 = vpop.f32.mrb[0].mxu0
        %v2632 = vadd.f32 %v2558, %v2631
        %v2633 = vpop.f32.mrb[0].mxu0
        %2634 = vdwg.mxu0
        %2635 = vmatprep.subr.mxu0 0.0
        %v2636 = vand.u32 %v1784, 4294901760
        %2637 = vmatpush1.msra.mxu0 %v2636
        %2638 = vmatprep.subr.mxu0 0.0
        %2639 = vmatpush1.msra.mxu0 0.0
        %2640 = vmatprep.subr.mxu0 0.0
        %2641 = vmatpush1.msra.mxu0 0.0
        %2642 = vmatprep.subr.mxu0 0.0
        %2643 = vmatpush1.msra.mxu0 0.0
        %2644 = vmatprep.subr.mxu0 0.0
        %2645 = vmatpush1.msra.mxu0 0.0
        %2646 = vmatprep.subr.mxu0 0.0
        %2647 = vmatpush1.msra.mxu0 0.0
        %2648 = vmatprep.subr.mxu0 0.0
        %2649 = vmatpush1.msra.mxu0 0.0
        %2650 = vmatprep.subr.mxu0 0.0
        %2651 = vmatpush1.msra.mxu0 0.0
        %2652 = vmatprep.subr.mxu0 0.0
        %2653 = vmatpush1.msra.mxu0 0.0
        %2654 = vmatprep.subr.mxu0 0.0
        %2655 = vmatpush1.msra.mxu0 0.0
        %2656 = vmatprep.subr.mxu0 0.0
        %2657 = vmatpush1.msra.mxu0 0.0
        %2658 = vmatprep.subr.mxu0 0.0
        %2659 = vmatpush1.msra.mxu0 0.0
        %2660 = vmatprep.subr.mxu0 0.0
        %2661 = vmatpush1.msra.mxu0 0.0
        %2662 = vmatprep.subr.mxu0 0.0
        %2663 = vmatpush1.msra.mxu0 0.0
        %2664 = vmatprep.subr.mxu0 0.0
        %2665 = vmatpush1.msra.mxu0 0.0
        %2666 = vmatprep.subr.mxu0 0.0
        %2667 = vmatpush1.msra.mxu0 0.0
        %2668 = vmatprep.subr.mxu0 0.0
        %2669 = vmatpush1.msra.mxu0 0.0
        %2670 = vmatprep.subr.mxu0 0.0
        %2671 = vmatpush1.msra.mxu0 0.0
        %2672 = vmatprep.subr.mxu0 0.0
        %2673 = vmatpush1.msra.mxu0 0.0
        %2674 = vmatprep.subr.mxu0 0.0
        %2675 = vmatpush1.msra.mxu0 0.0
        %2676 = vmatprep.subr.mxu0 0.0
        %2677 = vmatpush1.msra.mxu0 0.0
        %2678 = vmatprep.subr.mxu0 0.0
        %2679 = vmatpush1.msra.mxu0 0.0
        %2680 = vmatprep.subr.mxu0 0.0
        %2681 = vmatpush1.msra.mxu0 0.0
        %2682 = vmatprep.subr.mxu0 0.0
        %2683 = vmatpush1.msra.mxu0 0.0
        %2684 = vmatprep.subr.mxu0 0.0
        %2685 = vmatpush1.msra.mxu0 0.0
        %2686 = vmatprep.subr.mxu0 0.0
        %2687 = vmatpush1.msra.mxu0 0.0
        %2688 = vmatprep.subr.mxu0 0.0
        %2689 = vmatpush1.msra.mxu0 0.0
        %2690 = vmatprep.subr.mxu0 0.0
        %2691 = vmatpush1.msra.mxu0 0.0
        %2692 = vmatprep.subr.mxu0 0.0
        %2693 = vmatpush1.msra.mxu0 0.0
        %2694 = vmatprep.subr.mxu0 0.0
        %2695 = vmatpush1.msra.mxu0 0.0
        %2696 = vmatprep.subr.mxu0 0.0
        %2697 = vmatpush1.msra.mxu0 0.0
        %2698 = vmatprep.subr.mxu0 0.0
        %2699 = vmatpush1.msra.mxu0 0.0
        %2700 = vmatprep.mubr.f32.mxu0 0.0
        %v2701 = vand.u32 %v2259, 4294901760
        %2702 = vmatmul.mubr.f32.gmra.mrb[0].mxu0 %v2701
        %v2703 = vpop.f32.mrb[0].mxu0
        %v2704 = vadd.f32 %v2632, %v2703
        %v2705 = vpop.f32.mrb[0].mxu0
        %2706 = vdwg.mxu0
        %2707 = vrot.lane.b32.xlu0 %v1142, 96
        %v2708 = vpop.permute.xlu0 %2707
        %2709 = vrot.lane.b32.xlu0 %v1144, 96
        %v2710 = vpop.permute.xlu0 %2709
        %v2711 = vsel %vm1792, %v2708, 0
        %v2713 = vsel %vm1792, %v2710, 0
        %2715 = vmatprep.subr.mxu0 0.0
        %v2716 = vand.u32 %v2713, 4294901760
        %2717 = vmatpush1.xpose.msra.mxu0 %v2716
        %2718 = vmatprep.subr.mxu0 0.0
        %2719 = vmatpush1.xpose.msra.mxu0 0.0
        %2720 = vmatprep.subr.mxu0 0.0
        %2721 = vmatpush1.xpose.msra.mxu0 0.0
        %2722 = vmatprep.subr.mxu0 0.0
        %2723 = vmatpush1.xpose.msra.mxu0 0.0
        %2724 = vmatprep.subr.mxu0 0.0
        %2725 = vmatpush1.xpose.msra.mxu0 0.0
        %2726 = vmatprep.subr.mxu0 0.0
        %2727 = vmatpush1.xpose.msra.mxu0 0.0
        %2728 = vmatprep.subr.mxu0 0.0
        %2729 = vmatpush1.xpose.msra.mxu0 0.0
        %2730 = vmatprep.subr.mxu0 0.0
        %2731 = vmatpush1.xpose.msra.mxu0 0.0
        %2732 = vmatprep.subr.mxu0 0.0
        %2733 = vmatpush1.xpose.msra.mxu0 0.0
        %2734 = vmatprep.subr.mxu0 0.0
        %2735 = vmatpush1.xpose.msra.mxu0 0.0
        %2736 = vmatprep.subr.mxu0 0.0
        %2737 = vmatpush1.xpose.msra.mxu0 0.0
        %2738 = vmatprep.subr.mxu0 0.0
        %2739 = vmatpush1.xpose.msra.mxu0 0.0
        %2740 = vmatprep.subr.mxu0 0.0
        %2741 = vmatpush1.xpose.msra.mxu0 0.0
        %2742 = vmatprep.subr.mxu0 0.0
        %2743 = vmatpush1.xpose.msra.mxu0 0.0
        %2744 = vmatprep.subr.mxu0 0.0
        %2745 = vmatpush1.xpose.msra.mxu0 0.0
        %2746 = vmatprep.subr.mxu0 0.0
        %2747 = vmatpush1.xpose.msra.mxu0 0.0
        %2748 = vmatprep.subr.mxu0 0.0
        %2749 = vmatpush1.xpose.msra.mxu0 0.0
        %2750 = vmatprep.subr.mxu0 0.0
        %2751 = vmatpush1.xpose.msra.mxu0 0.0
        %2752 = vmatprep.subr.mxu0 0.0
        %2753 = vmatpush1.xpose.msra.mxu0 0.0
        %2754 = vmatprep.subr.mxu0 0.0
        %2755 = vmatpush1.xpose.msra.mxu0 0.0
        %2756 = vmatprep.subr.mxu0 0.0
        %2757 = vmatpush1.xpose.msra.mxu0 0.0
        %2758 = vmatprep.subr.mxu0 0.0
        %2759 = vmatpush1.xpose.msra.mxu0 0.0
        %2760 = vmatprep.subr.mxu0 0.0
        %2761 = vmatpush1.xpose.msra.mxu0 0.0
        %2762 = vmatprep.subr.mxu0 0.0
        %2763 = vmatpush1.xpose.msra.mxu0 0.0
        %2764 = vmatprep.subr.mxu0 0.0
        %2765 = vmatpush1.xpose.msra.mxu0 0.0
        %2766 = vmatprep.subr.mxu0 0.0
        %2767 = vmatpush1.xpose.msra.mxu0 0.0
        %2768 = vmatprep.subr.mxu0 0.0
        %2769 = vmatpush1.xpose.msra.mxu0 0.0
        %2770 = vmatprep.subr.mxu0 0.0
        %2771 = vmatpush1.xpose.msra.mxu0 0.0
        %2772 = vmatprep.subr.mxu0 0.0
        %2773 = vmatpush1.xpose.msra.mxu0 0.0
        %2774 = vmatprep.subr.mxu0 0.0
        %2775 = vmatpush1.xpose.msra.mxu0 0.0
        %2776 = vmatprep.subr.mxu0 0.0
        %2777 = vmatpush1.xpose.msra.mxu0 0.0
        %2778 = vmatprep.subr.mxu0 0.0
        %2779 = vmatpush1.xpose.msra.mxu0 0.0
        %2780 = vmatprep.mubr.f32.mxu0 0.0
        %v2781 = vand.u32 %v2711, 4294901760
        %v2782 = vsub.f32 %v2711, %v2781
        %v2783 = vand.u32 %v2782, 4294901760
        %v2784 = vsub.f32 %v2782, %v2783
        %v2785 = vand.u32 %v2784, 4294901760
        %2786 = vmatmul.mubr.f32.gmra.mrb[0].mxu0 %v2785
        %v2787 = vpop.f32.mrb[0].mxu0
        %v2788 = vadd.f32 0.0, %v2787
        %v2789 = vpop.f32.mrb[0].mxu0
        %2790 = vdwg.mxu0
        %2791 = vmatprep.subr.mxu0 0.0
        %v2792 = vand.u32 %v2713, 4294901760
        %v2793 = vsub.f32 %v2713, %v2792
        %v2794 = vand.u32 %v2793, 4294901760
        %v2795 = vsub.f32 %v2793, %v2794
        %v2796 = vand.u32 %v2795, 4294901760
        %2797 = vmatpush1.xpose.msra.mxu0 %v2796
        %2798 = vmatprep.subr.mxu0 0.0
        %2799 = vmatpush1.xpose.msra.mxu0 0.0
        %2800 = vmatprep.subr.mxu0 0.0
        %2801 = vmatpush1.xpose.msra.mxu0 0.0
        %2802 = vmatprep.subr.mxu0 0.0
        %2803 = vmatpush1.xpose.msra.mxu0 0.0
        %2804 = vmatprep.subr.mxu0 0.0
        %2805 = vmatpush1.xpose.msra.mxu0 0.0
        %2806 = vmatprep.subr.mxu0 0.0
        %2807 = vmatpush1.xpose.msra.mxu0 0.0
        %2808 = vmatprep.subr.mxu0 0.0
        %2809 = vmatpush1.xpose.msra.mxu0 0.0
        %2810 = vmatprep.subr.mxu0 0.0
        %2811 = vmatpush1.xpose.msra.mxu0 0.0
        %2812 = vmatprep.subr.mxu0 0.0
        %2813 = vmatpush1.xpose.msra.mxu0 0.0
        %2814 = vmatprep.subr.mxu0 0.0
        %2815 = vmatpush1.xpose.msra.mxu0 0.0
        %2816 = vmatprep.subr.mxu0 0.0
        %2817 = vmatpush1.xpose.msra.mxu0 0.0
        %2818 = vmatprep.subr.mxu0 0.0
        %2819 = vmatpush1.xpose.msra.mxu0 0.0
        %2820 = vmatprep.subr.mxu0 0.0
        %2821 = vmatpush1.xpose.msra.mxu0 0.0
        %2822 = vmatprep.subr.mxu0 0.0
        %2823 = vmatpush1.xpose.msra.mxu0 0.0
        %2824 = vmatprep.subr.mxu0 0.0
        %2825 = vmatpush1.xpose.msra.mxu0 0.0
        %2826 = vmatprep.subr.mxu0 0.0
        %2827 = vmatpush1.xpose.msra.mxu0 0.0
        %2828 = vmatprep.subr.mxu0 0.0
        %2829 = vmatpush1.xpose.msra.mxu0 0.0
        %2830 = vmatprep.subr.mxu0 0.0
        %2831 = vmatpush1.xpose.msra.mxu0 0.0
        %2832 = vmatprep.subr.mxu0 0.0
        %2833 = vmatpush1.xpose.msra.mxu0 0.0
        %2834 = vmatprep.subr.mxu0 0.0
        %2835 = vmatpush1.xpose.msra.mxu0 0.0
        %2836 = vmatprep.subr.mxu0 0.0
        %2837 = vmatpush1.xpose.msra.mxu0 0.0
        %2838 = vmatprep.subr.mxu0 0.0
        %2839 = vmatpush1.xpose.msra.mxu0 0.0
        %2840 = vmatprep.subr.mxu0 0.0
        %2841 = vmatpush1.xpose.msra.mxu0 0.0
        %2842 = vmatprep.subr.mxu0 0.0
        %2843 = vmatpush1.xpose.msra.mxu0 0.0
        %2844 = vmatprep.subr.mxu0 0.0
        %2845 = vmatpush1.xpose.msra.mxu0 0.0
        %2846 = vmatprep.subr.mxu0 0.0
        %2847 = vmatpush1.xpose.msra.mxu0 0.0
        %2848 = vmatprep.subr.mxu0 0.0
        %2849 = vmatpush1.xpose.msra.mxu0 0.0
        %2850 = vmatprep.subr.mxu0 0.0
        %2851 = vmatpush1.xpose.msra.mxu0 0.0
        %2852 = vmatprep.subr.mxu0 0.0
        %2853 = vmatpush1.xpose.msra.mxu0 0.0
        %2854 = vmatprep.subr.mxu0 0.0
        %2855 = vmatpush1.xpose.msra.mxu0 0.0
        %2856 = vmatprep.subr.mxu0 0.0
        %2857 = vmatpush1.xpose.msra.mxu0 0.0
        %2858 = vmatprep.subr.mxu0 0.0
        %2859 = vmatpush1.xpose.msra.mxu0 0.0
        %2860 = vmatprep.mubr.f32.mxu0 0.0
        %v2861 = vand.u32 %v2711, 4294901760
        %2862 = vmatmul.mubr.f32.gmra.mrb[0].mxu0 %v2861
        %v2863 = vpop.f32.mrb[0].mxu0
        %v2864 = vadd.f32 %v2788, %v2863
        %v2865 = vpop.f32.mrb[0].mxu0
        %2866 = vdwg.mxu0
        %2867 = vmatprep.subr.mxu0 0.0
        %v2868 = vand.u32 %v2713, 4294901760
        %v2869 = vsub.f32 %v2713, %v2868
        %2870 = vmatpush1.xpose.msra.mxu0 %v2869
        %2871 = vmatprep.subr.mxu0 0.0
        %2872 = vmatpush1.xpose.msra.mxu0 0.0
        %2873 = vmatprep.subr.mxu0 0.0
        %2874 = vmatpush1.xpose.msra.mxu0 0.0
        %2875 = vmatprep.subr.mxu0 0.0
        %2876 = vmatpush1.xpose.msra.mxu0 0.0
        %2877 = vmatprep.subr.mxu0 0.0
        %2878 = vmatpush1.xpose.msra.mxu0 0.0
        %2879 = vmatprep.subr.mxu0 0.0
        %2880 = vmatpush1.xpose.msra.mxu0 0.0
        %2881 = vmatprep.subr.mxu0 0.0
        %2882 = vmatpush1.xpose.msra.mxu0 0.0
        %2883 = vmatprep.subr.mxu0 0.0
        %2884 = vmatpush1.xpose.msra.mxu0 0.0
        %2885 = vmatprep.subr.mxu0 0.0
        %2886 = vmatpush1.xpose.msra.mxu0 0.0
        %2887 = vmatprep.subr.mxu0 0.0
        %2888 = vmatpush1.xpose.msra.mxu0 0.0
        %2889 = vmatprep.subr.mxu0 0.0
        %2890 = vmatpush1.xpose.msra.mxu0 0.0
        %2891 = vmatprep.subr.mxu0 0.0
        %2892 = vmatpush1.xpose.msra.mxu0 0.0
        %2893 = vmatprep.subr.mxu0 0.0
        %2894 = vmatpush1.xpose.msra.mxu0 0.0
        %2895 = vmatprep.subr.mxu0 0.0
        %2896 = vmatpush1.xpose.msra.mxu0 0.0
        %2897 = vmatprep.subr.mxu0 0.0
        %2898 = vmatpush1.xpose.msra.mxu0 0.0
        %2899 = vmatprep.subr.mxu0 0.0
        %2900 = vmatpush1.xpose.msra.mxu0 0.0
        %2901 = vmatprep.subr.mxu0 0.0
        %2902 = vmatpush1.xpose.msra.mxu0 0.0
        %2903 = vmatprep.subr.mxu0 0.0
        %2904 = vmatpush1.xpose.msra.mxu0 0.0
        %2905 = vmatprep.subr.mxu0 0.0
        %2906 = vmatpush1.xpose.msra.mxu0 0.0
        %2907 = vmatprep.subr.mxu0 0.0
        %2908 = vmatpush1.xpose.msra.mxu0 0.0
        %2909 = vmatprep.subr.mxu0 0.0
        %2910 = vmatpush1.xpose.msra.mxu0 0.0
        %2911 = vmatprep.subr.mxu0 0.0
        %2912 = vmatpush1.xpose.msra.mxu0 0.0
        %2913 = vmatprep.subr.mxu0 0.0
        %2914 = vmatpush1.xpose.msra.mxu0 0.0
        %2915 = vmatprep.subr.mxu0 0.0
        %2916 = vmatpush1.xpose.msra.mxu0 0.0
        %2917 = vmatprep.subr.mxu0 0.0
        %2918 = vmatpush1.xpose.msra.mxu0 0.0
        %2919 = vmatprep.subr.mxu0 0.0
        %2920 = vmatpush1.xpose.msra.mxu0 0.0
        %2921 = vmatprep.subr.mxu0 0.0
        %2922 = vmatpush1.xpose.msra.mxu0 0.0
        %2923 = vmatprep.subr.mxu0 0.0
        %2924 = vmatpush1.xpose.msra.mxu0 0.0
        %2925 = vmatprep.subr.mxu0 0.0
        %2926 = vmatpush1.xpose.msra.mxu0 0.0
        %2927 = vmatprep.subr.mxu0 0.0
        %2928 = vmatpush1.xpose.msra.mxu0 0.0
        %2929 = vmatprep.subr.mxu0 0.0
        %2930 = vmatpush1.xpose.msra.mxu0 0.0
        %2931 = vmatprep.subr.mxu0 0.0
        %2932 = vmatpush1.xpose.msra.mxu0 0.0
        %2933 = vmatprep.mubr.f32.mxu0 0.0
        %v2934 = vand.u32 %v2711, 4294901760
        %v2935 = vsub.f32 %v2711, %v2934
        %2936 = vmatmul.mubr.f32.gmra.mrb[0].mxu0 %v2935
        %v2937 = vpop.f32.mrb[0].mxu0
        %v2938 = vadd.f32 %v2864, %v2937
        %v2939 = vpop.f32.mrb[0].mxu0
        %2940 = vdwg.mxu0
        %2941 = vmatprep.subr.mxu0 0.0
        %v2942 = vand.u32 %v2713, 4294901760
        %2943 = vmatpush1.xpose.msra.mxu0 %v2942
        %2944 = vmatprep.subr.mxu0 0.0
        %2945 = vmatpush1.xpose.msra.mxu0 0.0
        %2946 = vmatprep.subr.mxu0 0.0
        %2947 = vmatpush1.xpose.msra.mxu0 0.0
        %2948 = vmatprep.subr.mxu0 0.0
        %2949 = vmatpush1.xpose.msra.mxu0 0.0
        %2950 = vmatprep.subr.mxu0 0.0
        %2951 = vmatpush1.xpose.msra.mxu0 0.0
        %2952 = vmatprep.subr.mxu0 0.0
        %2953 = vmatpush1.xpose.msra.mxu0 0.0
        %2954 = vmatprep.subr.mxu0 0.0
        %2955 = vmatpush1.xpose.msra.mxu0 0.0
        %2956 = vmatprep.subr.mxu0 0.0
        %2957 = vmatpush1.xpose.msra.mxu0 0.0
        %2958 = vmatprep.subr.mxu0 0.0
        %2959 = vmatpush1.xpose.msra.mxu0 0.0
        %2960 = vmatprep.subr.mxu0 0.0
        %2961 = vmatpush1.xpose.msra.mxu0 0.0
        %2962 = vmatprep.subr.mxu0 0.0
        %2963 = vmatpush1.xpose.msra.mxu0 0.0
        %2964 = vmatprep.subr.mxu0 0.0
        %2965 = vmatpush1.xpose.msra.mxu0 0.0
        %2966 = vmatprep.subr.mxu0 0.0
        %2967 = vmatpush1.xpose.msra.mxu0 0.0
        %2968 = vmatprep.subr.mxu0 0.0
        %2969 = vmatpush1.xpose.msra.mxu0 0.0
        %2970 = vmatprep.subr.mxu0 0.0
        %2971 = vmatpush1.xpose.msra.mxu0 0.0
        %2972 = vmatprep.subr.mxu0 0.0
        %2973 = vmatpush1.xpose.msra.mxu0 0.0
        %2974 = vmatprep.subr.mxu0 0.0
        %2975 = vmatpush1.xpose.msra.mxu0 0.0
        %2976 = vmatprep.subr.mxu0 0.0
        %2977 = vmatpush1.xpose.msra.mxu0 0.0
        %2978 = vmatprep.subr.mxu0 0.0
        %2979 = vmatpush1.xpose.msra.mxu0 0.0
        %2980 = vmatprep.subr.mxu0 0.0
        %2981 = vmatpush1.xpose.msra.mxu0 0.0
        %2982 = vmatprep.subr.mxu0 0.0
        %2983 = vmatpush1.xpose.msra.mxu0 0.0
        %2984 = vmatprep.subr.mxu0 0.0
        %2985 = vmatpush1.xpose.msra.mxu0 0.0
        %2986 = vmatprep.subr.mxu0 0.0
        %2987 = vmatpush1.xpose.msra.mxu0 0.0
        %2988 = vmatprep.subr.mxu0 0.0
        %2989 = vmatpush1.xpose.msra.mxu0 0.0
        %2990 = vmatprep.subr.mxu0 0.0
        %2991 = vmatpush1.xpose.msra.mxu0 0.0
        %2992 = vmatprep.subr.mxu0 0.0
        %2993 = vmatpush1.xpose.msra.mxu0 0.0
        %2994 = vmatprep.subr.mxu0 0.0
        %2995 = vmatpush1.xpose.msra.mxu0 0.0
        %2996 = vmatprep.subr.mxu0 0.0
        %2997 = vmatpush1.xpose.msra.mxu0 0.0
        %2998 = vmatprep.subr.mxu0 0.0
        %2999 = vmatpush1.xpose.msra.mxu0 0.0
        %3000 = vmatprep.subr.mxu0 0.0
        %3001 = vmatpush1.xpose.msra.mxu0 0.0
        %3002 = vmatprep.subr.mxu0 0.0
        %3003 = vmatpush1.xpose.msra.mxu0 0.0
        %3004 = vmatprep.subr.mxu0 0.0
        %3005 = vmatpush1.xpose.msra.mxu0 0.0
        %3006 = vmatprep.mubr.f32.mxu0 0.0
        %v3007 = vand.u32 %v2711, 4294901760
        %v3008 = vsub.f32 %v2711, %v3007
        %v3009 = vand.u32 %v3008, 4294901760
        %3010 = vmatmul.mubr.f32.gmra.mrb[0].mxu0 %v3009
        %v3011 = vpop.f32.mrb[0].mxu0
        %v3012 = vadd.f32 %v2938, %v3011
        %v3013 = vpop.f32.mrb[0].mxu0
        %3014 = vdwg.mxu0
        %3015 = vmatprep.subr.mxu0 0.0
        %v3016 = vand.u32 %v2713, 4294901760
        %v3017 = vsub.f32 %v2713, %v3016
        %v3018 = vand.u32 %v3017, 4294901760
        %3019 = vmatpush1.xpose.msra.mxu0 %v3018
        %3020 = vmatprep.subr.mxu0 0.0
        %3021 = vmatpush1.xpose.msra.mxu0 0.0
        %3022 = vmatprep.subr.mxu0 0.0
        %3023 = vmatpush1.xpose.msra.mxu0 0.0
        %3024 = vmatprep.subr.mxu0 0.0
        %3025 = vmatpush1.xpose.msra.mxu0 0.0
        %3026 = vmatprep.subr.mxu0 0.0
        %3027 = vmatpush1.xpose.msra.mxu0 0.0
        %3028 = vmatprep.subr.mxu0 0.0
        %3029 = vmatpush1.xpose.msra.mxu0 0.0
        %3030 = vmatprep.subr.mxu0 0.0
        %3031 = vmatpush1.xpose.msra.mxu0 0.0
        %3032 = vmatprep.subr.mxu0 0.0
        %3033 = vmatpush1.xpose.msra.mxu0 0.0
        %3034 = vmatprep.subr.mxu0 0.0
        %3035 = vmatpush1.xpose.msra.mxu0 0.0
        %3036 = vmatprep.subr.mxu0 0.0
        %3037 = vmatpush1.xpose.msra.mxu0 0.0
        %3038 = vmatprep.subr.mxu0 0.0
        %3039 = vmatpush1.xpose.msra.mxu0 0.0
        %3040 = vmatprep.subr.mxu0 0.0
        %3041 = vmatpush1.xpose.msra.mxu0 0.0
        %3042 = vmatprep.subr.mxu0 0.0
        %3043 = vmatpush1.xpose.msra.mxu0 0.0
        %3044 = vmatprep.subr.mxu0 0.0
        %3045 = vmatpush1.xpose.msra.mxu0 0.0
        %3046 = vmatprep.subr.mxu0 0.0
        %3047 = vmatpush1.xpose.msra.mxu0 0.0
        %3048 = vmatprep.subr.mxu0 0.0
        %3049 = vmatpush1.xpose.msra.mxu0 0.0
        %3050 = vmatprep.subr.mxu0 0.0
        %3051 = vmatpush1.xpose.msra.mxu0 0.0
        %3052 = vmatprep.subr.mxu0 0.0
        %3053 = vmatpush1.xpose.msra.mxu0 0.0
        %3054 = vmatprep.subr.mxu0 0.0
        %3055 = vmatpush1.xpose.msra.mxu0 0.0
        %3056 = vmatprep.subr.mxu0 0.0
        %3057 = vmatpush1.xpose.msra.mxu0 0.0
        %3058 = vmatprep.subr.mxu0 0.0
        %3059 = vmatpush1.xpose.msra.mxu0 0.0
        %3060 = vmatprep.subr.mxu0 0.0
        %3061 = vmatpush1.xpose.msra.mxu0 0.0
        %3062 = vmatprep.subr.mxu0 0.0
        %3063 = vmatpush1.xpose.msra.mxu0 0.0
        %3064 = vmatprep.subr.mxu0 0.0
        %3065 = vmatpush1.xpose.msra.mxu0 0.0
        %3066 = vmatprep.subr.mxu0 0.0
        %3067 = vmatpush1.xpose.msra.mxu0 0.0
        %3068 = vmatprep.subr.mxu0 0.0
        %3069 = vmatpush1.xpose.msra.mxu0 0.0
        %3070 = vmatprep.subr.mxu0 0.0
        %3071 = vmatpush1.xpose.msra.mxu0 0.0
        %3072 = vmatprep.subr.mxu0 0.0
        %3073 = vmatpush1.xpose.msra.mxu0 0.0
        %3074 = vmatprep.subr.mxu0 0.0
        %3075 = vmatpush1.xpose.msra.mxu0 0.0
        %3076 = vmatprep.subr.mxu0 0.0
        %3077 = vmatpush1.xpose.msra.mxu0 0.0
        %3078 = vmatprep.subr.mxu0 0.0
        %3079 = vmatpush1.xpose.msra.mxu0 0.0
        %3080 = vmatprep.subr.mxu0 0.0
        %3081 = vmatpush1.xpose.msra.mxu0 0.0
        %3082 = vmatprep.mubr.f32.mxu0 0.0
        %v3083 = vand.u32 %v2711, 4294901760
        %3084 = vmatmul.mubr.f32.gmra.mrb[0].mxu0 %v3083
        %v3085 = vpop.f32.mrb[0].mxu0
        %v3086 = vadd.f32 %v3012, %v3085
        %v3087 = vpop.f32.mrb[0].mxu0
        %3088 = vdwg.mxu0
        %3089 = vmatprep.subr.mxu0 0.0
        %v3090 = vand.u32 %v2713, 4294901760
        %3091 = vmatpush1.xpose.msra.mxu0 %v3090
        %3092 = vmatprep.subr.mxu0 0.0
        %3093 = vmatpush1.xpose.msra.mxu0 0.0
        %3094 = vmatprep.subr.mxu0 0.0
        %3095 = vmatpush1.xpose.msra.mxu0 0.0
        %3096 = vmatprep.subr.mxu0 0.0
        %3097 = vmatpush1.xpose.msra.mxu0 0.0
        %3098 = vmatprep.subr.mxu0 0.0
        %3099 = vmatpush1.xpose.msra.mxu0 0.0
        %3100 = vmatprep.subr.mxu0 0.0
        %3101 = vmatpush1.xpose.msra.mxu0 0.0
        %3102 = vmatprep.subr.mxu0 0.0
        %3103 = vmatpush1.xpose.msra.mxu0 0.0
        %3104 = vmatprep.subr.mxu0 0.0
        %3105 = vmatpush1.xpose.msra.mxu0 0.0
        %3106 = vmatprep.subr.mxu0 0.0
        %3107 = vmatpush1.xpose.msra.mxu0 0.0
        %3108 = vmatprep.subr.mxu0 0.0
        %3109 = vmatpush1.xpose.msra.mxu0 0.0
        %3110 = vmatprep.subr.mxu0 0.0
        %3111 = vmatpush1.xpose.msra.mxu0 0.0
        %3112 = vmatprep.subr.mxu0 0.0
        %3113 = vmatpush1.xpose.msra.mxu0 0.0
        %3114 = vmatprep.subr.mxu0 0.0
        %3115 = vmatpush1.xpose.msra.mxu0 0.0
        %3116 = vmatprep.subr.mxu0 0.0
        %3117 = vmatpush1.xpose.msra.mxu0 0.0
        %3118 = vmatprep.subr.mxu0 0.0
        %3119 = vmatpush1.xpose.msra.mxu0 0.0
        %3120 = vmatprep.subr.mxu0 0.0
        %3121 = vmatpush1.xpose.msra.mxu0 0.0
        %3122 = vmatprep.subr.mxu0 0.0
        %3123 = vmatpush1.xpose.msra.mxu0 0.0
        %3124 = vmatprep.subr.mxu0 0.0
        %3125 = vmatpush1.xpose.msra.mxu0 0.0
        %3126 = vmatprep.subr.mxu0 0.0
        %3127 = vmatpush1.xpose.msra.mxu0 0.0
        %3128 = vmatprep.subr.mxu0 0.0
        %3129 = vmatpush1.xpose.msra.mxu0 0.0
        %3130 = vmatprep.subr.mxu0 0.0
        %3131 = vmatpush1.xpose.msra.mxu0 0.0
        %3132 = vmatprep.subr.mxu0 0.0
        %3133 = vmatpush1.xpose.msra.mxu0 0.0
        %3134 = vmatprep.subr.mxu0 0.0
        %3135 = vmatpush1.xpose.msra.mxu0 0.0
        %3136 = vmatprep.subr.mxu0 0.0
        %3137 = vmatpush1.xpose.msra.mxu0 0.0
        %3138 = vmatprep.subr.mxu0 0.0
        %3139 = vmatpush1.xpose.msra.mxu0 0.0
        %3140 = vmatprep.subr.mxu0 0.0
        %3141 = vmatpush1.xpose.msra.mxu0 0.0
        %3142 = vmatprep.subr.mxu0 0.0
        %3143 = vmatpush1.xpose.msra.mxu0 0.0
        %3144 = vmatprep.subr.mxu0 0.0
        %3145 = vmatpush1.xpose.msra.mxu0 0.0
        %3146 = vmatprep.subr.mxu0 0.0
        %3147 = vmatpush1.xpose.msra.mxu0 0.0
        %3148 = vmatprep.subr.mxu0 0.0
        %3149 = vmatpush1.xpose.msra.mxu0 0.0
        %3150 = vmatprep.subr.mxu0 0.0
        %3151 = vmatpush1.xpose.msra.mxu0 0.0
        %3152 = vmatprep.subr.mxu0 0.0
        %3153 = vmatpush1.xpose.msra.mxu0 0.0
        %3154 = vmatprep.mubr.f32.mxu0 0.0
        %v3155 = vand.u32 %v2711, 4294901760
        %3156 = vmatmul.mubr.f32.gmra.mrb[0].mxu0 %v3155
        %v3157 = vpop.f32.mrb[0].mxu0
        %v3158 = vadd.f32 %v3086, %v3157
        %v3159 = vpop.f32.mrb[0].mxu0
        %3160 = vdwg.mxu0
        %v3161 = vsel %vm1791, %v3158, -inf
        %v3162 = vsel %vm2246, %v3161, -inf
        %3163 = vmax.xlane.f32.xlu0 %v3162
        %v3164 = vpop.xlane.xlu0 %3163
        %v3165 = vsub.f32 %v3161, %v3164
        %v3166 = vmul.f32 %v3165, 1.442695
        %v3167 = vpow.pop %v3166
        %v3168 = vsel %vm2246, %v3167, 0.0
        %3169 = vadd.xlane.f32.xlu0 %v3168
        %v3170 = vpop.xlane.xlu0 %3169
        %v3171 = vrcp.pop %v3170
        %v3172 = vmul.f32 %v3167, %v3171
        %3174 = vrot.lane.b32.xlu0 %v1784, 96
        %v3175 = vpop.permute.xlu0 %3174
        %v3178 = vsel %vm2246, %v3172, 0
        %3180 = vmatprep.subr.mxu0 0.0
        %v3181 = vand.u32 %v3175, 4294901760
        %3182 = vmatpush1.msra.mxu0 %v3181
        %3183 = vmatprep.subr.mxu0 0.0
        %3184 = vmatpush1.msra.mxu0 0.0
        %3185 = vmatprep.subr.mxu0 0.0
        %3186 = vmatpush1.msra.mxu0 0.0
        %3187 = vmatprep.subr.mxu0 0.0
        %3188 = vmatpush1.msra.mxu0 0.0
        %3189 = vmatprep.subr.mxu0 0.0
        %3190 = vmatpush1.msra.mxu0 0.0
        %3191 = vmatprep.subr.mxu0 0.0
        %3192 = vmatpush1.msra.mxu0 0.0
        %3193 = vmatprep.subr.mxu0 0.0
        %3194 = vmatpush1.msra.mxu0 0.0
        %3195 = vmatprep.subr.mxu0 0.0
        %3196 = vmatpush1.msra.mxu0 0.0
        %3197 = vmatprep.subr.mxu0 0.0
        %3198 = vmatpush1.msra.mxu0 0.0
        %3199 = vmatprep.subr.mxu0 0.0
        %3200 = vmatpush1.msra.mxu0 0.0
        %3201 = vmatprep.subr.mxu0 0.0
        %3202 = vmatpush1.msra.mxu0 0.0
        %3203 = vmatprep.subr.mxu0 0.0
        %3204 = vmatpush1.msra.mxu0 0.0
        %3205 = vmatprep.subr.mxu0 0.0
        %3206 = vmatpush1.msra.mxu0 0.0
        %3207 = vmatprep.subr.mxu0 0.0
        %3208 = vmatpush1.msra.mxu0 0.0
        %3209 = vmatprep.subr.mxu0 0.0
        %3210 = vmatpush1.msra.mxu0 0.0
        %3211 = vmatprep.subr.mxu0 0.0
        %3212 = vmatpush1.msra.mxu0 0.0
        %3213 = vmatprep.subr.mxu0 0.0
        %3214 = vmatpush1.msra.mxu0 0.0
        %3215 = vmatprep.subr.mxu0 0.0
        %3216 = vmatpush1.msra.mxu0 0.0
        %3217 = vmatprep.subr.mxu0 0.0
        %3218 = vmatpush1.msra.mxu0 0.0
        %3219 = vmatprep.subr.mxu0 0.0
        %3220 = vmatpush1.msra.mxu0 0.0
        %3221 = vmatprep.subr.mxu0 0.0
        %3222 = vmatpush1.msra.mxu0 0.0
        %3223 = vmatprep.subr.mxu0 0.0
        %3224 = vmatpush1.msra.mxu0 0.0
        %3225 = vmatprep.subr.mxu0 0.0
        %3226 = vmatpush1.msra.mxu0 0.0
        %3227 = vmatprep.subr.mxu0 0.0
        %3228 = vmatpush1.msra.mxu0 0.0
        %3229 = vmatprep.subr.mxu0 0.0
        %3230 = vmatpush1.msra.mxu0 0.0
        %3231 = vmatprep.subr.mxu0 0.0
        %3232 = vmatpush1.msra.mxu0 0.0
        %3233 = vmatprep.subr.mxu0 0.0
        %3234 = vmatpush1.msra.mxu0 0.0
        %3235 = vmatprep.subr.mxu0 0.0
        %3236 = vmatpush1.msra.mxu0 0.0
        %3237 = vmatprep.subr.mxu0 0.0
        %3238 = vmatpush1.msra.mxu0 0.0
        %3239 = vmatprep.subr.mxu0 0.0
        %3240 = vmatpush1.msra.mxu0 0.0
        %3241 = vmatprep.subr.mxu0 0.0
        %3242 = vmatpush1.msra.mxu0 0.0
        %3243 = vmatprep.subr.mxu0 0.0
        %3244 = vmatpush1.msra.mxu0 0.0
        %3245 = vmatprep.mubr.f32.mxu0 0.0
        %v3246 = vand.u32 %v3178, 4294901760
        %v3247 = vsub.f32 %v3178, %v3246
        %v3248 = vand.u32 %v3247, 4294901760
        %v3249 = vsub.f32 %v3247, %v3248
        %v3250 = vand.u32 %v3249, 4294901760
        %3251 = vmatmul.mubr.f32.gmra.mrb[0].mxu0 %v3250
        %v3252 = vpop.f32.mrb[0].mxu0
        %v3253 = vadd.f32 0.0, %v3252
        %v3254 = vpop.f32.mrb[0].mxu0
        %3255 = vdwg.mxu0
        %3256 = vmatprep.subr.mxu0 0.0
        %v3257 = vand.u32 %v3175, 4294901760
        %v3258 = vsub.f32 %v3175, %v3257
        %v3259 = vand.u32 %v3258, 4294901760
        %v3260 = vsub.f32 %v3258, %v3259
        %v3261 = vand.u32 %v3260, 4294901760
        %3262 = vmatpush1.msra.mxu0 %v3261
        %3263 = vmatprep.subr.mxu0 0.0
        %3264 = vmatpush1.msra.mxu0 0.0
        %3265 = vmatprep.subr.mxu0 0.0
        %3266 = vmatpush1.msra.mxu0 0.0
        %3267 = vmatprep.subr.mxu0 0.0
        %3268 = vmatpush1.msra.mxu0 0.0
        %3269 = vmatprep.subr.mxu0 0.0
        %3270 = vmatpush1.msra.mxu0 0.0
        %3271 = vmatprep.subr.mxu0 0.0
        %3272 = vmatpush1.msra.mxu0 0.0
        %3273 = vmatprep.subr.mxu0 0.0
        %3274 = vmatpush1.msra.mxu0 0.0
        %3275 = vmatprep.subr.mxu0 0.0
        %3276 = vmatpush1.msra.mxu0 0.0
        %3277 = vmatprep.subr.mxu0 0.0
        %3278 = vmatpush1.msra.mxu0 0.0
        %3279 = vmatprep.subr.mxu0 0.0
        %3280 = vmatpush1.msra.mxu0 0.0
        %3281 = vmatprep.subr.mxu0 0.0
        %3282 = vmatpush1.msra.mxu0 0.0
        %3283 = vmatprep.subr.mxu0 0.0
        %3284 = vmatpush1.msra.mxu0 0.0
        %3285 = vmatprep.subr.mxu0 0.0
        %3286 = vmatpush1.msra.mxu0 0.0
        %3287 = vmatprep.subr.mxu0 0.0
        %3288 = vmatpush1.msra.mxu0 0.0
        %3289 = vmatprep.subr.mxu0 0.0
        %3290 = vmatpush1.msra.mxu0 0.0
        %3291 = vmatprep.subr.mxu0 0.0
        %3292 = vmatpush1.msra.mxu0 0.0
        %3293 = vmatprep.subr.mxu0 0.0
        %3294 = vmatpush1.msra.mxu0 0.0
        %3295 = vmatprep.subr.mxu0 0.0
        %3296 = vmatpush1.msra.mxu0 0.0
        %3297 = vmatprep.subr.mxu0 0.0
        %3298 = vmatpush1.msra.mxu0 0.0
        %3299 = vmatprep.subr.mxu0 0.0
        %3300 = vmatpush1.msra.mxu0 0.0
        %3301 = vmatprep.subr.mxu0 0.0
        %3302 = vmatpush1.msra.mxu0 0.0
        %3303 = vmatprep.subr.mxu0 0.0
        %3304 = vmatpush1.msra.mxu0 0.0
        %3305 = vmatprep.subr.mxu0 0.0
        %3306 = vmatpush1.msra.mxu0 0.0
        %3307 = vmatprep.subr.mxu0 0.0
        %3308 = vmatpush1.msra.mxu0 0.0
        %3309 = vmatprep.subr.mxu0 0.0
        %3310 = vmatpush1.msra.mxu0 0.0
        %3311 = vmatprep.subr.mxu0 0.0
        %3312 = vmatpush1.msra.mxu0 0.0
        %3313 = vmatprep.subr.mxu0 0.0
        %3314 = vmatpush1.msra.mxu0 0.0
        %3315 = vmatprep.subr.mxu0 0.0
        %3316 = vmatpush1.msra.mxu0 0.0
        %3317 = vmatprep.subr.mxu0 0.0
        %3318 = vmatpush1.msra.mxu0 0.0
        %3319 = vmatprep.subr.mxu0 0.0
        %3320 = vmatpush1.msra.mxu0 0.0
        %3321 = vmatprep.subr.mxu0 0.0
        %3322 = vmatpush1.msra.mxu0 0.0
        %3323 = vmatprep.subr.mxu0 0.0
        %3324 = vmatpush1.msra.mxu0 0.0
        %3325 = vmatprep.mubr.f32.mxu0 0.0
        %v3326 = vand.u32 %v3178, 4294901760
        %3327 = vmatmul.mubr.f32.gmra.mrb[0].mxu0 %v3326
        %v3328 = vpop.f32.mrb[0].mxu0
        %v3329 = vadd.f32 %v3253, %v3328
        %v3330 = vpop.f32.mrb[0].mxu0
        %3331 = vdwg.mxu0
        %3332 = vmatprep.subr.mxu0 0.0
        %v3333 = vand.u32 %v3175, 4294901760
        %v3334 = vsub.f32 %v3175, %v3333
        %3335 = vmatpush1.msra.mxu0 %v3334
        %3336 = vmatprep.subr.mxu0 0.0
        %3337 = vmatpush1.msra.mxu0 0.0
        %3338 = vmatprep.subr.mxu0 0.0
        %3339 = vmatpush1.msra.mxu0 0.0
        %3340 = vmatprep.subr.mxu0 0.0
        %3341 = vmatpush1.msra.mxu0 0.0
        %3342 = vmatprep.subr.mxu0 0.0
        %3343 = vmatpush1.msra.mxu0 0.0
        %3344 = vmatprep.subr.mxu0 0.0
        %3345 = vmatpush1.msra.mxu0 0.0
        %3346 = vmatprep.subr.mxu0 0.0
        %3347 = vmatpush1.msra.mxu0 0.0
        %3348 = vmatprep.subr.mxu0 0.0
        %3349 = vmatpush1.msra.mxu0 0.0
        %3350 = vmatprep.subr.mxu0 0.0
        %3351 = vmatpush1.msra.mxu0 0.0
        %3352 = vmatprep.subr.mxu0 0.0
        %3353 = vmatpush1.msra.mxu0 0.0
        %3354 = vmatprep.subr.mxu0 0.0
        %3355 = vmatpush1.msra.mxu0 0.0
        %3356 = vmatprep.subr.mxu0 0.0
        %3357 = vmatpush1.msra.mxu0 0.0
        %3358 = vmatprep.subr.mxu0 0.0
        %3359 = vmatpush1.msra.mxu0 0.0
        %3360 = vmatprep.subr.mxu0 0.0
        %3361 = vmatpush1.msra.mxu0 0.0
        %3362 = vmatprep.subr.mxu0 0.0
        %3363 = vmatpush1.msra.mxu0 0.0
        %3364 = vmatprep.subr.mxu0 0.0
        %3365 = vmatpush1.msra.mxu0 0.0
        %3366 = vmatprep.subr.mxu0 0.0
        %3367 = vmatpush1.msra.mxu0 0.0
        %3368 = vmatprep.subr.mxu0 0.0
        %3369 = vmatpush1.msra.mxu0 0.0
        %3370 = vmatprep.subr.mxu0 0.0
        %3371 = vmatpush1.msra.mxu0 0.0
        %3372 = vmatprep.subr.mxu0 0.0
        %3373 = vmatpush1.msra.mxu0 0.0
        %3374 = vmatprep.subr.mxu0 0.0
        %3375 = vmatpush1.msra.mxu0 0.0
        %3376 = vmatprep.subr.mxu0 0.0
        %3377 = vmatpush1.msra.mxu0 0.0
        %3378 = vmatprep.subr.mxu0 0.0
        %3379 = vmatpush1.msra.mxu0 0.0
        %3380 = vmatprep.subr.mxu0 0.0
        %3381 = vmatpush1.msra.mxu0 0.0
        %3382 = vmatprep.subr.mxu0 0.0
        %3383 = vmatpush1.msra.mxu0 0.0
        %3384 = vmatprep.subr.mxu0 0.0
        %3385 = vmatpush1.msra.mxu0 0.0
        %3386 = vmatprep.subr.mxu0 0.0
        %3387 = vmatpush1.msra.mxu0 0.0
        %3388 = vmatprep.subr.mxu0 0.0
        %3389 = vmatpush1.msra.mxu0 0.0
        %3390 = vmatprep.subr.mxu0 0.0
        %3391 = vmatpush1.msra.mxu0 0.0
        %3392 = vmatprep.subr.mxu0 0.0
        %3393 = vmatpush1.msra.mxu0 0.0
        %3394 = vmatprep.subr.mxu0 0.0
        %3395 = vmatpush1.msra.mxu0 0.0
        %3396 = vmatprep.subr.mxu0 0.0
        %3397 = vmatpush1.msra.mxu0 0.0
        %3398 = vmatprep.mubr.f32.mxu0 0.0
        %v3399 = vand.u32 %v3178, 4294901760
        %v3400 = vsub.f32 %v3178, %v3399
        %3401 = vmatmul.mubr.f32.gmra.mrb[0].mxu0 %v3400
        %v3402 = vpop.f32.mrb[0].mxu0
        %v3403 = vadd.f32 %v3329, %v3402
        %v3404 = vpop.f32.mrb[0].mxu0
        %3405 = vdwg.mxu0
        %3406 = vmatprep.subr.mxu0 0.0
        %v3407 = vand.u32 %v3175, 4294901760
        %3408 = vmatpush1.msra.mxu0 %v3407
        %3409 = vmatprep.subr.mxu0 0.0
        %3410 = vmatpush1.msra.mxu0 0.0
        %3411 = vmatprep.subr.mxu0 0.0
        %3412 = vmatpush1.msra.mxu0 0.0
        %3413 = vmatprep.subr.mxu0 0.0
        %3414 = vmatpush1.msra.mxu0 0.0
        %3415 = vmatprep.subr.mxu0 0.0
        %3416 = vmatpush1.msra.mxu0 0.0
        %3417 = vmatprep.subr.mxu0 0.0
        %3418 = vmatpush1.msra.mxu0 0.0
        %3419 = vmatprep.subr.mxu0 0.0
        %3420 = vmatpush1.msra.mxu0 0.0
        %3421 = vmatprep.subr.mxu0 0.0
        %3422 = vmatpush1.msra.mxu0 0.0
        %3423 = vmatprep.subr.mxu0 0.0
        %3424 = vmatpush1.msra.mxu0 0.0
        %3425 = vmatprep.subr.mxu0 0.0
        %3426 = vmatpush1.msra.mxu0 0.0
        %3427 = vmatprep.subr.mxu0 0.0
        %3428 = vmatpush1.msra.mxu0 0.0
        %3429 = vmatprep.subr.mxu0 0.0
        %3430 = vmatpush1.msra.mxu0 0.0
        %3431 = vmatprep.subr.mxu0 0.0
        %3432 = vmatpush1.msra.mxu0 0.0
        %3433 = vmatprep.subr.mxu0 0.0
        %3434 = vmatpush1.msra.mxu0 0.0
        %3435 = vmatprep.subr.mxu0 0.0
        %3436 = vmatpush1.msra.mxu0 0.0
        %3437 = vmatprep.subr.mxu0 0.0
        %3438 = vmatpush1.msra.mxu0 0.0
        %3439 = vmatprep.subr.mxu0 0.0
        %3440 = vmatpush1.msra.mxu0 0.0
        %3441 = vmatprep.subr.mxu0 0.0
        %3442 = vmatpush1.msra.mxu0 0.0
        %3443 = vmatprep.subr.mxu0 0.0
        %3444 = vmatpush1.msra.mxu0 0.0
        %3445 = vmatprep.subr.mxu0 0.0
        %3446 = vmatpush1.msra.mxu0 0.0
        %3447 = vmatprep.subr.mxu0 0.0
        %3448 = vmatpush1.msra.mxu0 0.0
        %3449 = vmatprep.subr.mxu0 0.0
        %3450 = vmatpush1.msra.mxu0 0.0
        %3451 = vmatprep.subr.mxu0 0.0
        %3452 = vmatpush1.msra.mxu0 0.0
        %3453 = vmatprep.subr.mxu0 0.0
        %3454 = vmatpush1.msra.mxu0 0.0
        %3455 = vmatprep.subr.mxu0 0.0
        %3456 = vmatpush1.msra.mxu0 0.0
        %3457 = vmatprep.subr.mxu0 0.0
        %3458 = vmatpush1.msra.mxu0 0.0
        %3459 = vmatprep.subr.mxu0 0.0
        %3460 = vmatpush1.msra.mxu0 0.0
        %3461 = vmatprep.subr.mxu0 0.0
        %3462 = vmatpush1.msra.mxu0 0.0
        %3463 = vmatprep.subr.mxu0 0.0
        %3464 = vmatpush1.msra.mxu0 0.0
        %3465 = vmatprep.subr.mxu0 0.0
        %3466 = vmatpush1.msra.mxu0 0.0
        %3467 = vmatprep.subr.mxu0 0.0
        %3468 = vmatpush1.msra.mxu0 0.0
        %3469 = vmatprep.subr.mxu0 0.0
        %3470 = vmatpush1.msra.mxu0 0.0
        %3471 = vmatprep.mubr.f32.mxu0 0.0
        %v3472 = vand.u32 %v3178, 4294901760
        %v3473 = vsub.f32 %v3178, %v3472
        %v3474 = vand.u32 %v3473, 4294901760
        %3475 = vmatmul.mubr.f32.gmra.mrb[0].mxu0 %v3474
        %v3476 = vpop.f32.mrb[0].mxu0
        %v3477 = vadd.f32 %v3403, %v3476
        %v3478 = vpop.f32.mrb[0].mxu0
        %3479 = vdwg.mxu0
        %3480 = vmatprep.subr.mxu0 0.0
        %v3481 = vand.u32 %v3175, 4294901760
        %v3482 = vsub.f32 %v3175, %v3481
        %v3483 = vand.u32 %v3482, 4294901760
        %3484 = vmatpush1.msra.mxu0 %v3483
        %3485 = vmatprep.subr.mxu0 0.0
        %3486 = vmatpush1.msra.mxu0 0.0
        %3487 = vmatprep.subr.mxu0 0.0
        %3488 = vmatpush1.msra.mxu0 0.0
        %3489 = vmatprep.subr.mxu0 0.0
        %3490 = vmatpush1.msra.mxu0 0.0
        %3491 = vmatprep.subr.mxu0 0.0
        %3492 = vmatpush1.msra.mxu0 0.0
        %3493 = vmatprep.subr.mxu0 0.0
        %3494 = vmatpush1.msra.mxu0 0.0
        %3495 = vmatprep.subr.mxu0 0.0
        %3496 = vmatpush1.msra.mxu0 0.0
        %3497 = vmatprep.subr.mxu0 0.0
        %3498 = vmatpush1.msra.mxu0 0.0
        %3499 = vmatprep.subr.mxu0 0.0
        %3500 = vmatpush1.msra.mxu0 0.0
        %3501 = vmatprep.subr.mxu0 0.0
        %3502 = vmatpush1.msra.mxu0 0.0
        %3503 = vmatprep.subr.mxu0 0.0
        %3504 = vmatpush1.msra.mxu0 0.0
        %3505 = vmatprep.subr.mxu0 0.0
        %3506 = vmatpush1.msra.mxu0 0.0
        %3507 = vmatprep.subr.mxu0 0.0
        %3508 = vmatpush1.msra.mxu0 0.0
        %3509 = vmatprep.subr.mxu0 0.0
        %3510 = vmatpush1.msra.mxu0 0.0
        %3511 = vmatprep.subr.mxu0 0.0
        %3512 = vmatpush1.msra.mxu0 0.0
        %3513 = vmatprep.subr.mxu0 0.0
        %3514 = vmatpush1.msra.mxu0 0.0
        %3515 = vmatprep.subr.mxu0 0.0
        %3516 = vmatpush1.msra.mxu0 0.0
        %3517 = vmatprep.subr.mxu0 0.0
        %3518 = vmatpush1.msra.mxu0 0.0
        %3519 = vmatprep.subr.mxu0 0.0
        %3520 = vmatpush1.msra.mxu0 0.0
        %3521 = vmatprep.subr.mxu0 0.0
        %3522 = vmatpush1.msra.mxu0 0.0
        %3523 = vmatprep.subr.mxu0 0.0
        %3524 = vmatpush1.msra.mxu0 0.0
        %3525 = vmatprep.subr.mxu0 0.0
        %3526 = vmatpush1.msra.mxu0 0.0
        %3527 = vmatprep.subr.mxu0 0.0
        %3528 = vmatpush1.msra.mxu0 0.0
        %3529 = vmatprep.subr.mxu0 0.0
        %3530 = vmatpush1.msra.mxu0 0.0
        %3531 = vmatprep.subr.mxu0 0.0
        %3532 = vmatpush1.msra.mxu0 0.0
        %3533 = vmatprep.subr.mxu0 0.0
        %3534 = vmatpush1.msra.mxu0 0.0
        %3535 = vmatprep.subr.mxu0 0.0
        %3536 = vmatpush1.msra.mxu0 0.0
        %3537 = vmatprep.subr.mxu0 0.0
        %3538 = vmatpush1.msra.mxu0 0.0
        %3539 = vmatprep.subr.mxu0 0.0
        %3540 = vmatpush1.msra.mxu0 0.0
        %3541 = vmatprep.subr.mxu0 0.0
        %3542 = vmatpush1.msra.mxu0 0.0
        %3543 = vmatprep.subr.mxu0 0.0
        %3544 = vmatpush1.msra.mxu0 0.0
        %3545 = vmatprep.subr.mxu0 0.0
        %3546 = vmatpush1.msra.mxu0 0.0
        %3547 = vmatprep.mubr.f32.mxu0 0.0
        %v3548 = vand.u32 %v3178, 4294901760
        %3549 = vmatmul.mubr.f32.gmra.mrb[0].mxu0 %v3548
        %v3550 = vpop.f32.mrb[0].mxu0
        %v3551 = vadd.f32 %v3477, %v3550
        %v3552 = vpop.f32.mrb[0].mxu0
        %3553 = vdwg.mxu0
        %3554 = vmatprep.subr.mxu0 0.0
        %v3555 = vand.u32 %v3175, 4294901760
        %3556 = vmatpush1.msra.mxu0 %v3555
        %3557 = vmatprep.subr.mxu0 0.0
        %3558 = vmatpush1.msra.mxu0 0.0
        %3559 = vmatprep.subr.mxu0 0.0
        %3560 = vmatpush1.msra.mxu0 0.0
        %3561 = vmatprep.subr.mxu0 0.0
        %3562 = vmatpush1.msra.mxu0 0.0
        %3563 = vmatprep.subr.mxu0 0.0
        %3564 = vmatpush1.msra.mxu0 0.0
        %3565 = vmatprep.subr.mxu0 0.0
        %3566 = vmatpush1.msra.mxu0 0.0
        %3567 = vmatprep.subr.mxu0 0.0
        %3568 = vmatpush1.msra.mxu0 0.0
        %3569 = vmatprep.subr.mxu0 0.0
        %3570 = vmatpush1.msra.mxu0 0.0
        %3571 = vmatprep.subr.mxu0 0.0
        %3572 = vmatpush1.msra.mxu0 0.0
        %3573 = vmatprep.subr.mxu0 0.0
        %3574 = vmatpush1.msra.mxu0 0.0
        %3575 = vmatprep.subr.mxu0 0.0
        %3576 = vmatpush1.msra.mxu0 0.0
        %3577 = vmatprep.subr.mxu0 0.0
        %3578 = vmatpush1.msra.mxu0 0.0
        %3579 = vmatprep.subr.mxu0 0.0
        %3580 = vmatpush1.msra.mxu0 0.0
        %3581 = vmatprep.subr.mxu0 0.0
        %3582 = vmatpush1.msra.mxu0 0.0
        %3583 = vmatprep.subr.mxu0 0.0
        %3584 = vmatpush1.msra.mxu0 0.0
        %3585 = vmatprep.subr.mxu0 0.0
        %3586 = vmatpush1.msra.mxu0 0.0
        %3587 = vmatprep.subr.mxu0 0.0
        %3588 = vmatpush1.msra.mxu0 0.0
        %3589 = vmatprep.subr.mxu0 0.0
        %3590 = vmatpush1.msra.mxu0 0.0
        %3591 = vmatprep.subr.mxu0 0.0
        %3592 = vmatpush1.msra.mxu0 0.0
        %3593 = vmatprep.subr.mxu0 0.0
        %3594 = vmatpush1.msra.mxu0 0.0
        %3595 = vmatprep.subr.mxu0 0.0
        %3596 = vmatpush1.msra.mxu0 0.0
        %3597 = vmatprep.subr.mxu0 0.0
        %3598 = vmatpush1.msra.mxu0 0.0
        %3599 = vmatprep.subr.mxu0 0.0
        %3600 = vmatpush1.msra.mxu0 0.0
        %3601 = vmatprep.subr.mxu0 0.0
        %3602 = vmatpush1.msra.mxu0 0.0
        %3603 = vmatprep.subr.mxu0 0.0
        %3604 = vmatpush1.msra.mxu0 0.0
        %3605 = vmatprep.subr.mxu0 0.0
        %3606 = vmatpush1.msra.mxu0 0.0
        %3607 = vmatprep.subr.mxu0 0.0
        %3608 = vmatpush1.msra.mxu0 0.0
        %3609 = vmatprep.subr.mxu0 0.0
        %3610 = vmatpush1.msra.mxu0 0.0
        %3611 = vmatprep.subr.mxu0 0.0
        %3612 = vmatpush1.msra.mxu0 0.0
        %3613 = vmatprep.subr.mxu0 0.0
        %3614 = vmatpush1.msra.mxu0 0.0
        %3615 = vmatprep.subr.mxu0 0.0
        %3616 = vmatpush1.msra.mxu0 0.0
        %3617 = vmatprep.subr.mxu0 0.0
        %3618 = vmatpush1.msra.mxu0 0.0
        %3619 = vmatprep.mubr.f32.mxu0 0.0
        %v3620 = vand.u32 %v3178, 4294901760
        %3621 = vmatmul.mubr.f32.gmra.mrb[0].mxu0 %v3620
        %v3622 = vpop.f32.mrb[0].mxu0
        %v3623 = vadd.f32 %v3551, %v3622
        %v3624 = vpop.f32.mrb[0].mxu0
        %3625 = vdwg.mxu0
        %3626 = vrot.lane.b32.xlu0 %v1142, 64
        %v3627 = vpop.permute.xlu0 %3626
        %3628 = vrot.lane.b32.xlu0 %v1144, 64
        %v3629 = vpop.permute.xlu0 %3628
        %v3630 = vsel %vm1792, %v3627, 0
        %v3632 = vsel %vm1792, %v3629, 0
        %3634 = vmatprep.subr.mxu0 0.0
        %v3635 = vand.u32 %v3632, 4294901760
        %3636 = vmatpush1.xpose.msra.mxu0 %v3635
        %3637 = vmatprep.subr.mxu0 0.0
        %3638 = vmatpush1.xpose.msra.mxu0 0.0
        %3639 = vmatprep.subr.mxu0 0.0
        %3640 = vmatpush1.xpose.msra.mxu0 0.0
        %3641 = vmatprep.subr.mxu0 0.0
        %3642 = vmatpush1.xpose.msra.mxu0 0.0
        %3643 = vmatprep.subr.mxu0 0.0
        %3644 = vmatpush1.xpose.msra.mxu0 0.0
        %3645 = vmatprep.subr.mxu0 0.0
        %3646 = vmatpush1.xpose.msra.mxu0 0.0
        %3647 = vmatprep.subr.mxu0 0.0
        %3648 = vmatpush1.xpose.msra.mxu0 0.0
        %3649 = vmatprep.subr.mxu0 0.0
        %3650 = vmatpush1.xpose.msra.mxu0 0.0
        %3651 = vmatprep.subr.mxu0 0.0
        %3652 = vmatpush1.xpose.msra.mxu0 0.0
        %3653 = vmatprep.subr.mxu0 0.0
        %3654 = vmatpush1.xpose.msra.mxu0 0.0
        %3655 = vmatprep.subr.mxu0 0.0
        %3656 = vmatpush1.xpose.msra.mxu0 0.0
        %3657 = vmatprep.subr.mxu0 0.0
        %3658 = vmatpush1.xpose.msra.mxu0 0.0
        %3659 = vmatprep.subr.mxu0 0.0
        %3660 = vmatpush1.xpose.msra.mxu0 0.0
        %3661 = vmatprep.subr.mxu0 0.0
        %3662 = vmatpush1.xpose.msra.mxu0 0.0
        %3663 = vmatprep.subr.mxu0 0.0
        %3664 = vmatpush1.xpose.msra.mxu0 0.0
        %3665 = vmatprep.subr.mxu0 0.0
        %3666 = vmatpush1.xpose.msra.mxu0 0.0
        %3667 = vmatprep.subr.mxu0 0.0
        %3668 = vmatpush1.xpose.msra.mxu0 0.0
        %3669 = vmatprep.subr.mxu0 0.0
        %3670 = vmatpush1.xpose.msra.mxu0 0.0
        %3671 = vmatprep.subr.mxu0 0.0
        %3672 = vmatpush1.xpose.msra.mxu0 0.0
        %3673 = vmatprep.subr.mxu0 0.0
        %3674 = vmatpush1.xpose.msra.mxu0 0.0
        %3675 = vmatprep.subr.mxu0 0.0
        %3676 = vmatpush1.xpose.msra.mxu0 0.0
        %3677 = vmatprep.subr.mxu0 0.0
        %3678 = vmatpush1.xpose.msra.mxu0 0.0
        %3679 = vmatprep.subr.mxu0 0.0
        %3680 = vmatpush1.xpose.msra.mxu0 0.0
        %3681 = vmatprep.subr.mxu0 0.0
        %3682 = vmatpush1.xpose.msra.mxu0 0.0
        %3683 = vmatprep.subr.mxu0 0.0
        %3684 = vmatpush1.xpose.msra.mxu0 0.0
        %3685 = vmatprep.subr.mxu0 0.0
        %3686 = vmatpush1.xpose.msra.mxu0 0.0
        %3687 = vmatprep.subr.mxu0 0.0
        %3688 = vmatpush1.xpose.msra.mxu0 0.0
        %3689 = vmatprep.subr.mxu0 0.0
        %3690 = vmatpush1.xpose.msra.mxu0 0.0
        %3691 = vmatprep.subr.mxu0 0.0
        %3692 = vmatpush1.xpose.msra.mxu0 0.0
        %3693 = vmatprep.subr.mxu0 0.0
        %3694 = vmatpush1.xpose.msra.mxu0 0.0
        %3695 = vmatprep.subr.mxu0 0.0
        %3696 = vmatpush1.xpose.msra.mxu0 0.0
        %3697 = vmatprep.subr.mxu0 0.0
        %3698 = vmatpush1.xpose.msra.mxu0 0.0
        %3699 = vmatprep.mubr.f32.mxu0 0.0
        %v3700 = vand.u32 %v3630, 4294901760
        %v3701 = vsub.f32 %v3630, %v3700
        %v3702 = vand.u32 %v3701, 4294901760
        %v3703 = vsub.f32 %v3701, %v3702
        %v3704 = vand.u32 %v3703, 4294901760
        %3705 = vmatmul.mubr.f32.gmra.mrb[0].mxu0 %v3704
        %v3706 = vpop.f32.mrb[0].mxu0
        %v3707 = vadd.f32 0.0, %v3706
        %v3708 = vpop.f32.mrb[0].mxu0
        %3709 = vdwg.mxu0
        %3710 = vmatprep.subr.mxu0 0.0
        %v3711 = vand.u32 %v3632, 4294901760
        %v3712 = vsub.f32 %v3632, %v3711
        %v3713 = vand.u32 %v3712, 4294901760
        %v3714 = vsub.f32 %v3712, %v3713
        %v3715 = vand.u32 %v3714, 4294901760
        %3716 = vmatpush1.xpose.msra.mxu0 %v3715
        %3717 = vmatprep.subr.mxu0 0.0
        %3718 = vmatpush1.xpose.msra.mxu0 0.0
        %3719 = vmatprep.subr.mxu0 0.0
        %3720 = vmatpush1.xpose.msra.mxu0 0.0
        %3721 = vmatprep.subr.mxu0 0.0
        %3722 = vmatpush1.xpose.msra.mxu0 0.0
        %3723 = vmatprep.subr.mxu0 0.0
        %3724 = vmatpush1.xpose.msra.mxu0 0.0
        %3725 = vmatprep.subr.mxu0 0.0
        %3726 = vmatpush1.xpose.msra.mxu0 0.0
        %3727 = vmatprep.subr.mxu0 0.0
        %3728 = vmatpush1.xpose.msra.mxu0 0.0
        %3729 = vmatprep.subr.mxu0 0.0
        %3730 = vmatpush1.xpose.msra.mxu0 0.0
        %3731 = vmatprep.subr.mxu0 0.0
        %3732 = vmatpush1.xpose.msra.mxu0 0.0
        %3733 = vmatprep.subr.mxu0 0.0
        %3734 = vmatpush1.xpose.msra.mxu0 0.0
        %3735 = vmatprep.subr.mxu0 0.0
        %3736 = vmatpush1.xpose.msra.mxu0 0.0
        %3737 = vmatprep.subr.mxu0 0.0
        %3738 = vmatpush1.xpose.msra.mxu0 0.0
        %3739 = vmatprep.subr.mxu0 0.0
        %3740 = vmatpush1.xpose.msra.mxu0 0.0
        %3741 = vmatprep.subr.mxu0 0.0
        %3742 = vmatpush1.xpose.msra.mxu0 0.0
        %3743 = vmatprep.subr.mxu0 0.0
        %3744 = vmatpush1.xpose.msra.mxu0 0.0
        %3745 = vmatprep.subr.mxu0 0.0
        %3746 = vmatpush1.xpose.msra.mxu0 0.0
        %3747 = vmatprep.subr.mxu0 0.0
        %3748 = vmatpush1.xpose.msra.mxu0 0.0
        %3749 = vmatprep.subr.mxu0 0.0
        %3750 = vmatpush1.xpose.msra.mxu0 0.0
        %3751 = vmatprep.subr.mxu0 0.0
        %3752 = vmatpush1.xpose.msra.mxu0 0.0
        %3753 = vmatprep.subr.mxu0 0.0
        %3754 = vmatpush1.xpose.msra.mxu0 0.0
        %3755 = vmatprep.subr.mxu0 0.0
        %3756 = vmatpush1.xpose.msra.mxu0 0.0
        %3757 = vmatprep.subr.mxu0 0.0
        %3758 = vmatpush1.xpose.msra.mxu0 0.0
        %3759 = vmatprep.subr.mxu0 0.0
        %3760 = vmatpush1.xpose.msra.mxu0 0.0
        %3761 = vmatprep.subr.mxu0 0.0
        %3762 = vmatpush1.xpose.msra.mxu0 0.0
        %3763 = vmatprep.subr.mxu0 0.0
        %3764 = vmatpush1.xpose.msra.mxu0 0.0
        %3765 = vmatprep.subr.mxu0 0.0
        %3766 = vmatpush1.xpose.msra.mxu0 0.0
        %3767 = vmatprep.subr.mxu0 0.0
        %3768 = vmatpush1.xpose.msra.mxu0 0.0
        %3769 = vmatprep.subr.mxu0 0.0
        %3770 = vmatpush1.xpose.msra.mxu0 0.0
        %3771 = vmatprep.subr.mxu0 0.0
        %3772 = vmatpush1.xpose.msra.mxu0 0.0
        %3773 = vmatprep.subr.mxu0 0.0
        %3774 = vmatpush1.xpose.msra.mxu0 0.0
        %3775 = vmatprep.subr.mxu0 0.0
        %3776 = vmatpush1.xpose.msra.mxu0 0.0
        %3777 = vmatprep.subr.mxu0 0.0
        %3778 = vmatpush1.xpose.msra.mxu0 0.0
        %3779 = vmatprep.mubr.f32.mxu0 0.0
        %v3780 = vand.u32 %v3630, 4294901760
        %3781 = vmatmul.mubr.f32.gmra.mrb[0].mxu0 %v3780
        %v3782 = vpop.f32.mrb[0].mxu0
        %v3783 = vadd.f32 %v3707, %v3782
        %v3784 = vpop.f32.mrb[0].mxu0
        %3785 = vdwg.mxu0
        %3786 = vmatprep.subr.mxu0 0.0
        %v3787 = vand.u32 %v3632, 4294901760
        %v3788 = vsub.f32 %v3632, %v3787
        %3789 = vmatpush1.xpose.msra.mxu0 %v3788
        %3790 = vmatprep.subr.mxu0 0.0
        %3791 = vmatpush1.xpose.msra.mxu0 0.0
        %3792 = vmatprep.subr.mxu0 0.0
        %3793 = vmatpush1.xpose.msra.mxu0 0.0
        %3794 = vmatprep.subr.mxu0 0.0
        %3795 = vmatpush1.xpose.msra.mxu0 0.0
        %3796 = vmatprep.subr.mxu0 0.0
        %3797 = vmatpush1.xpose.msra.mxu0 0.0
        %3798 = vmatprep.subr.mxu0 0.0
        %3799 = vmatpush1.xpose.msra.mxu0 0.0
        %3800 = vmatprep.subr.mxu0 0.0
        %3801 = vmatpush1.xpose.msra.mxu0 0.0
        %3802 = vmatprep.subr.mxu0 0.0
        %3803 = vmatpush1.xpose.msra.mxu0 0.0
        %3804 = vmatprep.subr.mxu0 0.0
        %3805 = vmatpush1.xpose.msra.mxu0 0.0
        %3806 = vmatprep.subr.mxu0 0.0
        %3807 = vmatpush1.xpose.msra.mxu0 0.0
        %3808 = vmatprep.subr.mxu0 0.0
        %3809 = vmatpush1.xpose.msra.mxu0 0.0
        %3810 = vmatprep.subr.mxu0 0.0
        %3811 = vmatpush1.xpose.msra.mxu0 0.0
        %3812 = vmatprep.subr.mxu0 0.0
        %3813 = vmatpush1.xpose.msra.mxu0 0.0
        %3814 = vmatprep.subr.mxu0 0.0
        %3815 = vmatpush1.xpose.msra.mxu0 0.0
        %3816 = vmatprep.subr.mxu0 0.0
        %3817 = vmatpush1.xpose.msra.mxu0 0.0
        %3818 = vmatprep.subr.mxu0 0.0
        %3819 = vmatpush1.xpose.msra.mxu0 0.0
        %3820 = vmatprep.subr.mxu0 0.0
        %3821 = vmatpush1.xpose.msra.mxu0 0.0
        %3822 = vmatprep.subr.mxu0 0.0
        %3823 = vmatpush1.xpose.msra.mxu0 0.0
        %3824 = vmatprep.subr.mxu0 0.0
        %3825 = vmatpush1.xpose.msra.mxu0 0.0
        %3826 = vmatprep.subr.mxu0 0.0
        %3827 = vmatpush1.xpose.msra.mxu0 0.0
        %3828 = vmatprep.subr.mxu0 0.0
        %3829 = vmatpush1.xpose.msra.mxu0 0.0
        %3830 = vmatprep.subr.mxu0 0.0
        %3831 = vmatpush1.xpose.msra.mxu0 0.0
        %3832 = vmatprep.subr.mxu0 0.0
        %3833 = vmatpush1.xpose.msra.mxu0 0.0
        %3834 = vmatprep.subr.mxu0 0.0
        %3835 = vmatpush1.xpose.msra.mxu0 0.0
        %3836 = vmatprep.subr.mxu0 0.0
        %3837 = vmatpush1.xpose.msra.mxu0 0.0
        %3838 = vmatprep.subr.mxu0 0.0
        %3839 = vmatpush1.xpose.msra.mxu0 0.0
        %3840 = vmatprep.subr.mxu0 0.0
        %3841 = vmatpush1.xpose.msra.mxu0 0.0
        %3842 = vmatprep.subr.mxu0 0.0
        %3843 = vmatpush1.xpose.msra.mxu0 0.0
        %3844 = vmatprep.subr.mxu0 0.0
        %3845 = vmatpush1.xpose.msra.mxu0 0.0
        %3846 = vmatprep.subr.mxu0 0.0
        %3847 = vmatpush1.xpose.msra.mxu0 0.0
        %3848 = vmatprep.subr.mxu0 0.0
        %3849 = vmatpush1.xpose.msra.mxu0 0.0
        %3850 = vmatprep.subr.mxu0 0.0
        %3851 = vmatpush1.xpose.msra.mxu0 0.0
        %3852 = vmatprep.mubr.f32.mxu0 0.0
        %v3853 = vand.u32 %v3630, 4294901760
        %v3854 = vsub.f32 %v3630, %v3853
        %3855 = vmatmul.mubr.f32.gmra.mrb[0].mxu0 %v3854
        %v3856 = vpop.f32.mrb[0].mxu0
        %v3857 = vadd.f32 %v3783, %v3856
        %v3858 = vpop.f32.mrb[0].mxu0
        %3859 = vdwg.mxu0
        %3860 = vmatprep.subr.mxu0 0.0
        %v3861 = vand.u32 %v3632, 4294901760
        %3862 = vmatpush1.xpose.msra.mxu0 %v3861
        %3863 = vmatprep.subr.mxu0 0.0
        %3864 = vmatpush1.xpose.msra.mxu0 0.0
        %3865 = vmatprep.subr.mxu0 0.0
        %3866 = vmatpush1.xpose.msra.mxu0 0.0
        %3867 = vmatprep.subr.mxu0 0.0
        %3868 = vmatpush1.xpose.msra.mxu0 0.0
        %3869 = vmatprep.subr.mxu0 0.0
        %3870 = vmatpush1.xpose.msra.mxu0 0.0
        %3871 = vmatprep.subr.mxu0 0.0
        %3872 = vmatpush1.xpose.msra.mxu0 0.0
        %3873 = vmatprep.subr.mxu0 0.0
        %3874 = vmatpush1.xpose.msra.mxu0 0.0
        %3875 = vmatprep.subr.mxu0 0.0
        %3876 = vmatpush1.xpose.msra.mxu0 0.0
        %3877 = vmatprep.subr.mxu0 0.0
        %3878 = vmatpush1.xpose.msra.mxu0 0.0
        %3879 = vmatprep.subr.mxu0 0.0
        %3880 = vmatpush1.xpose.msra.mxu0 0.0
        %3881 = vmatprep.subr.mxu0 0.0
        %3882 = vmatpush1.xpose.msra.mxu0 0.0
        %3883 = vmatprep.subr.mxu0 0.0
        %3884 = vmatpush1.xpose.msra.mxu0 0.0
        %3885 = vmatprep.subr.mxu0 0.0
        %3886 = vmatpush1.xpose.msra.mxu0 0.0
        %3887 = vmatprep.subr.mxu0 0.0
        %3888 = vmatpush1.xpose.msra.mxu0 0.0
        %3889 = vmatprep.subr.mxu0 0.0
        %3890 = vmatpush1.xpose.msra.mxu0 0.0
        %3891 = vmatprep.subr.mxu0 0.0
        %3892 = vmatpush1.xpose.msra.mxu0 0.0
        %3893 = vmatprep.subr.mxu0 0.0
        %3894 = vmatpush1.xpose.msra.mxu0 0.0
        %3895 = vmatprep.subr.mxu0 0.0
        %3896 = vmatpush1.xpose.msra.mxu0 0.0
        %3897 = vmatprep.subr.mxu0 0.0
        %3898 = vmatpush1.xpose.msra.mxu0 0.0
        %3899 = vmatprep.subr.mxu0 0.0
        %3900 = vmatpush1.xpose.msra.mxu0 0.0
        %3901 = vmatprep.subr.mxu0 0.0
        %3902 = vmatpush1.xpose.msra.mxu0 0.0
        %3903 = vmatprep.subr.mxu0 0.0
        %3904 = vmatpush1.xpose.msra.mxu0 0.0
        %3905 = vmatprep.subr.mxu0 0.0
        %3906 = vmatpush1.xpose.msra.mxu0 0.0
        %3907 = vmatprep.subr.mxu0 0.0
        %3908 = vmatpush1.xpose.msra.mxu0 0.0
        %3909 = vmatprep.subr.mxu0 0.0
        %3910 = vmatpush1.xpose.msra.mxu0 0.0
        %3911 = vmatprep.subr.mxu0 0.0
        %3912 = vmatpush1.xpose.msra.mxu0 0.0
        %3913 = vmatprep.subr.mxu0 0.0
        %3914 = vmatpush1.xpose.msra.mxu0 0.0
        %3915 = vmatprep.subr.mxu0 0.0
        %3916 = vmatpush1.xpose.msra.mxu0 0.0
        %3917 = vmatprep.subr.mxu0 0.0
        %3918 = vmatpush1.xpose.msra.mxu0 0.0
        %3919 = vmatprep.subr.mxu0 0.0
        %3920 = vmatpush1.xpose.msra.mxu0 0.0
        %3921 = vmatprep.subr.mxu0 0.0
        %3922 = vmatpush1.xpose.msra.mxu0 0.0
        %3923 = vmatprep.subr.mxu0 0.0
        %3924 = vmatpush1.xpose.msra.mxu0 0.0
        %3925 = vmatprep.mubr.f32.mxu0 0.0
        %v3926 = vand.u32 %v3630, 4294901760
        %v3927 = vsub.f32 %v3630, %v3926
        %v3928 = vand.u32 %v3927, 4294901760
        %3929 = vmatmul.mubr.f32.gmra.mrb[0].mxu0 %v3928
        %v3930 = vpop.f32.mrb[0].mxu0
        %v3931 = vadd.f32 %v3857, %v3930
        %v3932 = vpop.f32.mrb[0].mxu0
        %3933 = vdwg.mxu0
        %3934 = vmatprep.subr.mxu0 0.0
        %v3935 = vand.u32 %v3632, 4294901760
        %v3936 = vsub.f32 %v3632, %v3935
        %v3937 = vand.u32 %v3936, 4294901760
        %3938 = vmatpush1.xpose.msra.mxu0 %v3937
        %3939 = vmatprep.subr.mxu0 0.0
        %3940 = vmatpush1.xpose.msra.mxu0 0.0
        %3941 = vmatprep.subr.mxu0 0.0
        %3942 = vmatpush1.xpose.msra.mxu0 0.0
        %3943 = vmatprep.subr.mxu0 0.0
        %3944 = vmatpush1.xpose.msra.mxu0 0.0
        %3945 = vmatprep.subr.mxu0 0.0
        %3946 = vmatpush1.xpose.msra.mxu0 0.0
        %3947 = vmatprep.subr.mxu0 0.0
        %3948 = vmatpush1.xpose.msra.mxu0 0.0
        %3949 = vmatprep.subr.mxu0 0.0
        %3950 = vmatpush1.xpose.msra.mxu0 0.0
        %3951 = vmatprep.subr.mxu0 0.0
        %3952 = vmatpush1.xpose.msra.mxu0 0.0
        %3953 = vmatprep.subr.mxu0 0.0
        %3954 = vmatpush1.xpose.msra.mxu0 0.0
        %3955 = vmatprep.subr.mxu0 0.0
        %3956 = vmatpush1.xpose.msra.mxu0 0.0
        %3957 = vmatprep.subr.mxu0 0.0
        %3958 = vmatpush1.xpose.msra.mxu0 0.0
        %3959 = vmatprep.subr.mxu0 0.0
        %3960 = vmatpush1.xpose.msra.mxu0 0.0
        %3961 = vmatprep.subr.mxu0 0.0
        %3962 = vmatpush1.xpose.msra.mxu0 0.0
        %3963 = vmatprep.subr.mxu0 0.0
        %3964 = vmatpush1.xpose.msra.mxu0 0.0
        %3965 = vmatprep.subr.mxu0 0.0
        %3966 = vmatpush1.xpose.msra.mxu0 0.0
        %3967 = vmatprep.subr.mxu0 0.0
        %3968 = vmatpush1.xpose.msra.mxu0 0.0
        %3969 = vmatprep.subr.mxu0 0.0
        %3970 = vmatpush1.xpose.msra.mxu0 0.0
        %3971 = vmatprep.subr.mxu0 0.0
        %3972 = vmatpush1.xpose.msra.mxu0 0.0
        %3973 = vmatprep.subr.mxu0 0.0
        %3974 = vmatpush1.xpose.msra.mxu0 0.0
        %3975 = vmatprep.subr.mxu0 0.0
        %3976 = vmatpush1.xpose.msra.mxu0 0.0
        %3977 = vmatprep.subr.mxu0 0.0
        %3978 = vmatpush1.xpose.msra.mxu0 0.0
        %3979 = vmatprep.subr.mxu0 0.0
        %3980 = vmatpush1.xpose.msra.mxu0 0.0
        %3981 = vmatprep.subr.mxu0 0.0
        %3982 = vmatpush1.xpose.msra.mxu0 0.0
        %3983 = vmatprep.subr.mxu0 0.0
        %3984 = vmatpush1.xpose.msra.mxu0 0.0
        %3985 = vmatprep.subr.mxu0 0.0
        %3986 = vmatpush1.xpose.msra.mxu0 0.0
        %3987 = vmatprep.subr.mxu0 0.0
        %3988 = vmatpush1.xpose.msra.mxu0 0.0
        %3989 = vmatprep.subr.mxu0 0.0
        %3990 = vmatpush1.xpose.msra.mxu0 0.0
        %3991 = vmatprep.subr.mxu0 0.0
        %3992 = vmatpush1.xpose.msra.mxu0 0.0
        %3993 = vmatprep.subr.mxu0 0.0
        %3994 = vmatpush1.xpose.msra.mxu0 0.0
        %3995 = vmatprep.subr.mxu0 0.0
        %3996 = vmatpush1.xpose.msra.mxu0 0.0
        %3997 = vmatprep.subr.mxu0 0.0
        %3998 = vmatpush1.xpose.msra.mxu0 0.0
        %3999 = vmatprep.subr.mxu0 0.0
        %4000 = vmatpush1.xpose.msra.mxu0 0.0
        %4001 = vmatprep.mubr.f32.mxu0 0.0
        %v4002 = vand.u32 %v3630, 4294901760
        %4003 = vmatmul.mubr.f32.gmra.mrb[0].mxu0 %v4002
        %v4004 = vpop.f32.mrb[0].mxu0
        %v4005 = vadd.f32 %v3931, %v4004
        %v4006 = vpop.f32.mrb[0].mxu0
        %4007 = vdwg.mxu0
        %4008 = vmatprep.subr.mxu0 0.0
        %v4009 = vand.u32 %v3632, 4294901760
        %4010 = vmatpush1.xpose.msra.mxu0 %v4009
        %4011 = vmatprep.subr.mxu0 0.0
        %4012 = vmatpush1.xpose.msra.mxu0 0.0
        %4013 = vmatprep.subr.mxu0 0.0
        %4014 = vmatpush1.xpose.msra.mxu0 0.0
        %4015 = vmatprep.subr.mxu0 0.0
        %4016 = vmatpush1.xpose.msra.mxu0 0.0
        %4017 = vmatprep.subr.mxu0 0.0
        %4018 = vmatpush1.xpose.msra.mxu0 0.0
        %4019 = vmatprep.subr.mxu0 0.0
        %4020 = vmatpush1.xpose.msra.mxu0 0.0
        %4021 = vmatprep.subr.mxu0 0.0
        %4022 = vmatpush1.xpose.msra.mxu0 0.0
        %4023 = vmatprep.subr.mxu0 0.0
        %4024 = vmatpush1.xpose.msra.mxu0 0.0
        %4025 = vmatprep.subr.mxu0 0.0
        %4026 = vmatpush1.xpose.msra.mxu0 0.0
        %4027 = vmatprep.subr.mxu0 0.0
        %4028 = vmatpush1.xpose.msra.mxu0 0.0
        %4029 = vmatprep.subr.mxu0 0.0
        %4030 = vmatpush1.xpose.msra.mxu0 0.0
        %4031 = vmatprep.subr.mxu0 0.0
        %4032 = vmatpush1.xpose.msra.mxu0 0.0
        %4033 = vmatprep.subr.mxu0 0.0
        %4034 = vmatpush1.xpose.msra.mxu0 0.0
        %4035 = vmatprep.subr.mxu0 0.0
        %4036 = vmatpush1.xpose.msra.mxu0 0.0
        %4037 = vmatprep.subr.mxu0 0.0
        %4038 = vmatpush1.xpose.msra.mxu0 0.0
        %4039 = vmatprep.subr.mxu0 0.0
        %4040 = vmatpush1.xpose.msra.mxu0 0.0
        %4041 = vmatprep.subr.mxu0 0.0
        %4042 = vmatpush1.xpose.msra.mxu0 0.0
        %4043 = vmatprep.subr.mxu0 0.0
        %4044 = vmatpush1.xpose.msra.mxu0 0.0
        %4045 = vmatprep.subr.mxu0 0.0
        %4046 = vmatpush1.xpose.msra.mxu0 0.0
        %4047 = vmatprep.subr.mxu0 0.0
        %4048 = vmatpush1.xpose.msra.mxu0 0.0
        %4049 = vmatprep.subr.mxu0 0.0
        %4050 = vmatpush1.xpose.msra.mxu0 0.0
        %4051 = vmatprep.subr.mxu0 0.0
        %4052 = vmatpush1.xpose.msra.mxu0 0.0
        %4053 = vmatprep.subr.mxu0 0.0
        %4054 = vmatpush1.xpose.msra.mxu0 0.0
        %4055 = vmatprep.subr.mxu0 0.0
        %4056 = vmatpush1.xpose.msra.mxu0 0.0
        %4057 = vmatprep.subr.mxu0 0.0
        %4058 = vmatpush1.xpose.msra.mxu0 0.0
        %4059 = vmatprep.subr.mxu0 0.0
        %4060 = vmatpush1.xpose.msra.mxu0 0.0
        %4061 = vmatprep.subr.mxu0 0.0
        %4062 = vmatpush1.xpose.msra.mxu0 0.0
        %4063 = vmatprep.subr.mxu0 0.0
        %4064 = vmatpush1.xpose.msra.mxu0 0.0
        %4065 = vmatprep.subr.mxu0 0.0
        %4066 = vmatpush1.xpose.msra.mxu0 0.0
        %4067 = vmatprep.subr.mxu0 0.0
        %4068 = vmatpush1.xpose.msra.mxu0 0.0
        %4069 = vmatprep.subr.mxu0 0.0
        %4070 = vmatpush1.xpose.msra.mxu0 0.0
        %4071 = vmatprep.subr.mxu0 0.0
        %4072 = vmatpush1.xpose.msra.mxu0 0.0
        %4073 = vmatprep.mubr.f32.mxu0 0.0
        %v4074 = vand.u32 %v3630, 4294901760
        %4075 = vmatmul.mubr.f32.gmra.mrb[0].mxu0 %v4074
        %v4076 = vpop.f32.mrb[0].mxu0
        %v4077 = vadd.f32 %v4005, %v4076
        %v4078 = vpop.f32.mrb[0].mxu0
        %4079 = vdwg.mxu0
        %v4080 = vsel %vm1791, %v4077, -inf
        %v4081 = vsel %vm2246, %v4080, -inf
        %4082 = vmax.xlane.f32.xlu0 %v4081
        %v4083 = vpop.xlane.xlu0 %4082
        %v4084 = vsub.f32 %v4080, %v4083
        %v4085 = vmul.f32 %v4084, 1.442695
        %v4086 = vpow.pop %v4085
        %v4087 = vsel %vm2246, %v4086, 0.0
        %4088 = vadd.xlane.f32.xlu0 %v4087
        %v4089 = vpop.xlane.xlu0 %4088
        %v4090 = vrcp.pop %v4089
        %v4091 = vmul.f32 %v4086, %v4090
        %4092 = vrot.lane.b32.xlu0 %v1784, 64
        %v4093 = vpop.permute.xlu0 %4092
        %v4096 = vsel %vm2246, %v4091, 0
        %4098 = vmatprep.subr.mxu0 0.0
        %v4099 = vand.u32 %v4093, 4294901760
        %4100 = vmatpush1.msra.mxu0 %v4099
        %4101 = vmatprep.subr.mxu0 0.0
        %4102 = vmatpush1.msra.mxu0 0.0
        %4103 = vmatprep.subr.mxu0 0.0
        %4104 = vmatpush1.msra.mxu0 0.0
        %4105 = vmatprep.subr.mxu0 0.0
        %4106 = vmatpush1.msra.mxu0 0.0
        %4107 = vmatprep.subr.mxu0 0.0
        %4108 = vmatpush1.msra.mxu0 0.0
        %4109 = vmatprep.subr.mxu0 0.0
        %4110 = vmatpush1.msra.mxu0 0.0
        %4111 = vmatprep.subr.mxu0 0.0
        %4112 = vmatpush1.msra.mxu0 0.0
        %4113 = vmatprep.subr.mxu0 0.0
        %4114 = vmatpush1.msra.mxu0 0.0
        %4115 = vmatprep.subr.mxu0 0.0
        %4116 = vmatpush1.msra.mxu0 0.0
        %4117 = vmatprep.subr.mxu0 0.0
        %4118 = vmatpush1.msra.mxu0 0.0
        %4119 = vmatprep.subr.mxu0 0.0
        %4120 = vmatpush1.msra.mxu0 0.0
        %4121 = vmatprep.subr.mxu0 0.0
        %4122 = vmatpush1.msra.mxu0 0.0
        %4123 = vmatprep.subr.mxu0 0.0
        %4124 = vmatpush1.msra.mxu0 0.0
        %4125 = vmatprep.subr.mxu0 0.0
        %4126 = vmatpush1.msra.mxu0 0.0
        %4127 = vmatprep.subr.mxu0 0.0
        %4128 = vmatpush1.msra.mxu0 0.0
        %4129 = vmatprep.subr.mxu0 0.0
        %4130 = vmatpush1.msra.mxu0 0.0
        %4131 = vmatprep.subr.mxu0 0.0
        %4132 = vmatpush1.msra.mxu0 0.0
        %4133 = vmatprep.subr.mxu0 0.0
        %4134 = vmatpush1.msra.mxu0 0.0
        %4135 = vmatprep.subr.mxu0 0.0
        %4136 = vmatpush1.msra.mxu0 0.0
        %4137 = vmatprep.subr.mxu0 0.0
        %4138 = vmatpush1.msra.mxu0 0.0
        %4139 = vmatprep.subr.mxu0 0.0
        %4140 = vmatpush1.msra.mxu0 0.0
        %4141 = vmatprep.subr.mxu0 0.0
        %4142 = vmatpush1.msra.mxu0 0.0
        %4143 = vmatprep.subr.mxu0 0.0
        %4144 = vmatpush1.msra.mxu0 0.0
        %4145 = vmatprep.subr.mxu0 0.0
        %4146 = vmatpush1.msra.mxu0 0.0
        %4147 = vmatprep.subr.mxu0 0.0
        %4148 = vmatpush1.msra.mxu0 0.0
        %4149 = vmatprep.subr.mxu0 0.0
        %4150 = vmatpush1.msra.mxu0 0.0
        %4151 = vmatprep.subr.mxu0 0.0
        %4152 = vmatpush1.msra.mxu0 0.0
        %4153 = vmatprep.subr.mxu0 0.0
        %4154 = vmatpush1.msra.mxu0 0.0
        %4155 = vmatprep.subr.mxu0 0.0
        %4156 = vmatpush1.msra.mxu0 0.0
        %4157 = vmatprep.subr.mxu0 0.0
        %4158 = vmatpush1.msra.mxu0 0.0
        %4159 = vmatprep.subr.mxu0 0.0
        %4160 = vmatpush1.msra.mxu0 0.0
        %4161 = vmatprep.subr.mxu0 0.0
        %4162 = vmatpush1.msra.mxu0 0.0
        %4163 = vmatprep.mubr.f32.mxu0 0.0
        %v4164 = vand.u32 %v4096, 4294901760
        %v4165 = vsub.f32 %v4096, %v4164
        %v4166 = vand.u32 %v4165, 4294901760
        %v4167 = vsub.f32 %v4165, %v4166
        %v4168 = vand.u32 %v4167, 4294901760
        %4169 = vmatmul.mubr.f32.gmra.mrb[0].mxu0 %v4168
        %v4170 = vpop.f32.mrb[0].mxu0
        %v4171 = vadd.f32 0.0, %v4170
        %v4172 = vpop.f32.mrb[0].mxu0
        %4173 = vdwg.mxu0
        %4174 = vmatprep.subr.mxu0 0.0
        %v4175 = vand.u32 %v4093, 4294901760
        %v4176 = vsub.f32 %v4093, %v4175
        %v4177 = vand.u32 %v4176, 4294901760
        %v4178 = vsub.f32 %v4176, %v4177
        %v4179 = vand.u32 %v4178, 4294901760
        %4180 = vmatpush1.msra.mxu0 %v4179
        %4181 = vmatprep.subr.mxu0 0.0
        %4182 = vmatpush1.msra.mxu0 0.0
        %4183 = vmatprep.subr.mxu0 0.0
        %4184 = vmatpush1.msra.mxu0 0.0
        %4185 = vmatprep.subr.mxu0 0.0
        %4186 = vmatpush1.msra.mxu0 0.0
        %4187 = vmatprep.subr.mxu0 0.0
        %4188 = vmatpush1.msra.mxu0 0.0
        %4189 = vmatprep.subr.mxu0 0.0
        %4190 = vmatpush1.msra.mxu0 0.0
        %4191 = vmatprep.subr.mxu0 0.0
        %4192 = vmatpush1.msra.mxu0 0.0
        %4193 = vmatprep.subr.mxu0 0.0
        %4194 = vmatpush1.msra.mxu0 0.0
        %4195 = vmatprep.subr.mxu0 0.0
        %4196 = vmatpush1.msra.mxu0 0.0
        %4197 = vmatprep.subr.mxu0 0.0
        %4198 = vmatpush1.msra.mxu0 0.0
        %4199 = vmatprep.subr.mxu0 0.0
        %4200 = vmatpush1.msra.mxu0 0.0
        %4201 = vmatprep.subr.mxu0 0.0
        %4202 = vmatpush1.msra.mxu0 0.0
        %4203 = vmatprep.subr.mxu0 0.0
        %4204 = vmatpush1.msra.mxu0 0.0
        %4205 = vmatprep.subr.mxu0 0.0
        %4206 = vmatpush1.msra.mxu0 0.0
        %4207 = vmatprep.subr.mxu0 0.0
        %4208 = vmatpush1.msra.mxu0 0.0
        %4209 = vmatprep.subr.mxu0 0.0
        %4210 = vmatpush1.msra.mxu0 0.0
        %4211 = vmatprep.subr.mxu0 0.0
        %4212 = vmatpush1.msra.mxu0 0.0
        %4213 = vmatprep.subr.mxu0 0.0
        %4214 = vmatpush1.msra.mxu0 0.0
        %4215 = vmatprep.subr.mxu0 0.0
        %4216 = vmatpush1.msra.mxu0 0.0
        %4217 = vmatprep.subr.mxu0 0.0
        %4218 = vmatpush1.msra.mxu0 0.0
        %4219 = vmatprep.subr.mxu0 0.0
        %4220 = vmatpush1.msra.mxu0 0.0
        %4221 = vmatprep.subr.mxu0 0.0
        %4222 = vmatpush1.msra.mxu0 0.0
        %4223 = vmatprep.subr.mxu0 0.0
        %4224 = vmatpush1.msra.mxu0 0.0
        %4225 = vmatprep.subr.mxu0 0.0
        %4226 = vmatpush1.msra.mxu0 0.0
        %4227 = vmatprep.subr.mxu0 0.0
        %4228 = vmatpush1.msra.mxu0 0.0
        %4229 = vmatprep.subr.mxu0 0.0
        %4230 = vmatpush1.msra.mxu0 0.0
        %4231 = vmatprep.subr.mxu0 0.0
        %4232 = vmatpush1.msra.mxu0 0.0
        %4233 = vmatprep.subr.mxu0 0.0
        %4234 = vmatpush1.msra.mxu0 0.0
        %4235 = vmatprep.subr.mxu0 0.0
        %4236 = vmatpush1.msra.mxu0 0.0
        %4237 = vmatprep.subr.mxu0 0.0
        %4238 = vmatpush1.msra.mxu0 0.0
        %4239 = vmatprep.subr.mxu0 0.0
        %4240 = vmatpush1.msra.mxu0 0.0
        %4241 = vmatprep.subr.mxu0 0.0
        %4242 = vmatpush1.msra.mxu0 0.0
        %4243 = vmatprep.mubr.f32.mxu0 0.0
        %v4244 = vand.u32 %v4096, 4294901760
        %4245 = vmatmul.mubr.f32.gmra.mrb[0].mxu0 %v4244
        %v4246 = vpop.f32.mrb[0].mxu0
        %v4247 = vadd.f32 %v4171, %v4246
        %v4248 = vpop.f32.mrb[0].mxu0
        %4249 = vdwg.mxu0
        %4250 = vmatprep.subr.mxu0 0.0
        %v4251 = vand.u32 %v4093, 4294901760
        %v4252 = vsub.f32 %v4093, %v4251
        %4253 = vmatpush1.msra.mxu0 %v4252
        %4254 = vmatprep.subr.mxu0 0.0
        %4255 = vmatpush1.msra.mxu0 0.0
        %4256 = vmatprep.subr.mxu0 0.0
        %4257 = vmatpush1.msra.mxu0 0.0
        %4258 = vmatprep.subr.mxu0 0.0
        %4259 = vmatpush1.msra.mxu0 0.0
        %4260 = vmatprep.subr.mxu0 0.0
        %4261 = vmatpush1.msra.mxu0 0.0
        %4262 = vmatprep.subr.mxu0 0.0
        %4263 = vmatpush1.msra.mxu0 0.0
        %4264 = vmatprep.subr.mxu0 0.0
        %4265 = vmatpush1.msra.mxu0 0.0
        %4266 = vmatprep.subr.mxu0 0.0
        %4267 = vmatpush1.msra.mxu0 0.0
        %4268 = vmatprep.subr.mxu0 0.0
        %4269 = vmatpush1.msra.mxu0 0.0
        %4270 = vmatprep.subr.mxu0 0.0
        %4271 = vmatpush1.msra.mxu0 0.0
        %4272 = vmatprep.subr.mxu0 0.0
        %4273 = vmatpush1.msra.mxu0 0.0
        %4274 = vmatprep.subr.mxu0 0.0
        %4275 = vmatpush1.msra.mxu0 0.0
        %4276 = vmatprep.subr.mxu0 0.0
        %4277 = vmatpush1.msra.mxu0 0.0
        %4278 = vmatprep.subr.mxu0 0.0
        %4279 = vmatpush1.msra.mxu0 0.0
        %4280 = vmatprep.subr.mxu0 0.0
        %4281 = vmatpush1.msra.mxu0 0.0
        %4282 = vmatprep.subr.mxu0 0.0
        %4283 = vmatpush1.msra.mxu0 0.0
        %4284 = vmatprep.subr.mxu0 0.0
        %4285 = vmatpush1.msra.mxu0 0.0
        %4286 = vmatprep.subr.mxu0 0.0
        %4287 = vmatpush1.msra.mxu0 0.0
        %4288 = vmatprep.subr.mxu0 0.0
        %4289 = vmatpush1.msra.mxu0 0.0
        %4290 = vmatprep.subr.mxu0 0.0
        %4291 = vmatpush1.msra.mxu0 0.0
        %4292 = vmatprep.subr.mxu0 0.0
        %4293 = vmatpush1.msra.mxu0 0.0
        %4294 = vmatprep.subr.mxu0 0.0
        %4295 = vmatpush1.msra.mxu0 0.0
        %4296 = vmatprep.subr.mxu0 0.0
        %4297 = vmatpush1.msra.mxu0 0.0
        %4298 = vmatprep.subr.mxu0 0.0
        %4299 = vmatpush1.msra.mxu0 0.0
        %4300 = vmatprep.subr.mxu0 0.0
        %4301 = vmatpush1.msra.mxu0 0.0
        %4302 = vmatprep.subr.mxu0 0.0
        %4303 = vmatpush1.msra.mxu0 0.0
        %4304 = vmatprep.subr.mxu0 0.0
        %4305 = vmatpush1.msra.mxu0 0.0
        %4306 = vmatprep.subr.mxu0 0.0
        %4307 = vmatpush1.msra.mxu0 0.0
        %4308 = vmatprep.subr.mxu0 0.0
        %4309 = vmatpush1.msra.mxu0 0.0
        %4310 = vmatprep.subr.mxu0 0.0
        %4311 = vmatpush1.msra.mxu0 0.0
        %4312 = vmatprep.subr.mxu0 0.0
        %4313 = vmatpush1.msra.mxu0 0.0
        %4314 = vmatprep.subr.mxu0 0.0
        %4315 = vmatpush1.msra.mxu0 0.0
        %4316 = vmatprep.mubr.f32.mxu0 0.0
        %v4317 = vand.u32 %v4096, 4294901760
        %v4318 = vsub.f32 %v4096, %v4317
        %4319 = vmatmul.mubr.f32.gmra.mrb[0].mxu0 %v4318
        %v4320 = vpop.f32.mrb[0].mxu0
        %v4321 = vadd.f32 %v4247, %v4320
        %v4322 = vpop.f32.mrb[0].mxu0
        %4323 = vdwg.mxu0
        %4324 = vmatprep.subr.mxu0 0.0
        %v4325 = vand.u32 %v4093, 4294901760
        %4326 = vmatpush1.msra.mxu0 %v4325
        %4327 = vmatprep.subr.mxu0 0.0
        %4328 = vmatpush1.msra.mxu0 0.0
        %4329 = vmatprep.subr.mxu0 0.0
        %4330 = vmatpush1.msra.mxu0 0.0
        %4331 = vmatprep.subr.mxu0 0.0
        %4332 = vmatpush1.msra.mxu0 0.0
        %4333 = vmatprep.subr.mxu0 0.0
        %4334 = vmatpush1.msra.mxu0 0.0
        %4335 = vmatprep.subr.mxu0 0.0
        %4336 = vmatpush1.msra.mxu0 0.0
        %4337 = vmatprep.subr.mxu0 0.0
        %4338 = vmatpush1.msra.mxu0 0.0
        %4339 = vmatprep.subr.mxu0 0.0
        %4340 = vmatpush1.msra.mxu0 0.0
        %4341 = vmatprep.subr.mxu0 0.0
        %4342 = vmatpush1.msra.mxu0 0.0
        %4343 = vmatprep.subr.mxu0 0.0
        %4344 = vmatpush1.msra.mxu0 0.0
        %4345 = vmatprep.subr.mxu0 0.0
        %4346 = vmatpush1.msra.mxu0 0.0
        %4347 = vmatprep.subr.mxu0 0.0
        %4348 = vmatpush1.msra.mxu0 0.0
        %4349 = vmatprep.subr.mxu0 0.0
        %4350 = vmatpush1.msra.mxu0 0.0
        %4351 = vmatprep.subr.mxu0 0.0
        %4352 = vmatpush1.msra.mxu0 0.0
        %4353 = vmatprep.subr.mxu0 0.0
        %4354 = vmatpush1.msra.mxu0 0.0
        %4355 = vmatprep.subr.mxu0 0.0
        %4356 = vmatpush1.msra.mxu0 0.0
        %4357 = vmatprep.subr.mxu0 0.0
        %4358 = vmatpush1.msra.mxu0 0.0
        %4359 = vmatprep.subr.mxu0 0.0
        %4360 = vmatpush1.msra.mxu0 0.0
        %4361 = vmatprep.subr.mxu0 0.0
        %4362 = vmatpush1.msra.mxu0 0.0
        %4363 = vmatprep.subr.mxu0 0.0
        %4364 = vmatpush1.msra.mxu0 0.0
        %4365 = vmatprep.subr.mxu0 0.0
        %4366 = vmatpush1.msra.mxu0 0.0
        %4367 = vmatprep.subr.mxu0 0.0
        %4368 = vmatpush1.msra.mxu0 0.0
        %4369 = vmatprep.subr.mxu0 0.0
        %4370 = vmatpush1.msra.mxu0 0.0
        %4371 = vmatprep.subr.mxu0 0.0
        %4372 = vmatpush1.msra.mxu0 0.0
        %4373 = vmatprep.subr.mxu0 0.0
        %4374 = vmatpush1.msra.mxu0 0.0
        %4375 = vmatprep.subr.mxu0 0.0
        %4376 = vmatpush1.msra.mxu0 0.0
        %4377 = vmatprep.subr.mxu0 0.0
        %4378 = vmatpush1.msra.mxu0 0.0
        %4379 = vmatprep.subr.mxu0 0.0
        %4380 = vmatpush1.msra.mxu0 0.0
        %4381 = vmatprep.subr.mxu0 0.0
        %4382 = vmatpush1.msra.mxu0 0.0
        %4383 = vmatprep.subr.mxu0 0.0
        %4384 = vmatpush1.msra.mxu0 0.0
        %4385 = vmatprep.subr.mxu0 0.0
        %4386 = vmatpush1.msra.mxu0 0.0
        %4387 = vmatprep.subr.mxu0 0.0
        %4388 = vmatpush1.msra.mxu0 0.0
        %4389 = vmatprep.mubr.f32.mxu0 0.0
        %v4390 = vand.u32 %v4096, 4294901760
        %v4391 = vsub.f32 %v4096, %v4390
        %v4392 = vand.u32 %v4391, 4294901760
        %4393 = vmatmul.mubr.f32.gmra.mrb[0].mxu0 %v4392
        %v4394 = vpop.f32.mrb[0].mxu0
        %v4395 = vadd.f32 %v4321, %v4394
        %v4396 = vpop.f32.mrb[0].mxu0
        %4397 = vdwg.mxu0
        %4398 = vmatprep.subr.mxu0 0.0
        %v4399 = vand.u32 %v4093, 4294901760
        %v4400 = vsub.f32 %v4093, %v4399
        %v4401 = vand.u32 %v4400, 4294901760
        %4402 = vmatpush1.msra.mxu0 %v4401
        %4403 = vmatprep.subr.mxu0 0.0
        %4404 = vmatpush1.msra.mxu0 0.0
        %4405 = vmatprep.subr.mxu0 0.0
        %4406 = vmatpush1.msra.mxu0 0.0
        %4407 = vmatprep.subr.mxu0 0.0
        %4408 = vmatpush1.msra.mxu0 0.0
        %4409 = vmatprep.subr.mxu0 0.0
        %4410 = vmatpush1.msra.mxu0 0.0
        %4411 = vmatprep.subr.mxu0 0.0
        %4412 = vmatpush1.msra.mxu0 0.0
        %4413 = vmatprep.subr.mxu0 0.0
        %4414 = vmatpush1.msra.mxu0 0.0
        %4415 = vmatprep.subr.mxu0 0.0
        %4416 = vmatpush1.msra.mxu0 0.0
        %4417 = vmatprep.subr.mxu0 0.0
        %4418 = vmatpush1.msra.mxu0 0.0
        %4419 = vmatprep.subr.mxu0 0.0
        %4420 = vmatpush1.msra.mxu0 0.0
        %4421 = vmatprep.subr.mxu0 0.0
        %4422 = vmatpush1.msra.mxu0 0.0
        %4423 = vmatprep.subr.mxu0 0.0
        %4424 = vmatpush1.msra.mxu0 0.0
        %4425 = vmatprep.subr.mxu0 0.0
        %4426 = vmatpush1.msra.mxu0 0.0
        %4427 = vmatprep.subr.mxu0 0.0
        %4428 = vmatpush1.msra.mxu0 0.0
        %4429 = vmatprep.subr.mxu0 0.0
        %4430 = vmatpush1.msra.mxu0 0.0
        %4431 = vmatprep.subr.mxu0 0.0
        %4432 = vmatpush1.msra.mxu0 0.0
        %4433 = vmatprep.subr.mxu0 0.0
        %4434 = vmatpush1.msra.mxu0 0.0
        %4435 = vmatprep.subr.mxu0 0.0
        %4436 = vmatpush1.msra.mxu0 0.0
        %4437 = vmatprep.subr.mxu0 0.0
        %4438 = vmatpush1.msra.mxu0 0.0
        %4439 = vmatprep.subr.mxu0 0.0
        %4440 = vmatpush1.msra.mxu0 0.0
        %4441 = vmatprep.subr.mxu0 0.0
        %4442 = vmatpush1.msra.mxu0 0.0
        %4443 = vmatprep.subr.mxu0 0.0
        %4444 = vmatpush1.msra.mxu0 0.0
        %4445 = vmatprep.subr.mxu0 0.0
        %4446 = vmatpush1.msra.mxu0 0.0
        %4447 = vmatprep.subr.mxu0 0.0
        %4448 = vmatpush1.msra.mxu0 0.0
        %4449 = vmatprep.subr.mxu0 0.0
        %4450 = vmatpush1.msra.mxu0 0.0
        %4451 = vmatprep.subr.mxu0 0.0
        %4452 = vmatpush1.msra.mxu0 0.0
        %4453 = vmatprep.subr.mxu0 0.0
        %4454 = vmatpush1.msra.mxu0 0.0
        %4455 = vmatprep.subr.mxu0 0.0
        %4456 = vmatpush1.msra.mxu0 0.0
        %4457 = vmatprep.subr.mxu0 0.0
        %4458 = vmatpush1.msra.mxu0 0.0
        %4459 = vmatprep.subr.mxu0 0.0
        %4460 = vmatpush1.msra.mxu0 0.0
        %4461 = vmatprep.subr.mxu0 0.0
        %4462 = vmatpush1.msra.mxu0 0.0
        %4463 = vmatprep.subr.mxu0 0.0
        %4464 = vmatpush1.msra.mxu0 0.0
        %4465 = vmatprep.mubr.f32.mxu0 0.0
        %v4466 = vand.u32 %v4096, 4294901760
        %4467 = vmatmul.mubr.f32.gmra.mrb[0].mxu0 %v4466
        %v4468 = vpop.f32.mrb[0].mxu0
        %v4469 = vadd.f32 %v4395, %v4468
        %v4470 = vpop.f32.mrb[0].mxu0
        %4471 = vdwg.mxu0
        %4472 = vmatprep.subr.mxu0 0.0
        %v4473 = vand.u32 %v4093, 4294901760
        %4474 = vmatpush1.msra.mxu0 %v4473
        %4475 = vmatprep.subr.mxu0 0.0
        %4476 = vmatpush1.msra.mxu0 0.0
        %4477 = vmatprep.subr.mxu0 0.0
        %4478 = vmatpush1.msra.mxu0 0.0
        %4479 = vmatprep.subr.mxu0 0.0
        %4480 = vmatpush1.msra.mxu0 0.0
        %4481 = vmatprep.subr.mxu0 0.0
        %4482 = vmatpush1.msra.mxu0 0.0
        %4483 = vmatprep.subr.mxu0 0.0
        %4484 = vmatpush1.msra.mxu0 0.0
        %4485 = vmatprep.subr.mxu0 0.0
        %4486 = vmatpush1.msra.mxu0 0.0
        %4487 = vmatprep.subr.mxu0 0.0
        %4488 = vmatpush1.msra.mxu0 0.0
        %4489 = vmatprep.subr.mxu0 0.0
        %4490 = vmatpush1.msra.mxu0 0.0
        %4491 = vmatprep.subr.mxu0 0.0
        %4492 = vmatpush1.msra.mxu0 0.0
        %4493 = vmatprep.subr.mxu0 0.0
        %4494 = vmatpush1.msra.mxu0 0.0
        %4495 = vmatprep.subr.mxu0 0.0
        %4496 = vmatpush1.msra.mxu0 0.0
        %4497 = vmatprep.subr.mxu0 0.0
        %4498 = vmatpush1.msra.mxu0 0.0
        %4499 = vmatprep.subr.mxu0 0.0
        %4500 = vmatpush1.msra.mxu0 0.0
        %4501 = vmatprep.subr.mxu0 0.0
        %4502 = vmatpush1.msra.mxu0 0.0
        %4503 = vmatprep.subr.mxu0 0.0
        %4504 = vmatpush1.msra.mxu0 0.0
        %4505 = vmatprep.subr.mxu0 0.0
        %4506 = vmatpush1.msra.mxu0 0.0
        %4507 = vmatprep.subr.mxu0 0.0
        %4508 = vmatpush1.msra.mxu0 0.0
        %4509 = vmatprep.subr.mxu0 0.0
        %4510 = vmatpush1.msra.mxu0 0.0
        %4511 = vmatprep.subr.mxu0 0.0
        %4512 = vmatpush1.msra.mxu0 0.0
        %4513 = vmatprep.subr.mxu0 0.0
        %4514 = vmatpush1.msra.mxu0 0.0
        %4515 = vmatprep.subr.mxu0 0.0
        %4516 = vmatpush1.msra.mxu0 0.0
        %4517 = vmatprep.subr.mxu0 0.0
        %4518 = vmatpush1.msra.mxu0 0.0
        %4519 = vmatprep.subr.mxu0 0.0
        %4520 = vmatpush1.msra.mxu0 0.0
        %4521 = vmatprep.subr.mxu0 0.0
        %4522 = vmatpush1.msra.mxu0 0.0
        %4523 = vmatprep.subr.mxu0 0.0
        %4524 = vmatpush1.msra.mxu0 0.0
        %4525 = vmatprep.subr.mxu0 0.0
        %4526 = vmatpush1.msra.mxu0 0.0
        %4527 = vmatprep.subr.mxu0 0.0
        %4528 = vmatpush1.msra.mxu0 0.0
        %4529 = vmatprep.subr.mxu0 0.0
        %4530 = vmatpush1.msra.mxu0 0.0
        %4531 = vmatprep.subr.mxu0 0.0
        %4532 = vmatpush1.msra.mxu0 0.0
        %4533 = vmatprep.subr.mxu0 0.0
        %4534 = vmatpush1.msra.mxu0 0.0
        %4535 = vmatprep.subr.mxu0 0.0
        %4536 = vmatpush1.msra.mxu0 0.0
        %4537 = vmatprep.mubr.f32.mxu0 0.0
        %v4538 = vand.u32 %v4096, 4294901760
        %4539 = vmatmul.mubr.f32.gmra.mrb[0].mxu0 %v4538
        %v4540 = vpop.f32.mrb[0].mxu0
        %v4541 = vadd.f32 %v4469, %v4540
        %v4542 = vpop.f32.mrb[0].mxu0
        %4543 = vdwg.mxu0
        %4544 = vrot.lane.b32.xlu0 %v1142, 32
        %v4545 = vpop.permute.xlu0 %4544
        %4546 = vrot.lane.b32.xlu0 %v1144, 32
        %v4547 = vpop.permute.xlu0 %4546
        %v4548 = vsel %vm1792, %v4545, 0
        %v4550 = vsel %vm1792, %v4547, 0
        %4552 = vmatprep.subr.mxu0 0.0
        %v4553 = vand.u32 %v4550, 4294901760
        %4554 = vmatpush1.xpose.msra.mxu0 %v4553
        %4555 = vmatprep.subr.mxu0 0.0
        %4556 = vmatpush1.xpose.msra.mxu0 0.0
        %4557 = vmatprep.subr.mxu0 0.0
        %4558 = vmatpush1.xpose.msra.mxu0 0.0
        %4559 = vmatprep.subr.mxu0 0.0
        %4560 = vmatpush1.xpose.msra.mxu0 0.0
        %4561 = vmatprep.subr.mxu0 0.0
        %4562 = vmatpush1.xpose.msra.mxu0 0.0
        %4563 = vmatprep.subr.mxu0 0.0
        %4564 = vmatpush1.xpose.msra.mxu0 0.0
        %4565 = vmatprep.subr.mxu0 0.0
        %4566 = vmatpush1.xpose.msra.mxu0 0.0
        %4567 = vmatprep.subr.mxu0 0.0
        %4568 = vmatpush1.xpose.msra.mxu0 0.0
        %4569 = vmatprep.subr.mxu0 0.0
        %4570 = vmatpush1.xpose.msra.mxu0 0.0
        %4571 = vmatprep.subr.mxu0 0.0
        %4572 = vmatpush1.xpose.msra.mxu0 0.0
        %4573 = vmatprep.subr.mxu0 0.0
        %4574 = vmatpush1.xpose.msra.mxu0 0.0
        %4575 = vmatprep.subr.mxu0 0.0
        %4576 = vmatpush1.xpose.msra.mxu0 0.0
        %4577 = vmatprep.subr.mxu0 0.0
        %4578 = vmatpush1.xpose.msra.mxu0 0.0
        %4579 = vmatprep.subr.mxu0 0.0
        %4580 = vmatpush1.xpose.msra.mxu0 0.0
        %4581 = vmatprep.subr.mxu0 0.0
        %4582 = vmatpush1.xpose.msra.mxu0 0.0
        %4583 = vmatprep.subr.mxu0 0.0
        %4584 = vmatpush1.xpose.msra.mxu0 0.0
        %4585 = vmatprep.subr.mxu0 0.0
        %4586 = vmatpush1.xpose.msra.mxu0 0.0
        %4587 = vmatprep.subr.mxu0 0.0
        %4588 = vmatpush1.xpose.msra.mxu0 0.0
        %4589 = vmatprep.subr.mxu0 0.0
        %4590 = vmatpush1.xpose.msra.mxu0 0.0
        %4591 = vmatprep.subr.mxu0 0.0
        %4592 = vmatpush1.xpose.msra.mxu0 0.0
        %4593 = vmatprep.subr.mxu0 0.0
        %4594 = vmatpush1.xpose.msra.mxu0 0.0
        %4595 = vmatprep.subr.mxu0 0.0
        %4596 = vmatpush1.xpose.msra.mxu0 0.0
        %4597 = vmatprep.subr.mxu0 0.0
        %4598 = vmatpush1.xpose.msra.mxu0 0.0
        %4599 = vmatprep.subr.mxu0 0.0
        %4600 = vmatpush1.xpose.msra.mxu0 0.0
        %4601 = vmatprep.subr.mxu0 0.0
        %4602 = vmatpush1.xpose.msra.mxu0 0.0
        %4603 = vmatprep.subr.mxu0 0.0
        %4604 = vmatpush1.xpose.msra.mxu0 0.0
        %4605 = vmatprep.subr.mxu0 0.0
        %4606 = vmatpush1.xpose.msra.mxu0 0.0
        %4607 = vmatprep.subr.mxu0 0.0
        %4608 = vmatpush1.xpose.msra.mxu0 0.0
        %4609 = vmatprep.subr.mxu0 0.0
        %4610 = vmatpush1.xpose.msra.mxu0 0.0
        %4611 = vmatprep.subr.mxu0 0.0
        %4612 = vmatpush1.xpose.msra.mxu0 0.0
        %4613 = vmatprep.subr.mxu0 0.0
        %4614 = vmatpush1.xpose.msra.mxu0 0.0
        %4615 = vmatprep.subr.mxu0 0.0
        %4616 = vmatpush1.xpose.msra.mxu0 0.0
        %4617 = vmatprep.mubr.f32.mxu0 0.0
        %v4618 = vand.u32 %v4548, 4294901760
        %v4619 = vsub.f32 %v4548, %v4618
        %v4620 = vand.u32 %v4619, 4294901760
        %v4621 = vsub.f32 %v4619, %v4620
        %v4622 = vand.u32 %v4621, 4294901760
        %4623 = vmatmul.mubr.f32.gmra.mrb[0].mxu0 %v4622
        %v4624 = vpop.f32.mrb[0].mxu0
        %v4625 = vadd.f32 0.0, %v4624
        %v4626 = vpop.f32.mrb[0].mxu0
        %4627 = vdwg.mxu0
        %4628 = vmatprep.subr.mxu0 0.0
        %v4629 = vand.u32 %v4550, 4294901760
        %v4630 = vsub.f32 %v4550, %v4629
        %v4631 = vand.u32 %v4630, 4294901760
        %v4632 = vsub.f32 %v4630, %v4631
        %v4633 = vand.u32 %v4632, 4294901760
        %4634 = vmatpush1.xpose.msra.mxu0 %v4633
        %4635 = vmatprep.subr.mxu0 0.0
        %4636 = vmatpush1.xpose.msra.mxu0 0.0
        %4637 = vmatprep.subr.mxu0 0.0
        %4638 = vmatpush1.xpose.msra.mxu0 0.0
        %4639 = vmatprep.subr.mxu0 0.0
        %4640 = vmatpush1.xpose.msra.mxu0 0.0
        %4641 = vmatprep.subr.mxu0 0.0
        %4642 = vmatpush1.xpose.msra.mxu0 0.0
        %4643 = vmatprep.subr.mxu0 0.0
        %4644 = vmatpush1.xpose.msra.mxu0 0.0
        %4645 = vmatprep.subr.mxu0 0.0
        %4646 = vmatpush1.xpose.msra.mxu0 0.0
        %4647 = vmatprep.subr.mxu0 0.0
        %4648 = vmatpush1.xpose.msra.mxu0 0.0
        %4649 = vmatprep.subr.mxu0 0.0
        %4650 = vmatpush1.xpose.msra.mxu0 0.0
        %4651 = vmatprep.subr.mxu0 0.0
        %4652 = vmatpush1.xpose.msra.mxu0 0.0
        %4653 = vmatprep.subr.mxu0 0.0
        %4654 = vmatpush1.xpose.msra.mxu0 0.0
        %4655 = vmatprep.subr.mxu0 0.0
        %4656 = vmatpush1.xpose.msra.mxu0 0.0
        %4657 = vmatprep.subr.mxu0 0.0
        %4658 = vmatpush1.xpose.msra.mxu0 0.0
        %4659 = vmatprep.subr.mxu0 0.0
        %4660 = vmatpush1.xpose.msra.mxu0 0.0
        %4661 = vmatprep.subr.mxu0 0.0
        %4662 = vmatpush1.xpose.msra.mxu0 0.0
        %4663 = vmatprep.subr.mxu0 0.0
        %4664 = vmatpush1.xpose.msra.mxu0 0.0
        %4665 = vmatprep.subr.mxu0 0.0
        %4666 = vmatpush1.xpose.msra.mxu0 0.0
        %4667 = vmatprep.subr.mxu0 0.0
        %4668 = vmatpush1.xpose.msra.mxu0 0.0
        %4669 = vmatprep.subr.mxu0 0.0
        %4670 = vmatpush1.xpose.msra.mxu0 0.0
        %4671 = vmatprep.subr.mxu0 0.0
        %4672 = vmatpush1.xpose.msra.mxu0 0.0
        %4673 = vmatprep.subr.mxu0 0.0
        %4674 = vmatpush1.xpose.msra.mxu0 0.0
        %4675 = vmatprep.subr.mxu0 0.0
        %4676 = vmatpush1.xpose.msra.mxu0 0.0
        %4677 = vmatprep.subr.mxu0 0.0
        %4678 = vmatpush1.xpose.msra.mxu0 0.0
        %4679 = vmatprep.subr.mxu0 0.0
        %4680 = vmatpush1.xpose.msra.mxu0 0.0
        %4681 = vmatprep.subr.mxu0 0.0
        %4682 = vmatpush1.xpose.msra.mxu0 0.0
        %4683 = vmatprep.subr.mxu0 0.0
        %4684 = vmatpush1.xpose.msra.mxu0 0.0
        %4685 = vmatprep.subr.mxu0 0.0
        %4686 = vmatpush1.xpose.msra.mxu0 0.0
        %4687 = vmatprep.subr.mxu0 0.0
        %4688 = vmatpush1.xpose.msra.mxu0 0.0
        %4689 = vmatprep.subr.mxu0 0.0
        %4690 = vmatpush1.xpose.msra.mxu0 0.0
        %4691 = vmatprep.subr.mxu0 0.0
        %4692 = vmatpush1.xpose.msra.mxu0 0.0
        %4693 = vmatprep.subr.mxu0 0.0
        %4694 = vmatpush1.xpose.msra.mxu0 0.0
        %4695 = vmatprep.subr.mxu0 0.0
        %4696 = vmatpush1.xpose.msra.mxu0 0.0
        %4697 = vmatprep.mubr.f32.mxu0 0.0
        %v4698 = vand.u32 %v4548, 4294901760
        %4699 = vmatmul.mubr.f32.gmra.mrb[0].mxu0 %v4698
        %v4700 = vpop.f32.mrb[0].mxu0
        %v4701 = vadd.f32 %v4625, %v4700
        %v4702 = vpop.f32.mrb[0].mxu0
        %4703 = vdwg.mxu0
        %4704 = vmatprep.subr.mxu0 0.0
        %v4705 = vand.u32 %v4550, 4294901760
        %v4706 = vsub.f32 %v4550, %v4705
        %4707 = vmatpush1.xpose.msra.mxu0 %v4706
        %4708 = vmatprep.subr.mxu0 0.0
        %4709 = vmatpush1.xpose.msra.mxu0 0.0
        %4710 = vmatprep.subr.mxu0 0.0
        %4711 = vmatpush1.xpose.msra.mxu0 0.0
        %4712 = vmatprep.subr.mxu0 0.0
        %4713 = vmatpush1.xpose.msra.mxu0 0.0
        %4714 = vmatprep.subr.mxu0 0.0
        %4715 = vmatpush1.xpose.msra.mxu0 0.0
        %4716 = vmatprep.subr.mxu0 0.0
        %4717 = vmatpush1.xpose.msra.mxu0 0.0
        %4718 = vmatprep.subr.mxu0 0.0
        %4719 = vmatpush1.xpose.msra.mxu0 0.0
        %4720 = vmatprep.subr.mxu0 0.0
        %4721 = vmatpush1.xpose.msra.mxu0 0.0
        %4722 = vmatprep.subr.mxu0 0.0
        %4723 = vmatpush1.xpose.msra.mxu0 0.0
        %4724 = vmatprep.subr.mxu0 0.0
        %4725 = vmatpush1.xpose.msra.mxu0 0.0
        %4726 = vmatprep.subr.mxu0 0.0
        %4727 = vmatpush1.xpose.msra.mxu0 0.0
        %4728 = vmatprep.subr.mxu0 0.0
        %4729 = vmatpush1.xpose.msra.mxu0 0.0
        %4730 = vmatprep.subr.mxu0 0.0
        %4731 = vmatpush1.xpose.msra.mxu0 0.0
        %4732 = vmatprep.subr.mxu0 0.0
        %4733 = vmatpush1.xpose.msra.mxu0 0.0
        %4734 = vmatprep.subr.mxu0 0.0
        %4735 = vmatpush1.xpose.msra.mxu0 0.0
        %4736 = vmatprep.subr.mxu0 0.0
        %4737 = vmatpush1.xpose.msra.mxu0 0.0
        %4738 = vmatprep.subr.mxu0 0.0
        %4739 = vmatpush1.xpose.msra.mxu0 0.0
        %4740 = vmatprep.subr.mxu0 0.0
        %4741 = vmatpush1.xpose.msra.mxu0 0.0
        %4742 = vmatprep.subr.mxu0 0.0
        %4743 = vmatpush1.xpose.msra.mxu0 0.0
        %4744 = vmatprep.subr.mxu0 0.0
        %4745 = vmatpush1.xpose.msra.mxu0 0.0
        %4746 = vmatprep.subr.mxu0 0.0
        %4747 = vmatpush1.xpose.msra.mxu0 0.0
        %4748 = vmatprep.subr.mxu0 0.0
        %4749 = vmatpush1.xpose.msra.mxu0 0.0
        %4750 = vmatprep.subr.mxu0 0.0
        %4751 = vmatpush1.xpose.msra.mxu0 0.0
        %4752 = vmatprep.subr.mxu0 0.0
        %4753 = vmatpush1.xpose.msra.mxu0 0.0
        %4754 = vmatprep.subr.mxu0 0.0
        %4755 = vmatpush1.xpose.msra.mxu0 0.0
        %4756 = vmatprep.subr.mxu0 0.0
        %4757 = vmatpush1.xpose.msra.mxu0 0.0
        %4758 = vmatprep.subr.mxu0 0.0
        %4759 = vmatpush1.xpose.msra.mxu0 0.0
        %4760 = vmatprep.subr.mxu0 0.0
        %4761 = vmatpush1.xpose.msra.mxu0 0.0
        %4762 = vmatprep.subr.mxu0 0.0
        %4763 = vmatpush1.xpose.msra.mxu0 0.0
        %4764 = vmatprep.subr.mxu0 0.0
        %4765 = vmatpush1.xpose.msra.mxu0 0.0
        %4766 = vmatprep.subr.mxu0 0.0
        %4767 = vmatpush1.xpose.msra.mxu0 0.0
        %4768 = vmatprep.subr.mxu0 0.0
        %4769 = vmatpush1.xpose.msra.mxu0 0.0
        %4770 = vmatprep.mubr.f32.mxu0 0.0
        %v4771 = vand.u32 %v4548, 4294901760
        %v4772 = vsub.f32 %v4548, %v4771
        %4773 = vmatmul.mubr.f32.gmra.mrb[0].mxu0 %v4772
        %v4774 = vpop.f32.mrb[0].mxu0
        %v4775 = vadd.f32 %v4701, %v4774
        %v4776 = vpop.f32.mrb[0].mxu0
        %4777 = vdwg.mxu0
        %4778 = vmatprep.subr.mxu0 0.0
        %v4779 = vand.u32 %v4550, 4294901760
        %4780 = vmatpush1.xpose.msra.mxu0 %v4779
        %4781 = vmatprep.subr.mxu0 0.0
        %4782 = vmatpush1.xpose.msra.mxu0 0.0
        %4783 = vmatprep.subr.mxu0 0.0
        %4784 = vmatpush1.xpose.msra.mxu0 0.0
        %4785 = vmatprep.subr.mxu0 0.0
        %4786 = vmatpush1.xpose.msra.mxu0 0.0
        %4787 = vmatprep.subr.mxu0 0.0
        %4788 = vmatpush1.xpose.msra.mxu0 0.0
        %4789 = vmatprep.subr.mxu0 0.0
        %4790 = vmatpush1.xpose.msra.mxu0 0.0
        %4791 = vmatprep.subr.mxu0 0.0
        %4792 = vmatpush1.xpose.msra.mxu0 0.0
        %4793 = vmatprep.subr.mxu0 0.0
        %4794 = vmatpush1.xpose.msra.mxu0 0.0
        %4795 = vmatprep.subr.mxu0 0.0
        %4796 = vmatpush1.xpose.msra.mxu0 0.0
        %4797 = vmatprep.subr.mxu0 0.0
        %4798 = vmatpush1.xpose.msra.mxu0 0.0
        %4799 = vmatprep.subr.mxu0 0.0
        %4800 = vmatpush1.xpose.msra.mxu0 0.0
        %4801 = vmatprep.subr.mxu0 0.0
        %4802 = vmatpush1.xpose.msra.mxu0 0.0
        %4803 = vmatprep.subr.mxu0 0.0
        %4804 = vmatpush1.xpose.msra.mxu0 0.0
        %4805 = vmatprep.subr.mxu0 0.0
        %4806 = vmatpush1.xpose.msra.mxu0 0.0
        %4807 = vmatprep.subr.mxu0 0.0
        %4808 = vmatpush1.xpose.msra.mxu0 0.0
        %4809 = vmatprep.subr.mxu0 0.0
        %4810 = vmatpush1.xpose.msra.mxu0 0.0
        %4811 = vmatprep.subr.mxu0 0.0
        %4812 = vmatpush1.xpose.msra.mxu0 0.0
        %4813 = vmatprep.subr.mxu0 0.0
        %4814 = vmatpush1.xpose.msra.mxu0 0.0
        %4815 = vmatprep.subr.mxu0 0.0
        %4816 = vmatpush1.xpose.msra.mxu0 0.0
        %4817 = vmatprep.subr.mxu0 0.0
        %4818 = vmatpush1.xpose.msra.mxu0 0.0
        %4819 = vmatprep.subr.mxu0 0.0
        %4820 = vmatpush1.xpose.msra.mxu0 0.0
        %4821 = vmatprep.subr.mxu0 0.0
        %4822 = vmatpush1.xpose.msra.mxu0 0.0
        %4823 = vmatprep.subr.mxu0 0.0
        %4824 = vmatpush1.xpose.msra.mxu0 0.0
        %4825 = vmatprep.subr.mxu0 0.0
        %4826 = vmatpush1.xpose.msra.mxu0 0.0
        %4827 = vmatprep.subr.mxu0 0.0
        %4828 = vmatpush1.xpose.msra.mxu0 0.0
        %4829 = vmatprep.subr.mxu0 0.0
        %4830 = vmatpush1.xpose.msra.mxu0 0.0
        %4831 = vmatprep.subr.mxu0 0.0
        %4832 = vmatpush1.xpose.msra.mxu0 0.0
        %4833 = vmatprep.subr.mxu0 0.0
        %4834 = vmatpush1.xpose.msra.mxu0 0.0
        %4835 = vmatprep.subr.mxu0 0.0
        %4836 = vmatpush1.xpose.msra.mxu0 0.0
        %4837 = vmatprep.subr.mxu0 0.0
        %4838 = vmatpush1.xpose.msra.mxu0 0.0
        %4839 = vmatprep.subr.mxu0 0.0
        %4840 = vmatpush1.xpose.msra.mxu0 0.0
        %4841 = vmatprep.subr.mxu0 0.0
        %4842 = vmatpush1.xpose.msra.mxu0 0.0
        %4843 = vmatprep.mubr.f32.mxu0 0.0
        %v4844 = vand.u32 %v4548, 4294901760
        %v4845 = vsub.f32 %v4548, %v4844
        %v4846 = vand.u32 %v4845, 4294901760
        %4847 = vmatmul.mubr.f32.gmra.mrb[0].mxu0 %v4846
        %v4848 = vpop.f32.mrb[0].mxu0
        %v4849 = vadd.f32 %v4775, %v4848
        %v4850 = vpop.f32.mrb[0].mxu0
        %4851 = vdwg.mxu0
        %4852 = vmatprep.subr.mxu0 0.0
        %v4853 = vand.u32 %v4550, 4294901760
        %v4854 = vsub.f32 %v4550, %v4853
        %v4855 = vand.u32 %v4854, 4294901760
        %4856 = vmatpush1.xpose.msra.mxu0 %v4855
        %4857 = vmatprep.subr.mxu0 0.0
        %4858 = vmatpush1.xpose.msra.mxu0 0.0
        %4859 = vmatprep.subr.mxu0 0.0
        %4860 = vmatpush1.xpose.msra.mxu0 0.0
        %4861 = vmatprep.subr.mxu0 0.0
        %4862 = vmatpush1.xpose.msra.mxu0 0.0
        %4863 = vmatprep.subr.mxu0 0.0
        %4864 = vmatpush1.xpose.msra.mxu0 0.0
        %4865 = vmatprep.subr.mxu0 0.0
        %4866 = vmatpush1.xpose.msra.mxu0 0.0
        %4867 = vmatprep.subr.mxu0 0.0
        %4868 = vmatpush1.xpose.msra.mxu0 0.0
        %4869 = vmatprep.subr.mxu0 0.0
        %4870 = vmatpush1.xpose.msra.mxu0 0.0
        %4871 = vmatprep.subr.mxu0 0.0
        %4872 = vmatpush1.xpose.msra.mxu0 0.0
        %4873 = vmatprep.subr.mxu0 0.0
        %4874 = vmatpush1.xpose.msra.mxu0 0.0
        %4875 = vmatprep.subr.mxu0 0.0
        %4876 = vmatpush1.xpose.msra.mxu0 0.0
        %4877 = vmatprep.subr.mxu0 0.0
        %4878 = vmatpush1.xpose.msra.mxu0 0.0
        %4879 = vmatprep.subr.mxu0 0.0
        %4880 = vmatpush1.xpose.msra.mxu0 0.0
        %4881 = vmatprep.subr.mxu0 0.0
        %4882 = vmatpush1.xpose.msra.mxu0 0.0
        %4883 = vmatprep.subr.mxu0 0.0
        %4884 = vmatpush1.xpose.msra.mxu0 0.0
        %4885 = vmatprep.subr.mxu0 0.0
        %4886 = vmatpush1.xpose.msra.mxu0 0.0
        %4887 = vmatprep.subr.mxu0 0.0
        %4888 = vmatpush1.xpose.msra.mxu0 0.0
        %4889 = vmatprep.subr.mxu0 0.0
        %4890 = vmatpush1.xpose.msra.mxu0 0.0
        %4891 = vmatprep.subr.mxu0 0.0
        %4892 = vmatpush1.xpose.msra.mxu0 0.0
        %4893 = vmatprep.subr.mxu0 0.0
        %4894 = vmatpush1.xpose.msra.mxu0 0.0
        %4895 = vmatprep.subr.mxu0 0.0
        %4896 = vmatpush1.xpose.msra.mxu0 0.0
        %4897 = vmatprep.subr.mxu0 0.0
        %4898 = vmatpush1.xpose.msra.mxu0 0.0
        %4899 = vmatprep.subr.mxu0 0.0
        %4900 = vmatpush1.xpose.msra.mxu0 0.0
        %4901 = vmatprep.subr.mxu0 0.0
        %4902 = vmatpush1.xpose.msra.mxu0 0.0
        %4903 = vmatprep.subr.mxu0 0.0
        %4904 = vmatpush1.xpose.msra.mxu0 0.0
        %4905 = vmatprep.subr.mxu0 0.0
        %4906 = vmatpush1.xpose.msra.mxu0 0.0
        %4907 = vmatprep.subr.mxu0 0.0
        %4908 = vmatpush1.xpose.msra.mxu0 0.0
        %4909 = vmatprep.subr.mxu0 0.0
        %4910 = vmatpush1.xpose.msra.mxu0 0.0
        %4911 = vmatprep.subr.mxu0 0.0
        %4912 = vmatpush1.xpose.msra.mxu0 0.0
        %4913 = vmatprep.subr.mxu0 0.0
        %4914 = vmatpush1.xpose.msra.mxu0 0.0
        %4915 = vmatprep.subr.mxu0 0.0
        %4916 = vmatpush1.xpose.msra.mxu0 0.0
        %4917 = vmatprep.subr.mxu0 0.0
        %4918 = vmatpush1.xpose.msra.mxu0 0.0
        %4919 = vmatprep.mubr.f32.mxu0 0.0
        %v4920 = vand.u32 %v4548, 4294901760
        %4921 = vmatmul.mubr.f32.gmra.mrb[0].mxu0 %v4920
        %v4922 = vpop.f32.mrb[0].mxu0
        %v4923 = vadd.f32 %v4849, %v4922
        %v4924 = vpop.f32.mrb[0].mxu0
        %4925 = vdwg.mxu0
        %4926 = vmatprep.subr.mxu0 0.0
        %v4927 = vand.u32 %v4550, 4294901760
        %4928 = vmatpush1.xpose.msra.mxu0 %v4927
        %4929 = vmatprep.subr.mxu0 0.0
        %4930 = vmatpush1.xpose.msra.mxu0 0.0
        %4931 = vmatprep.subr.mxu0 0.0
        %4932 = vmatpush1.xpose.msra.mxu0 0.0
        %4933 = vmatprep.subr.mxu0 0.0
        %4934 = vmatpush1.xpose.msra.mxu0 0.0
        %4935 = vmatprep.subr.mxu0 0.0
        %4936 = vmatpush1.xpose.msra.mxu0 0.0
        %4937 = vmatprep.subr.mxu0 0.0
        %4938 = vmatpush1.xpose.msra.mxu0 0.0
        %4939 = vmatprep.subr.mxu0 0.0
        %4940 = vmatpush1.xpose.msra.mxu0 0.0
        %4941 = vmatprep.subr.mxu0 0.0
        %4942 = vmatpush1.xpose.msra.mxu0 0.0
        %4943 = vmatprep.subr.mxu0 0.0
        %4944 = vmatpush1.xpose.msra.mxu0 0.0
        %4945 = vmatprep.subr.mxu0 0.0
        %4946 = vmatpush1.xpose.msra.mxu0 0.0
        %4947 = vmatprep.subr.mxu0 0.0
        %4948 = vmatpush1.xpose.msra.mxu0 0.0
        %4949 = vmatprep.subr.mxu0 0.0
        %4950 = vmatpush1.xpose.msra.mxu0 0.0
        %4951 = vmatprep.subr.mxu0 0.0
        %4952 = vmatpush1.xpose.msra.mxu0 0.0
        %4953 = vmatprep.subr.mxu0 0.0
        %4954 = vmatpush1.xpose.msra.mxu0 0.0
        %4955 = vmatprep.subr.mxu0 0.0
        %4956 = vmatpush1.xpose.msra.mxu0 0.0
        %4957 = vmatprep.subr.mxu0 0.0
        %4958 = vmatpush1.xpose.msra.mxu0 0.0
        %4959 = vmatprep.subr.mxu0 0.0
        %4960 = vmatpush1.xpose.msra.mxu0 0.0
        %4961 = vmatprep.subr.mxu0 0.0
        %4962 = vmatpush1.xpose.msra.mxu0 0.0
        %4963 = vmatprep.subr.mxu0 0.0
        %4964 = vmatpush1.xpose.msra.mxu0 0.0
        %4965 = vmatprep.subr.mxu0 0.0
        %4966 = vmatpush1.xpose.msra.mxu0 0.0
        %4967 = vmatprep.subr.mxu0 0.0
        %4968 = vmatpush1.xpose.msra.mxu0 0.0
        %4969 = vmatprep.subr.mxu0 0.0
        %4970 = vmatpush1.xpose.msra.mxu0 0.0
        %4971 = vmatprep.subr.mxu0 0.0
        %4972 = vmatpush1.xpose.msra.mxu0 0.0
        %4973 = vmatprep.subr.mxu0 0.0
        %4974 = vmatpush1.xpose.msra.mxu0 0.0
        %4975 = vmatprep.subr.mxu0 0.0
        %4976 = vmatpush1.xpose.msra.mxu0 0.0
        %4977 = vmatprep.subr.mxu0 0.0
        %4978 = vmatpush1.xpose.msra.mxu0 0.0
        %4979 = vmatprep.subr.mxu0 0.0
        %4980 = vmatpush1.xpose.msra.mxu0 0.0
        %4981 = vmatprep.subr.mxu0 0.0
        %4982 = vmatpush1.xpose.msra.mxu0 0.0
        %4983 = vmatprep.subr.mxu0 0.0
        %4984 = vmatpush1.xpose.msra.mxu0 0.0
        %4985 = vmatprep.subr.mxu0 0.0
        %4986 = vmatpush1.xpose.msra.mxu0 0.0
        %4987 = vmatprep.subr.mxu0 0.0
        %4988 = vmatpush1.xpose.msra.mxu0 0.0
        %4989 = vmatprep.subr.mxu0 0.0
        %4990 = vmatpush1.xpose.msra.mxu0 0.0
        %4991 = vmatprep.mubr.f32.mxu0 0.0
        %v4992 = vand.u32 %v4548, 4294901760
        %4993 = vmatmul.mubr.f32.gmra.mrb[0].mxu0 %v4992
        %v4994 = vpop.f32.mrb[0].mxu0
        %v4995 = vadd.f32 %v4923, %v4994
        %v4996 = vpop.f32.mrb[0].mxu0
        %4997 = vdwg.mxu0
        %v4998 = vsel %vm1791, %v4995, -inf
        %v4999 = vsel %vm2246, %v4998, -inf
        %5000 = vmax.xlane.f32.xlu0 %v4999
        %v5001 = vpop.xlane.xlu0 %5000
        %v5002 = vsub.f32 %v4998, %v5001
        %v5003 = vmul.f32 %v5002, 1.442695
        %v5004 = vpow.pop %v5003
        %v5005 = vsel %vm2246, %v5004, 0.0
        %5006 = vadd.xlane.f32.xlu0 %v5005
        %v5007 = vpop.xlane.xlu0 %5006
        %v5008 = vrcp.pop %v5007
        %v5009 = vmul.f32 %v5004, %v5008
        %5010 = vrot.lane.b32.xlu0 %v1784, 32
        %v5011 = vpop.permute.xlu0 %5010
        %v5014 = vsel %vm2246, %v5009, 0
        %5016 = vmatprep.subr.mxu0 0.0
        %v5017 = vand.u32 %v5011, 4294901760
        %5018 = vmatpush1.msra.mxu0 %v5017
        %5019 = vmatprep.subr.mxu0 0.0
        %5020 = vmatpush1.msra.mxu0 0.0
        %5021 = vmatprep.subr.mxu0 0.0
        %5022 = vmatpush1.msra.mxu0 0.0
        %5023 = vmatprep.subr.mxu0 0.0
        %5024 = vmatpush1.msra.mxu0 0.0
        %5025 = vmatprep.subr.mxu0 0.0
        %5026 = vmatpush1.msra.mxu0 0.0
        %5027 = vmatprep.subr.mxu0 0.0
        %5028 = vmatpush1.msra.mxu0 0.0
        %5029 = vmatprep.subr.mxu0 0.0
        %5030 = vmatpush1.msra.mxu0 0.0
        %5031 = vmatprep.subr.mxu0 0.0
        %5032 = vmatpush1.msra.mxu0 0.0
        %5033 = vmatprep.subr.mxu0 0.0
        %5034 = vmatpush1.msra.mxu0 0.0
        %5035 = vmatprep.subr.mxu0 0.0
        %5036 = vmatpush1.msra.mxu0 0.0
        %5037 = vmatprep.subr.mxu0 0.0
        %5038 = vmatpush1.msra.mxu0 0.0
        %5039 = vmatprep.subr.mxu0 0.0
        %5040 = vmatpush1.msra.mxu0 0.0
        %5041 = vmatprep.subr.mxu0 0.0
        %5042 = vmatpush1.msra.mxu0 0.0
        %5043 = vmatprep.subr.mxu0 0.0
        %5044 = vmatpush1.msra.mxu0 0.0
        %5045 = vmatprep.subr.mxu0 0.0
        %5046 = vmatpush1.msra.mxu0 0.0
        %5047 = vmatprep.subr.mxu0 0.0
        %5048 = vmatpush1.msra.mxu0 0.0
        %5049 = vmatprep.subr.mxu0 0.0
        %5050 = vmatpush1.msra.mxu0 0.0
        %5051 = vmatprep.subr.mxu0 0.0
        %5052 = vmatpush1.msra.mxu0 0.0
        %5053 = vmatprep.subr.mxu0 0.0
        %5054 = vmatpush1.msra.mxu0 0.0
        %5055 = vmatprep.subr.mxu0 0.0
        %5056 = vmatpush1.msra.mxu0 0.0
        %5057 = vmatprep.subr.mxu0 0.0
        %5058 = vmatpush1.msra.mxu0 0.0
        %5059 = vmatprep.subr.mxu0 0.0
        %5060 = vmatpush1.msra.mxu0 0.0
        %5061 = vmatprep.subr.mxu0 0.0
        %5062 = vmatpush1.msra.mxu0 0.0
        %5063 = vmatprep.subr.mxu0 0.0
        %5064 = vmatpush1.msra.mxu0 0.0
        %5065 = vmatprep.subr.mxu0 0.0
        %5066 = vmatpush1.msra.mxu0 0.0
        %5067 = vmatprep.subr.mxu0 0.0
        %5068 = vmatpush1.msra.mxu0 0.0
        %5069 = vmatprep.subr.mxu0 0.0
        %5070 = vmatpush1.msra.mxu0 0.0
        %5071 = vmatprep.subr.mxu0 0.0
        %5072 = vmatpush1.msra.mxu0 0.0
        %5073 = vmatprep.subr.mxu0 0.0
        %5074 = vmatpush1.msra.mxu0 0.0
        %5075 = vmatprep.subr.mxu0 0.0
        %5076 = vmatpush1.msra.mxu0 0.0
        %5077 = vmatprep.subr.mxu0 0.0
        %5078 = vmatpush1.msra.mxu0 0.0
        %5079 = vmatprep.subr.mxu0 0.0
        %5080 = vmatpush1.msra.mxu0 0.0
        %5081 = vmatprep.mubr.f32.mxu0 0.0
        %v5082 = vand.u32 %v5014, 4294901760
        %v5083 = vsub.f32 %v5014, %v5082
        %v5084 = vand.u32 %v5083, 4294901760
        %v5085 = vsub.f32 %v5083, %v5084
        %v5086 = vand.u32 %v5085, 4294901760
        %5087 = vmatmul.mubr.f32.gmra.mrb[0].mxu0 %v5086
        %v5088 = vpop.f32.mrb[0].mxu0
        %v5089 = vadd.f32 0.0, %v5088
        %v5090 = vpop.f32.mrb[0].mxu0
        %5091 = vdwg.mxu0
        %5092 = vmatprep.subr.mxu0 0.0
        %v5093 = vand.u32 %v5011, 4294901760
        %v5094 = vsub.f32 %v5011, %v5093
        %v5095 = vand.u32 %v5094, 4294901760
        %v5096 = vsub.f32 %v5094, %v5095
        %v5097 = vand.u32 %v5096, 4294901760
        %5098 = vmatpush1.msra.mxu0 %v5097
        %5099 = vmatprep.subr.mxu0 0.0
        %5100 = vmatpush1.msra.mxu0 0.0
        %5101 = vmatprep.subr.mxu0 0.0
        %5102 = vmatpush1.msra.mxu0 0.0
        %5103 = vmatprep.subr.mxu0 0.0
        %5104 = vmatpush1.msra.mxu0 0.0
        %5105 = vmatprep.subr.mxu0 0.0
        %5106 = vmatpush1.msra.mxu0 0.0
        %5107 = vmatprep.subr.mxu0 0.0
        %5108 = vmatpush1.msra.mxu0 0.0
        %5109 = vmatprep.subr.mxu0 0.0
        %5110 = vmatpush1.msra.mxu0 0.0
        %5111 = vmatprep.subr.mxu0 0.0
        %5112 = vmatpush1.msra.mxu0 0.0
        %5113 = vmatprep.subr.mxu0 0.0
        %5114 = vmatpush1.msra.mxu0 0.0
        %5115 = vmatprep.subr.mxu0 0.0
        %5116 = vmatpush1.msra.mxu0 0.0
        %5117 = vmatprep.subr.mxu0 0.0
        %5118 = vmatpush1.msra.mxu0 0.0
        %5119 = vmatprep.subr.mxu0 0.0
        %5120 = vmatpush1.msra.mxu0 0.0
        %5121 = vmatprep.subr.mxu0 0.0
        %5122 = vmatpush1.msra.mxu0 0.0
        %5123 = vmatprep.subr.mxu0 0.0
        %5124 = vmatpush1.msra.mxu0 0.0
        %5125 = vmatprep.subr.mxu0 0.0
        %5126 = vmatpush1.msra.mxu0 0.0
        %5127 = vmatprep.subr.mxu0 0.0
        %5128 = vmatpush1.msra.mxu0 0.0
        %5129 = vmatprep.subr.mxu0 0.0
        %5130 = vmatpush1.msra.mxu0 0.0
        %5131 = vmatprep.subr.mxu0 0.0
        %5132 = vmatpush1.msra.mxu0 0.0
        %5133 = vmatprep.subr.mxu0 0.0
        %5134 = vmatpush1.msra.mxu0 0.0
        %5135 = vmatprep.subr.mxu0 0.0
        %5136 = vmatpush1.msra.mxu0 0.0
        %5137 = vmatprep.subr.mxu0 0.0
        %5138 = vmatpush1.msra.mxu0 0.0
        %5139 = vmatprep.subr.mxu0 0.0
        %5140 = vmatpush1.msra.mxu0 0.0
        %5141 = vmatprep.subr.mxu0 0.0
        %5142 = vmatpush1.msra.mxu0 0.0
        %5143 = vmatprep.subr.mxu0 0.0
        %5144 = vmatpush1.msra.mxu0 0.0
        %5145 = vmatprep.subr.mxu0 0.0
        %5146 = vmatpush1.msra.mxu0 0.0
        %5147 = vmatprep.subr.mxu0 0.0
        %5148 = vmatpush1.msra.mxu0 0.0
        %5149 = vmatprep.subr.mxu0 0.0
        %5150 = vmatpush1.msra.mxu0 0.0
        %5151 = vmatprep.subr.mxu0 0.0
        %5152 = vmatpush1.msra.mxu0 0.0
        %5153 = vmatprep.subr.mxu0 0.0
        %5154 = vmatpush1.msra.mxu0 0.0
        %5155 = vmatprep.subr.mxu0 0.0
        %5156 = vmatpush1.msra.mxu0 0.0
        %5157 = vmatprep.subr.mxu0 0.0
        %5158 = vmatpush1.msra.mxu0 0.0
        %5159 = vmatprep.subr.mxu0 0.0
        %5160 = vmatpush1.msra.mxu0 0.0
        %5161 = vmatprep.mubr.f32.mxu0 0.0
        %v5162 = vand.u32 %v5014, 4294901760
        %5163 = vmatmul.mubr.f32.gmra.mrb[0].mxu0 %v5162
        %v5164 = vpop.f32.mrb[0].mxu0
        %v5165 = vadd.f32 %v5089, %v5164
        %v5166 = vpop.f32.mrb[0].mxu0
        %5167 = vdwg.mxu0
        %5168 = vmatprep.subr.mxu0 0.0
        %v5169 = vand.u32 %v5011, 4294901760
        %v5170 = vsub.f32 %v5011, %v5169
        %5171 = vmatpush1.msra.mxu0 %v5170
        %5172 = vmatprep.subr.mxu0 0.0
        %5173 = vmatpush1.msra.mxu0 0.0
        %5174 = vmatprep.subr.mxu0 0.0
        %5175 = vmatpush1.msra.mxu0 0.0
        %5176 = vmatprep.subr.mxu0 0.0
        %5177 = vmatpush1.msra.mxu0 0.0
        %5178 = vmatprep.subr.mxu0 0.0
        %5179 = vmatpush1.msra.mxu0 0.0
        %5180 = vmatprep.subr.mxu0 0.0
        %5181 = vmatpush1.msra.mxu0 0.0
        %5182 = vmatprep.subr.mxu0 0.0
        %5183 = vmatpush1.msra.mxu0 0.0
        %5184 = vmatprep.subr.mxu0 0.0
        %5185 = vmatpush1.msra.mxu0 0.0
        %5186 = vmatprep.subr.mxu0 0.0
        %5187 = vmatpush1.msra.mxu0 0.0
        %5188 = vmatprep.subr.mxu0 0.0
        %5189 = vmatpush1.msra.mxu0 0.0
        %5190 = vmatprep.subr.mxu0 0.0
        %5191 = vmatpush1.msra.mxu0 0.0
        %5192 = vmatprep.subr.mxu0 0.0
        %5193 = vmatpush1.msra.mxu0 0.0
        %5194 = vmatprep.subr.mxu0 0.0
        %5195 = vmatpush1.msra.mxu0 0.0
        %5196 = vmatprep.subr.mxu0 0.0
        %5197 = vmatpush1.msra.mxu0 0.0
        %5198 = vmatprep.subr.mxu0 0.0
        %5199 = vmatpush1.msra.mxu0 0.0
        %5200 = vmatprep.subr.mxu0 0.0
        %5201 = vmatpush1.msra.mxu0 0.0
        %5202 = vmatprep.subr.mxu0 0.0
        %5203 = vmatpush1.msra.mxu0 0.0
        %5204 = vmatprep.subr.mxu0 0.0
        %5205 = vmatpush1.msra.mxu0 0.0
        %5206 = vmatprep.subr.mxu0 0.0
        %5207 = vmatpush1.msra.mxu0 0.0
        %5208 = vmatprep.subr.mxu0 0.0
        %5209 = vmatpush1.msra.mxu0 0.0
        %5210 = vmatprep.subr.mxu0 0.0
        %5211 = vmatpush1.msra.mxu0 0.0
        %5212 = vmatprep.subr.mxu0 0.0
        %5213 = vmatpush1.msra.mxu0 0.0
        %5214 = vmatprep.subr.mxu0 0.0
        %5215 = vmatpush1.msra.mxu0 0.0
        %5216 = vmatprep.subr.mxu0 0.0
        %5217 = vmatpush1.msra.mxu0 0.0
        %5218 = vmatprep.subr.mxu0 0.0
        %5219 = vmatpush1.msra.mxu0 0.0
        %5220 = vmatprep.subr.mxu0 0.0
        %5221 = vmatpush1.msra.mxu0 0.0
        %5222 = vmatprep.subr.mxu0 0.0
        %5223 = vmatpush1.msra.mxu0 0.0
        %5224 = vmatprep.subr.mxu0 0.0
        %5225 = vmatpush1.msra.mxu0 0.0
        %5226 = vmatprep.subr.mxu0 0.0
        %5227 = vmatpush1.msra.mxu0 0.0
        %5228 = vmatprep.subr.mxu0 0.0
        %5229 = vmatpush1.msra.mxu0 0.0
        %5230 = vmatprep.subr.mxu0 0.0
        %5231 = vmatpush1.msra.mxu0 0.0
        %5232 = vmatprep.subr.mxu0 0.0
        %5233 = vmatpush1.msra.mxu0 0.0
        %5234 = vmatprep.mubr.f32.mxu0 0.0
        %v5235 = vand.u32 %v5014, 4294901760
        %v5236 = vsub.f32 %v5014, %v5235
        %5237 = vmatmul.mubr.f32.gmra.mrb[0].mxu0 %v5236
        %v5238 = vpop.f32.mrb[0].mxu0
        %v5239 = vadd.f32 %v5165, %v5238
        %v5240 = vpop.f32.mrb[0].mxu0
        %5241 = vdwg.mxu0
        %5242 = vmatprep.subr.mxu0 0.0
        %v5243 = vand.u32 %v5011, 4294901760
        %5244 = vmatpush1.msra.mxu0 %v5243
        %5245 = vmatprep.subr.mxu0 0.0
        %5246 = vmatpush1.msra.mxu0 0.0
        %5247 = vmatprep.subr.mxu0 0.0
        %5248 = vmatpush1.msra.mxu0 0.0
        %5249 = vmatprep.subr.mxu0 0.0
        %5250 = vmatpush1.msra.mxu0 0.0
        %5251 = vmatprep.subr.mxu0 0.0
        %5252 = vmatpush1.msra.mxu0 0.0
        %5253 = vmatprep.subr.mxu0 0.0
        %5254 = vmatpush1.msra.mxu0 0.0
        %5255 = vmatprep.subr.mxu0 0.0
        %5256 = vmatpush1.msra.mxu0 0.0
        %5257 = vmatprep.subr.mxu0 0.0
        %5258 = vmatpush1.msra.mxu0 0.0
        %5259 = vmatprep.subr.mxu0 0.0
        %5260 = vmatpush1.msra.mxu0 0.0
        %5261 = vmatprep.subr.mxu0 0.0
        %5262 = vmatpush1.msra.mxu0 0.0
        %5263 = vmatprep.subr.mxu0 0.0
        %5264 = vmatpush1.msra.mxu0 0.0
        %5265 = vmatprep.subr.mxu0 0.0
        %5266 = vmatpush1.msra.mxu0 0.0
        %5267 = vmatprep.subr.mxu0 0.0
        %5268 = vmatpush1.msra.mxu0 0.0
        %5269 = vmatprep.subr.mxu0 0.0
        %5270 = vmatpush1.msra.mxu0 0.0
        %5271 = vmatprep.subr.mxu0 0.0
        %5272 = vmatpush1.msra.mxu0 0.0
        %5273 = vmatprep.subr.mxu0 0.0
        %5274 = vmatpush1.msra.mxu0 0.0
        %5275 = vmatprep.subr.mxu0 0.0
        %5276 = vmatpush1.msra.mxu0 0.0
        %5277 = vmatprep.subr.mxu0 0.0
        %5278 = vmatpush1.msra.mxu0 0.0
        %5279 = vmatprep.subr.mxu0 0.0
        %5280 = vmatpush1.msra.mxu0 0.0
        %5281 = vmatprep.subr.mxu0 0.0
        %5282 = vmatpush1.msra.mxu0 0.0
        %5283 = vmatprep.subr.mxu0 0.0
        %5284 = vmatpush1.msra.mxu0 0.0
        %5285 = vmatprep.subr.mxu0 0.0
        %5286 = vmatpush1.msra.mxu0 0.0
        %5287 = vmatprep.subr.mxu0 0.0
        %5288 = vmatpush1.msra.mxu0 0.0
        %5289 = vmatprep.subr.mxu0 0.0
        %5290 = vmatpush1.msra.mxu0 0.0
        %5291 = vmatprep.subr.mxu0 0.0
        %5292 = vmatpush1.msra.mxu0 0.0
        %5293 = vmatprep.subr.mxu0 0.0
        %5294 = vmatpush1.msra.mxu0 0.0
        %5295 = vmatprep.subr.mxu0 0.0
        %5296 = vmatpush1.msra.mxu0 0.0
        %5297 = vmatprep.subr.mxu0 0.0
        %5298 = vmatpush1.msra.mxu0 0.0
        %5299 = vmatprep.subr.mxu0 0.0
        %5300 = vmatpush1.msra.mxu0 0.0
        %5301 = vmatprep.subr.mxu0 0.0
        %5302 = vmatpush1.msra.mxu0 0.0
        %5303 = vmatprep.subr.mxu0 0.0
        %5304 = vmatpush1.msra.mxu0 0.0
        %5305 = vmatprep.subr.mxu0 0.0
        %5306 = vmatpush1.msra.mxu0 0.0
        %5307 = vmatprep.mubr.f32.mxu0 0.0
        %v5308 = vand.u32 %v5014, 4294901760
        %v5309 = vsub.f32 %v5014, %v5308
        %v5310 = vand.u32 %v5309, 4294901760
        %5311 = vmatmul.mubr.f32.gmra.mrb[0].mxu0 %v5310
        %v5312 = vpop.f32.mrb[0].mxu0
        %v5313 = vadd.f32 %v5239, %v5312
        %v5314 = vpop.f32.mrb[0].mxu0
        %5315 = vdwg.mxu0
        %5316 = vmatprep.subr.mxu0 0.0
        %v5317 = vand.u32 %v5011, 4294901760
        %v5318 = vsub.f32 %v5011, %v5317
        %v5319 = vand.u32 %v5318, 4294901760
        %5320 = vmatpush1.msra.mxu0 %v5319
        %5321 = vmatprep.subr.mxu0 0.0
        %5322 = vmatpush1.msra.mxu0 0.0
        %5323 = vmatprep.subr.mxu0 0.0
        %5324 = vmatpush1.msra.mxu0 0.0
        %5325 = vmatprep.subr.mxu0 0.0
        %5326 = vmatpush1.msra.mxu0 0.0
        %5327 = vmatprep.subr.mxu0 0.0
        %5328 = vmatpush1.msra.mxu0 0.0
        %5329 = vmatprep.subr.mxu0 0.0
        %5330 = vmatpush1.msra.mxu0 0.0
        %5331 = vmatprep.subr.mxu0 0.0
        %5332 = vmatpush1.msra.mxu0 0.0
        %5333 = vmatprep.subr.mxu0 0.0
        %5334 = vmatpush1.msra.mxu0 0.0
        %5335 = vmatprep.subr.mxu0 0.0
        %5336 = vmatpush1.msra.mxu0 0.0
        %5337 = vmatprep.subr.mxu0 0.0
        %5338 = vmatpush1.msra.mxu0 0.0
        %5339 = vmatprep.subr.mxu0 0.0
        %5340 = vmatpush1.msra.mxu0 0.0
        %5341 = vmatprep.subr.mxu0 0.0
        %5342 = vmatpush1.msra.mxu0 0.0
        %5343 = vmatprep.subr.mxu0 0.0
        %5344 = vmatpush1.msra.mxu0 0.0
        %5345 = vmatprep.subr.mxu0 0.0
        %5346 = vmatpush1.msra.mxu0 0.0
        %5347 = vmatprep.subr.mxu0 0.0
        %5348 = vmatpush1.msra.mxu0 0.0
        %5349 = vmatprep.subr.mxu0 0.0
        %5350 = vmatpush1.msra.mxu0 0.0
        %5351 = vmatprep.subr.mxu0 0.0
        %5352 = vmatpush1.msra.mxu0 0.0
        %5353 = vmatprep.subr.mxu0 0.0
        %5354 = vmatpush1.msra.mxu0 0.0
        %5355 = vmatprep.subr.mxu0 0.0
        %5356 = vmatpush1.msra.mxu0 0.0
        %5357 = vmatprep.subr.mxu0 0.0
        %5358 = vmatpush1.msra.mxu0 0.0
        %5359 = vmatprep.subr.mxu0 0.0
        %5360 = vmatpush1.msra.mxu0 0.0
        %5361 = vmatprep.subr.mxu0 0.0
        %5362 = vmatpush1.msra.mxu0 0.0
        %5363 = vmatprep.subr.mxu0 0.0
        %5364 = vmatpush1.msra.mxu0 0.0
        %5365 = vmatprep.subr.mxu0 0.0
        %5366 = vmatpush1.msra.mxu0 0.0
        %5367 = vmatprep.subr.mxu0 0.0
        %5368 = vmatpush1.msra.mxu0 0.0
        %5369 = vmatprep.subr.mxu0 0.0
        %5370 = vmatpush1.msra.mxu0 0.0
        %5371 = vmatprep.subr.mxu0 0.0
        %5372 = vmatpush1.msra.mxu0 0.0
        %5373 = vmatprep.subr.mxu0 0.0
        %5374 = vmatpush1.msra.mxu0 0.0
        %5375 = vmatprep.subr.mxu0 0.0
        %5376 = vmatpush1.msra.mxu0 0.0
        %5377 = vmatprep.subr.mxu0 0.0
        %5378 = vmatpush1.msra.mxu0 0.0
        %5379 = vmatprep.subr.mxu0 0.0
        %5380 = vmatpush1.msra.mxu0 0.0
        %5381 = vmatprep.subr.mxu0 0.0
        %5382 = vmatpush1.msra.mxu0 0.0
        %5383 = vmatprep.mubr.f32.mxu0 0.0
        %v5384 = vand.u32 %v5014, 4294901760
        %5385 = vmatmul.mubr.f32.gmra.mrb[0].mxu0 %v5384
        %v5386 = vpop.f32.mrb[0].mxu0
        %v5387 = vadd.f32 %v5313, %v5386
        %v5388 = vpop.f32.mrb[0].mxu0
        %5389 = vdwg.mxu0
        %5390 = vmatprep.subr.mxu0 0.0
        %v5391 = vand.u32 %v5011, 4294901760
        %5392 = vmatpush1.msra.mxu0 %v5391
        %5393 = vmatprep.subr.mxu0 0.0
        %5394 = vmatpush1.msra.mxu0 0.0
        %5395 = vmatprep.subr.mxu0 0.0
        %5396 = vmatpush1.msra.mxu0 0.0
        %5397 = vmatprep.subr.mxu0 0.0
        %5398 = vmatpush1.msra.mxu0 0.0
        %5399 = vmatprep.subr.mxu0 0.0
        %5400 = vmatpush1.msra.mxu0 0.0
        %5401 = vmatprep.subr.mxu0 0.0
        %5402 = vmatpush1.msra.mxu0 0.0
        %5403 = vmatprep.subr.mxu0 0.0
        %5404 = vmatpush1.msra.mxu0 0.0
        %5405 = vmatprep.subr.mxu0 0.0
        %5406 = vmatpush1.msra.mxu0 0.0
        %5407 = vmatprep.subr.mxu0 0.0
        %5408 = vmatpush1.msra.mxu0 0.0
        %5409 = vmatprep.subr.mxu0 0.0
        %5410 = vmatpush1.msra.mxu0 0.0
        %5411 = vmatprep.subr.mxu0 0.0
        %5412 = vmatpush1.msra.mxu0 0.0
        %5413 = vmatprep.subr.mxu0 0.0
        %5414 = vmatpush1.msra.mxu0 0.0
        %5415 = vmatprep.subr.mxu0 0.0
        %5416 = vmatpush1.msra.mxu0 0.0
        %5417 = vmatprep.subr.mxu0 0.0
        %5418 = vmatpush1.msra.mxu0 0.0
        %5419 = vmatprep.subr.mxu0 0.0
        %5420 = vmatpush1.msra.mxu0 0.0
        %5421 = vmatprep.subr.mxu0 0.0
        %5422 = vmatpush1.msra.mxu0 0.0
        %5423 = vmatprep.subr.mxu0 0.0
        %5424 = vmatpush1.msra.mxu0 0.0
        %5425 = vmatprep.subr.mxu0 0.0
        %5426 = vmatpush1.msra.mxu0 0.0
        %5427 = vmatprep.subr.mxu0 0.0
        %5428 = vmatpush1.msra.mxu0 0.0
        %5429 = vmatprep.subr.mxu0 0.0
        %5430 = vmatpush1.msra.mxu0 0.0
        %5431 = vmatprep.subr.mxu0 0.0
        %5432 = vmatpush1.msra.mxu0 0.0
        %5433 = vmatprep.subr.mxu0 0.0
        %5434 = vmatpush1.msra.mxu0 0.0
        %5435 = vmatprep.subr.mxu0 0.0
        %5436 = vmatpush1.msra.mxu0 0.0
        %5437 = vmatprep.subr.mxu0 0.0
        %5438 = vmatpush1.msra.mxu0 0.0
        %5439 = vmatprep.subr.mxu0 0.0
        %5440 = vmatpush1.msra.mxu0 0.0
        %5441 = vmatprep.subr.mxu0 0.0
        %5442 = vmatpush1.msra.mxu0 0.0
        %5443 = vmatprep.subr.mxu0 0.0
        %5444 = vmatpush1.msra.mxu0 0.0
        %5445 = vmatprep.subr.mxu0 0.0
        %5446 = vmatpush1.msra.mxu0 0.0
        %5447 = vmatprep.subr.mxu0 0.0
        %5448 = vmatpush1.msra.mxu0 0.0
        %5449 = vmatprep.subr.mxu0 0.0
        %5450 = vmatpush1.msra.mxu0 0.0
        %5451 = vmatprep.subr.mxu0 0.0
        %5452 = vmatpush1.msra.mxu0 0.0
        %5453 = vmatprep.subr.mxu0 0.0
        %5454 = vmatpush1.msra.mxu0 0.0
        %5455 = vmatprep.mubr.f32.mxu0 0.0
        %v5456 = vand.u32 %v5014, 4294901760
        %5457 = vmatmul.mubr.f32.gmra.mrb[0].mxu0 %v5456
        %v5458 = vpop.f32.mrb[0].mxu0
        %v5459 = vadd.f32 %v5387, %v5458
        %v5460 = vpop.f32.mrb[0].mxu0
        %5461 = vdwg.mxu0
        %5463 = vrot.lane.b32.xlu0 %v3623, 32
        %v5464 = vpop.permute.xlu0 %5463
        %5467 = vrot.lane.b32.xlu0 %v4541, 64
        %v5468 = vpop.permute.xlu0 %5467
        %5471 = vrot.lane.b32.xlu0 %v5459, 96
        %v5472 = vpop.permute.xlu0 %5471
        %v5474 = vsel %vm1792, %v2704, %v5464
        %vm5475 = vcmask 523264
        %v5476 = vsel %vm5475, %v5474, %v5468
        %vm5477 = vcmask 785408
        %v5478 = vsel %vm5477, %v5476, %v5472
        %v5479 = vld [vmem:[#allocation7] sm:$0xff]
        %v5480 = vld [vmem:[#allocation7 + $0x8] sm:$0xff]
        %v5481 = vld [vmem:[#allocation7 + $0x10] sm:$0xff]
        %v5482 = vld [vmem:[#allocation7 + $0x18] sm:$0xff]
        %v5483 = vld [vmem:[#allocation7 + $0x20] sm:$0xff]
        %v5484 = vld [vmem:[#allocation7 + $0x28] sm:$0xff]
        %v5485 = vld [vmem:[#allocation7 + $0x30] sm:$0xff]
        %v5486 = vld [vmem:[#allocation7 + $0x38] sm:$0xff]
        %v5487 = vld [vmem:[#allocation7 + $0x40] sm:$0xff]
        %v5488 = vld [vmem:[#allocation7 + $0x48] sm:$0xff]
        %v5489 = vld [vmem:[#allocation7 + $0x50] sm:$0xff]
        %v5490 = vld [vmem:[#allocation7 + $0x58] sm:$0xff]
        %v5491 = vld [vmem:[#allocation7 + $0x60] sm:$0xff]
        %v5492 = vld [vmem:[#allocation7 + $0x68] sm:$0xff]
        %v5493 = vld [vmem:[#allocation7 + $0x70] sm:$0xff]
        %v5494 = vld [vmem:[#allocation7 + $0x78] sm:$0xff]
        %v5495 = vld [vmem:[%s3] sm:$0x1]
        %v5497 = vlaneseq
        %v5498 = vshrl.u32 %v5497, 7
        %v5499 = vsub.s32 0, %v5498
        %v5500 = vrot.slane %v5495, %v5499
        %5502 = vmatprep.subr.mxu0 0.0
        %v5503 = vand.u32 %v5479, 4294901760
        %5504 = vmatpush1.msra.mxu0 %v5503
        %5505 = vmatprep.subr.mxu0 0.0
        %v5506 = vand.u32 %v5480, 4294901760
        %5507 = vmatpush1.msra.mxu0 %v5506
        %5508 = vmatprep.subr.mxu0 0.0
        %v5509 = vand.u32 %v5481, 4294901760
        %5510 = vmatpush1.msra.mxu0 %v5509
        %5511 = vmatprep.subr.mxu0 0.0
        %v5512 = vand.u32 %v5482, 4294901760
        %5513 = vmatpush1.msra.mxu0 %v5512
        %5514 = vmatprep.subr.mxu0 0.0
        %v5515 = vand.u32 %v5483, 4294901760
        %5516 = vmatpush1.msra.mxu0 %v5515
        %5517 = vmatprep.subr.mxu0 0.0
        %v5518 = vand.u32 %v5484, 4294901760
        %5519 = vmatpush1.msra.mxu0 %v5518
        %5520 = vmatprep.subr.mxu0 0.0
        %v5521 = vand.u32 %v5485, 4294901760
        %5522 = vmatpush1.msra.mxu0 %v5521
        %5523 = vmatprep.subr.mxu0 0.0
        %v5524 = vand.u32 %v5486, 4294901760
        %5525 = vmatpush1.msra.mxu0 %v5524
        %5526 = vmatprep.subr.mxu0 0.0
        %v5527 = vand.u32 %v5487, 4294901760
        %5528 = vmatpush1.msra.mxu0 %v5527
        %5529 = vmatprep.subr.mxu0 0.0
        %v5530 = vand.u32 %v5488, 4294901760
        %5531 = vmatpush1.msra.mxu0 %v5530
        %5532 = vmatprep.subr.mxu0 0.0
        %v5533 = vand.u32 %v5489, 4294901760
        %5534 = vmatpush1.msra.mxu0 %v5533
        %5535 = vmatprep.subr.mxu0 0.0
        %v5536 = vand.u32 %v5490, 4294901760
        %5537 = vmatpush1.msra.mxu0 %v5536
        %5538 = vmatprep.subr.mxu0 0.0
        %v5539 = vand.u32 %v5491, 4294901760
        %5540 = vmatpush1.msra.mxu0 %v5539
        %5541 = vmatprep.subr.mxu0 0.0
        %v5542 = vand.u32 %v5492, 4294901760
        %5543 = vmatpush1.msra.mxu0 %v5542
        %5544 = vmatprep.subr.mxu0 0.0
        %v5545 = vand.u32 %v5493, 4294901760
        %5546 = vmatpush1.msra.mxu0 %v5545
        %5547 = vmatprep.subr.mxu0 0.0
        %v5548 = vand.u32 %v5494, 4294901760
        %5549 = vmatpush1.msra.mxu0 %v5548
        %5550 = vmatprep.subr.mxu0 0.0
        %5551 = vmatpush1.msra.mxu0 0.0
        %5552 = vmatprep.subr.mxu0 0.0
        %5553 = vmatpush1.msra.mxu0 0.0
        %5554 = vmatprep.subr.mxu0 0.0
        %5555 = vmatpush1.msra.mxu0 0.0
        %5556 = vmatprep.subr.mxu0 0.0
        %5557 = vmatpush1.msra.mxu0 0.0
        %5558 = vmatprep.subr.mxu0 0.0
        %5559 = vmatpush1.msra.mxu0 0.0
        %5560 = vmatprep.subr.mxu0 0.0
        %5561 = vmatpush1.msra.mxu0 0.0
        %5562 = vmatprep.subr.mxu0 0.0
        %5563 = vmatpush1.msra.mxu0 0.0
        %5564 = vmatprep.subr.mxu0 0.0
        %5565 = vmatpush1.msra.mxu0 0.0
        %5566 = vmatprep.subr.mxu0 0.0
        %5567 = vmatpush1.msra.mxu0 0.0
        %5568 = vmatprep.subr.mxu0 0.0
        %5569 = vmatpush1.msra.mxu0 0.0
        %5570 = vmatprep.subr.mxu0 0.0
        %5571 = vmatpush1.msra.mxu0 0.0
        %5572 = vmatprep.subr.mxu0 0.0
        %5573 = vmatpush1.msra.mxu0 0.0
        %5574 = vmatprep.subr.mxu0 0.0
        %5575 = vmatpush1.msra.mxu0 0.0
        %5576 = vmatprep.subr.mxu0 0.0
        %5577 = vmatpush1.msra.mxu0 0.0
        %5578 = vmatprep.subr.mxu0 0.0
        %5579 = vmatpush1.msra.mxu0 0.0
        %5580 = vmatprep.subr.mxu0 0.0
        %5581 = vmatpush1.msra.mxu0 0.0
        %5582 = vmatprep.mubr.f32.mxu0 0.0
        %v5583 = vand.u32 %v5478, 4294901760
        %v5584 = vsub.f32 %v5478, %v5583
        %v5585 = vand.u32 %v5584, 4294901760
        %v5586 = vsub.f32 %v5584, %v5585
        %v5587 = vand.u32 %v5586, 4294901760
        %5588 = vmatmul.mubr.f32.gmra.mrb[0].mxu0 %v5587
        %v5589 = vpop.f32.mrb[0].mxu0
        %v5590 = vadd.f32 %v5500, %v5589
        %v5591 = vpop.f32.mrb[0].mxu0
        %5592 = vdwg.mxu0
        %5593 = vmatprep.subr.mxu0 0.0
        %v5594 = vand.u32 %v5479, 4294901760
        %v5595 = vsub.f32 %v5479, %v5594
        %v5596 = vand.u32 %v5595, 4294901760
        %v5597 = vsub.f32 %v5595, %v5596
        %v5598 = vand.u32 %v5597, 4294901760
        %5599 = vmatpush1.msra.mxu0 %v5598
        %5600 = vmatprep.subr.mxu0 0.0
        %v5601 = vand.u32 %v5480, 4294901760
        %v5602 = vsub.f32 %v5480, %v5601
        %v5603 = vand.u32 %v5602, 4294901760
        %v5604 = vsub.f32 %v5602, %v5603
        %v5605 = vand.u32 %v5604, 4294901760
        %5606 = vmatpush1.msra.mxu0 %v5605
        %5607 = vmatprep.subr.mxu0 0.0
        %v5608 = vand.u32 %v5481, 4294901760
        %v5609 = vsub.f32 %v5481, %v5608
        %v5610 = vand.u32 %v5609, 4294901760
        %v5611 = vsub.f32 %v5609, %v5610
        %v5612 = vand.u32 %v5611, 4294901760
        %5613 = vmatpush1.msra.mxu0 %v5612
        %5614 = vmatprep.subr.mxu0 0.0
        %v5615 = vand.u32 %v5482, 4294901760
        %v5616 = vsub.f32 %v5482, %v5615
        %v5617 = vand.u32 %v5616, 4294901760
        %v5618 = vsub.f32 %v5616, %v5617
        %v5619 = vand.u32 %v5618, 4294901760
        %5620 = vmatpush1.msra.mxu0 %v5619
        %5621 = vmatprep.subr.mxu0 0.0
        %v5622 = vand.u32 %v5483, 4294901760
        %v5623 = vsub.f32 %v5483, %v5622
        %v5624 = vand.u32 %v5623, 4294901760
        %v5625 = vsub.f32 %v5623, %v5624
        %v5626 = vand.u32 %v5625, 4294901760
        %5627 = vmatpush1.msra.mxu0 %v5626
        %5628 = vmatprep.subr.mxu0 0.0
        %v5629 = vand.u32 %v5484, 4294901760
        %v5630 = vsub.f32 %v5484, %v5629
        %v5631 = vand.u32 %v5630, 4294901760
        %v5632 = vsub.f32 %v5630, %v5631
        %v5633 = vand.u32 %v5632, 4294901760
        %5634 = vmatpush1.msra.mxu0 %v5633
        %5635 = vmatprep.subr.mxu0 0.0
        %v5636 = vand.u32 %v5485, 4294901760
        %v5637 = vsub.f32 %v5485, %v5636
        %v5638 = vand.u32 %v5637, 4294901760
        %v5639 = vsub.f32 %v5637, %v5638
        %v5640 = vand.u32 %v5639, 4294901760
        %5641 = vmatpush1.msra.mxu0 %v5640
        %5642 = vmatprep.subr.mxu0 0.0
        %v5643 = vand.u32 %v5486, 4294901760
        %v5644 = vsub.f32 %v5486, %v5643
        %v5645 = vand.u32 %v5644, 4294901760
        %v5646 = vsub.f32 %v5644, %v5645
        %v5647 = vand.u32 %v5646, 4294901760
        %5648 = vmatpush1.msra.mxu0 %v5647
        %5649 = vmatprep.subr.mxu0 0.0
        %v5650 = vand.u32 %v5487, 4294901760
        %v5651 = vsub.f32 %v5487, %v5650
        %v5652 = vand.u32 %v5651, 4294901760
        %v5653 = vsub.f32 %v5651, %v5652
        %v5654 = vand.u32 %v5653, 4294901760
        %5655 = vmatpush1.msra.mxu0 %v5654
        %5656 = vmatprep.subr.mxu0 0.0
        %v5657 = vand.u32 %v5488, 4294901760
        %v5658 = vsub.f32 %v5488, %v5657
        %v5659 = vand.u32 %v5658, 4294901760
        %v5660 = vsub.f32 %v5658, %v5659
        %v5661 = vand.u32 %v5660, 4294901760
        %5662 = vmatpush1.msra.mxu0 %v5661
        %5663 = vmatprep.subr.mxu0 0.0
        %v5664 = vand.u32 %v5489, 4294901760
        %v5665 = vsub.f32 %v5489, %v5664
        %v5666 = vand.u32 %v5665, 4294901760
        %v5667 = vsub.f32 %v5665, %v5666
        %v5668 = vand.u32 %v5667, 4294901760
        %5669 = vmatpush1.msra.mxu0 %v5668
        %5670 = vmatprep.subr.mxu0 0.0
        %v5671 = vand.u32 %v5490, 4294901760
        %v5672 = vsub.f32 %v5490, %v5671
        %v5673 = vand.u32 %v5672, 4294901760
        %v5674 = vsub.f32 %v5672, %v5673
        %v5675 = vand.u32 %v5674, 4294901760
        %5676 = vmatpush1.msra.mxu0 %v5675
        %5677 = vmatprep.subr.mxu0 0.0
        %v5678 = vand.u32 %v5491, 4294901760
        %v5679 = vsub.f32 %v5491, %v5678
        %v5680 = vand.u32 %v5679, 4294901760
        %v5681 = vsub.f32 %v5679, %v5680
        %v5682 = vand.u32 %v5681, 4294901760
        %5683 = vmatpush1.msra.mxu0 %v5682
        %5684 = vmatprep.subr.mxu0 0.0
        %v5685 = vand.u32 %v5492, 4294901760
        %v5686 = vsub.f32 %v5492, %v5685
        %v5687 = vand.u32 %v5686, 4294901760
        %v5688 = vsub.f32 %v5686, %v5687
        %v5689 = vand.u32 %v5688, 4294901760
        %5690 = vmatpush1.msra.mxu0 %v5689
        %5691 = vmatprep.subr.mxu0 0.0
        %v5692 = vand.u32 %v5493, 4294901760
        %v5693 = vsub.f32 %v5493, %v5692
        %v5694 = vand.u32 %v5693, 4294901760
        %v5695 = vsub.f32 %v5693, %v5694
        %v5696 = vand.u32 %v5695, 4294901760
        %5697 = vmatpush1.msra.mxu0 %v5696
        %5698 = vmatprep.subr.mxu0 0.0
        %v5699 = vand.u32 %v5494, 4294901760
        %v5700 = vsub.f32 %v5494, %v5699
        %v5701 = vand.u32 %v5700, 4294901760
        %v5702 = vsub.f32 %v5700, %v5701
        %v5703 = vand.u32 %v5702, 4294901760
        %5704 = vmatpush1.msra.mxu0 %v5703
        %5705 = vmatprep.subr.mxu0 0.0
        %5706 = vmatpush1.msra.mxu0 0.0
        %5707 = vmatprep.subr.mxu0 0.0
        %5708 = vmatpush1.msra.mxu0 0.0
        %5709 = vmatprep.subr.mxu0 0.0
        %5710 = vmatpush1.msra.mxu0 0.0
        %5711 = vmatprep.subr.mxu0 0.0
        %5712 = vmatpush1.msra.mxu0 0.0
        %5713 = vmatprep.subr.mxu0 0.0
        %5714 = vmatpush1.msra.mxu0 0.0
        %5715 = vmatprep.subr.mxu0 0.0
        %5716 = vmatpush1.msra.mxu0 0.0
        %5717 = vmatprep.subr.mxu0 0.0
        %5718 = vmatpush1.msra.mxu0 0.0
        %5719 = vmatprep.subr.mxu0 0.0
        %5720 = vmatpush1.msra.mxu0 0.0
        %5721 = vmatprep.subr.mxu0 0.0
        %5722 = vmatpush1.msra.mxu0 0.0
        %5723 = vmatprep.subr.mxu0 0.0
        %5724 = vmatpush1.msra.mxu0 0.0
        %5725 = vmatprep.subr.mxu0 0.0
        %5726 = vmatpush1.msra.mxu0 0.0
        %5727 = vmatprep.subr.mxu0 0.0
        %5728 = vmatpush1.msra.mxu0 0.0
        %5729 = vmatprep.subr.mxu0 0.0
        %5730 = vmatpush1.msra.mxu0 0.0
        %5731 = vmatprep.subr.mxu0 0.0
        %5732 = vmatpush1.msra.mxu0 0.0
        %5733 = vmatprep.subr.mxu0 0.0
        %5734 = vmatpush1.msra.mxu0 0.0
        %5735 = vmatprep.subr.mxu0 0.0
        %5736 = vmatpush1.msra.mxu0 0.0
        %5737 = vmatprep.mubr.f32.mxu0 0.0
        %v5738 = vand.u32 %v5478, 4294901760
        %5739 = vmatmul.mubr.f32.gmra.mrb[0].mxu0 %v5738
        %v5740 = vpop.f32.mrb[0].mxu0
        %v5741 = vadd.f32 %v5590, %v5740
        %v5742 = vpop.f32.mrb[0].mxu0
        %5743 = vdwg.mxu0
        %5744 = vmatprep.subr.mxu0 0.0
        %v5745 = vand.u32 %v5479, 4294901760
        %v5746 = vsub.f32 %v5479, %v5745
        %5747 = vmatpush1.msra.mxu0 %v5746
        %5748 = vmatprep.subr.mxu0 0.0
        %v5749 = vand.u32 %v5480, 4294901760
        %v5750 = vsub.f32 %v5480, %v5749
        %5751 = vmatpush1.msra.mxu0 %v5750
        %5752 = vmatprep.subr.mxu0 0.0
        %v5753 = vand.u32 %v5481, 4294901760
        %v5754 = vsub.f32 %v5481, %v5753
        %5755 = vmatpush1.msra.mxu0 %v5754
        %5756 = vmatprep.subr.mxu0 0.0
        %v5757 = vand.u32 %v5482, 4294901760
        %v5758 = vsub.f32 %v5482, %v5757
        %5759 = vmatpush1.msra.mxu0 %v5758
        %5760 = vmatprep.subr.mxu0 0.0
        %v5761 = vand.u32 %v5483, 4294901760
        %v5762 = vsub.f32 %v5483, %v5761
        %5763 = vmatpush1.msra.mxu0 %v5762
        %5764 = vmatprep.subr.mxu0 0.0
        %v5765 = vand.u32 %v5484, 4294901760
        %v5766 = vsub.f32 %v5484, %v5765
        %5767 = vmatpush1.msra.mxu0 %v5766
        %5768 = vmatprep.subr.mxu0 0.0
        %v5769 = vand.u32 %v5485, 4294901760
        %v5770 = vsub.f32 %v5485, %v5769
        %5771 = vmatpush1.msra.mxu0 %v5770
        %5772 = vmatprep.subr.mxu0 0.0
        %v5773 = vand.u32 %v5486, 4294901760
        %v5774 = vsub.f32 %v5486, %v5773
        %5775 = vmatpush1.msra.mxu0 %v5774
        %5776 = vmatprep.subr.mxu0 0.0
        %v5777 = vand.u32 %v5487, 4294901760
        %v5778 = vsub.f32 %v5487, %v5777
        %5779 = vmatpush1.msra.mxu0 %v5778
        %5780 = vmatprep.subr.mxu0 0.0
        %v5781 = vand.u32 %v5488, 4294901760
        %v5782 = vsub.f32 %v5488, %v5781
        %5783 = vmatpush1.msra.mxu0 %v5782
        %5784 = vmatprep.subr.mxu0 0.0
        %v5785 = vand.u32 %v5489, 4294901760
        %v5786 = vsub.f32 %v5489, %v5785
        %5787 = vmatpush1.msra.mxu0 %v5786
        %5788 = vmatprep.subr.mxu0 0.0
        %v5789 = vand.u32 %v5490, 4294901760
        %v5790 = vsub.f32 %v5490, %v5789
        %5791 = vmatpush1.msra.mxu0 %v5790
        %5792 = vmatprep.subr.mxu0 0.0
        %v5793 = vand.u32 %v5491, 4294901760
        %v5794 = vsub.f32 %v5491, %v5793
        %5795 = vmatpush1.msra.mxu0 %v5794
        %5796 = vmatprep.subr.mxu0 0.0
        %v5797 = vand.u32 %v5492, 4294901760
        %v5798 = vsub.f32 %v5492, %v5797
        %5799 = vmatpush1.msra.mxu0 %v5798
        %5800 = vmatprep.subr.mxu0 0.0
        %v5801 = vand.u32 %v5493, 4294901760
        %v5802 = vsub.f32 %v5493, %v5801
        %5803 = vmatpush1.msra.mxu0 %v5802
        %5804 = vmatprep.subr.mxu0 0.0
        %v5805 = vand.u32 %v5494, 4294901760
        %v5806 = vsub.f32 %v5494, %v5805
        %5807 = vmatpush1.msra.mxu0 %v5806
        %5808 = vmatprep.subr.mxu0 0.0
        %5809 = vmatpush1.msra.mxu0 0.0
        %5810 = vmatprep.subr.mxu0 0.0
        %5811 = vmatpush1.msra.mxu0 0.0
        %5812 = vmatprep.subr.mxu0 0.0
        %5813 = vmatpush1.msra.mxu0 0.0
        %5814 = vmatprep.subr.mxu0 0.0
        %5815 = vmatpush1.msra.mxu0 0.0
        %5816 = vmatprep.subr.mxu0 0.0
        %5817 = vmatpush1.msra.mxu0 0.0
        %5818 = vmatprep.subr.mxu0 0.0
        %5819 = vmatpush1.msra.mxu0 0.0
        %5820 = vmatprep.subr.mxu0 0.0
        %5821 = vmatpush1.msra.mxu0 0.0
        %5822 = vmatprep.subr.mxu0 0.0
        %5823 = vmatpush1.msra.mxu0 0.0
        %5824 = vmatprep.subr.mxu0 0.0
        %5825 = vmatpush1.msra.mxu0 0.0
        %5826 = vmatprep.subr.mxu0 0.0
        %5827 = vmatpush1.msra.mxu0 0.0
        %5828 = vmatprep.subr.mxu0 0.0
        %5829 = vmatpush1.msra.mxu0 0.0
        %5830 = vmatprep.subr.mxu0 0.0
        %5831 = vmatpush1.msra.mxu0 0.0
        %5832 = vmatprep.subr.mxu0 0.0
        %5833 = vmatpush1.msra.mxu0 0.0
        %5834 = vmatprep.subr.mxu0 0.0
        %5835 = vmatpush1.msra.mxu0 0.0
        %5836 = vmatprep.subr.mxu0 0.0
        %5837 = vmatpush1.msra.mxu0 0.0
        %5838 = vmatprep.subr.mxu0 0.0
        %5839 = vmatpush1.msra.mxu0 0.0
        %5840 = vmatprep.mubr.f32.mxu0 0.0
        %v5841 = vand.u32 %v5478, 4294901760
        %v5842 = vsub.f32 %v5478, %v5841
        %5843 = vmatmul.mubr.f32.gmra.mrb[0].mxu0 %v5842
        %v5844 = vpop.f32.mrb[0].mxu0
        %v5845 = vadd.f32 %v5741, %v5844
        %v5846 = vpop.f32.mrb[0].mxu0
        %5847 = vdwg.mxu0
        %5848 = vmatprep.subr.mxu0 0.0
        %v5849 = vand.u32 %v5479, 4294901760
        %5850 = vmatpush1.msra.mxu0 %v5849
        %5851 = vmatprep.subr.mxu0 0.0
        %v5852 = vand.u32 %v5480, 4294901760
        %5853 = vmatpush1.msra.mxu0 %v5852
        %5854 = vmatprep.subr.mxu0 0.0
        %v5855 = vand.u32 %v5481, 4294901760
        %5856 = vmatpush1.msra.mxu0 %v5855
        %5857 = vmatprep.subr.mxu0 0.0
        %v5858 = vand.u32 %v5482, 4294901760
        %5859 = vmatpush1.msra.mxu0 %v5858
        %5860 = vmatprep.subr.mxu0 0.0
        %v5861 = vand.u32 %v5483, 4294901760
        %5862 = vmatpush1.msra.mxu0 %v5861
        %5863 = vmatprep.subr.mxu0 0.0
        %v5864 = vand.u32 %v5484, 4294901760
        %5865 = vmatpush1.msra.mxu0 %v5864
        %5866 = vmatprep.subr.mxu0 0.0
        %v5867 = vand.u32 %v5485, 4294901760
        %5868 = vmatpush1.msra.mxu0 %v5867
        %5869 = vmatprep.subr.mxu0 0.0
        %v5870 = vand.u32 %v5486, 4294901760
        %5871 = vmatpush1.msra.mxu0 %v5870
        %5872 = vmatprep.subr.mxu0 0.0
        %v5873 = vand.u32 %v5487, 4294901760
        %5874 = vmatpush1.msra.mxu0 %v5873
        %5875 = vmatprep.subr.mxu0 0.0
        %v5876 = vand.u32 %v5488, 4294901760
        %5877 = vmatpush1.msra.mxu0 %v5876
        %5878 = vmatprep.subr.mxu0 0.0
        %v5879 = vand.u32 %v5489, 4294901760
        %5880 = vmatpush1.msra.mxu0 %v5879
        %5881 = vmatprep.subr.mxu0 0.0
        %v5882 = vand.u32 %v5490, 4294901760
        %5883 = vmatpush1.msra.mxu0 %v5882
        %5884 = vmatprep.subr.mxu0 0.0
        %v5885 = vand.u32 %v5491, 4294901760
        %5886 = vmatpush1.msra.mxu0 %v5885
        %5887 = vmatprep.subr.mxu0 0.0
        %v5888 = vand.u32 %v5492, 4294901760
        %5889 = vmatpush1.msra.mxu0 %v5888
        %5890 = vmatprep.subr.mxu0 0.0
        %v5891 = vand.u32 %v5493, 4294901760
        %5892 = vmatpush1.msra.mxu0 %v5891
        %5893 = vmatprep.subr.mxu0 0.0
        %v5894 = vand.u32 %v5494, 4294901760
        %5895 = vmatpush1.msra.mxu0 %v5894
        %5896 = vmatprep.subr.mxu0 0.0
        %5897 = vmatpush1.msra.mxu0 0.0
        %5898 = vmatprep.subr.mxu0 0.0
        %5899 = vmatpush1.msra.mxu0 0.0
        %5900 = vmatprep.subr.mxu0 0.0
        %5901 = vmatpush1.msra.mxu0 0.0
        %5902 = vmatprep.subr.mxu0 0.0
        %5903 = vmatpush1.msra.mxu0 0.0
        %5904 = vmatprep.subr.mxu0 0.0
        %5905 = vmatpush1.msra.mxu0 0.0
        %5906 = vmatprep.subr.mxu0 0.0
        %5907 = vmatpush1.msra.mxu0 0.0
        %5908 = vmatprep.subr.mxu0 0.0
        %5909 = vmatpush1.msra.mxu0 0.0
        %5910 = vmatprep.subr.mxu0 0.0
        %5911 = vmatpush1.msra.mxu0 0.0
        %5912 = vmatprep.subr.mxu0 0.0
        %5913 = vmatpush1.msra.mxu0 0.0
        %5914 = vmatprep.subr.mxu0 0.0
        %5915 = vmatpush1.msra.mxu0 0.0
        %5916 = vmatprep.subr.mxu0 0.0
        %5917 = vmatpush1.msra.mxu0 0.0
        %5918 = vmatprep.subr.mxu0 0.0
        %5919 = vmatpush1.msra.mxu0 0.0
        %5920 = vmatprep.subr.mxu0 0.0
        %5921 = vmatpush1.msra.mxu0 0.0
        %5922 = vmatprep.subr.mxu0 0.0
        %5923 = vmatpush1.msra.mxu0 0.0
        %5924 = vmatprep.subr.mxu0 0.0
        %5925 = vmatpush1.msra.mxu0 0.0
        %5926 = vmatprep.subr.mxu0 0.0
        %5927 = vmatpush1.msra.mxu0 0.0
        %5928 = vmatprep.mubr.f32.mxu0 0.0
        %v5929 = vand.u32 %v5478, 4294901760
        %v5930 = vsub.f32 %v5478, %v5929
        %v5931 = vand.u32 %v5930, 4294901760
        %5932 = vmatmul.mubr.f32.gmra.mrb[0].mxu0 %v5931
        %v5933 = vpop.f32.mrb[0].mxu0
        %v5934 = vadd.f32 %v5845, %v5933
        %v5935 = vpop.f32.mrb[0].mxu0
        %5936 = vdwg.mxu0
        %5937 = vmatprep.subr.mxu0 0.0
        %v5938 = vand.u32 %v5479, 4294901760
        %v5939 = vsub.f32 %v5479, %v5938
        %v5940 = vand.u32 %v5939, 4294901760
        %5941 = vmatpush1.msra.mxu0 %v5940
        %5942 = vmatprep.subr.mxu0 0.0
        %v5943 = vand.u32 %v5480, 4294901760
        %v5944 = vsub.f32 %v5480, %v5943
        %v5945 = vand.u32 %v5944, 4294901760
        %5946 = vmatpush1.msra.mxu0 %v5945
        %5947 = vmatprep.subr.mxu0 0.0
        %v5948 = vand.u32 %v5481, 4294901760
        %v5949 = vsub.f32 %v5481, %v5948
        %v5950 = vand.u32 %v5949, 4294901760
        %5951 = vmatpush1.msra.mxu0 %v5950
        %5952 = vmatprep.subr.mxu0 0.0
        %v5953 = vand.u32 %v5482, 4294901760
        %v5954 = vsub.f32 %v5482, %v5953
        %v5955 = vand.u32 %v5954, 4294901760
        %5956 = vmatpush1.msra.mxu0 %v5955
        %5957 = vmatprep.subr.mxu0 0.0
        %v5958 = vand.u32 %v5483, 4294901760
        %v5959 = vsub.f32 %v5483, %v5958
        %v5960 = vand.u32 %v5959, 4294901760
        %5961 = vmatpush1.msra.mxu0 %v5960
        %5962 = vmatprep.subr.mxu0 0.0
        %v5963 = vand.u32 %v5484, 4294901760
        %v5964 = vsub.f32 %v5484, %v5963
        %v5965 = vand.u32 %v5964, 4294901760
        %5966 = vmatpush1.msra.mxu0 %v5965
        %5967 = vmatprep.subr.mxu0 0.0
        %v5968 = vand.u32 %v5485, 4294901760
        %v5969 = vsub.f32 %v5485, %v5968
        %v5970 = vand.u32 %v5969, 4294901760
        %5971 = vmatpush1.msra.mxu0 %v5970
        %5972 = vmatprep.subr.mxu0 0.0
        %v5973 = vand.u32 %v5486, 4294901760
        %v5974 = vsub.f32 %v5486, %v5973
        %v5975 = vand.u32 %v5974, 4294901760
        %5976 = vmatpush1.msra.mxu0 %v5975
        %5977 = vmatprep.subr.mxu0 0.0
        %v5978 = vand.u32 %v5487, 4294901760
        %v5979 = vsub.f32 %v5487, %v5978
        %v5980 = vand.u32 %v5979, 4294901760
        %5981 = vmatpush1.msra.mxu0 %v5980
        %5982 = vmatprep.subr.mxu0 0.0
        %v5983 = vand.u32 %v5488, 4294901760
        %v5984 = vsub.f32 %v5488, %v5983
        %v5985 = vand.u32 %v5984, 4294901760
        %5986 = vmatpush1.msra.mxu0 %v5985
        %5987 = vmatprep.subr.mxu0 0.0
        %v5988 = vand.u32 %v5489, 4294901760
        %v5989 = vsub.f32 %v5489, %v5988
        %v5990 = vand.u32 %v5989, 4294901760
        %5991 = vmatpush1.msra.mxu0 %v5990
        %5992 = vmatprep.subr.mxu0 0.0
        %v5993 = vand.u32 %v5490, 4294901760
        %v5994 = vsub.f32 %v5490, %v5993
        %v5995 = vand.u32 %v5994, 4294901760
        %5996 = vmatpush1.msra.mxu0 %v5995
        %5997 = vmatprep.subr.mxu0 0.0
        %v5998 = vand.u32 %v5491, 4294901760
        %v5999 = vsub.f32 %v5491, %v5998
        %v6000 = vand.u32 %v5999, 4294901760
        %6001 = vmatpush1.msra.mxu0 %v6000
        %6002 = vmatprep.subr.mxu0 0.0
        %v6003 = vand.u32 %v5492, 4294901760
        %v6004 = vsub.f32 %v5492, %v6003
        %v6005 = vand.u32 %v6004, 4294901760
        %6006 = vmatpush1.msra.mxu0 %v6005
        %6007 = vmatprep.subr.mxu0 0.0
        %v6008 = vand.u32 %v5493, 4294901760
        %v6009 = vsub.f32 %v5493, %v6008
        %v6010 = vand.u32 %v6009, 4294901760
        %6011 = vmatpush1.msra.mxu0 %v6010
        %6012 = vmatprep.subr.mxu0 0.0
        %v6013 = vand.u32 %v5494, 4294901760
        %v6014 = vsub.f32 %v5494, %v6013
        %v6015 = vand.u32 %v6014, 4294901760
        %6016 = vmatpush1.msra.mxu0 %v6015
        %6017 = vmatprep.subr.mxu0 0.0
        %6018 = vmatpush1.msra.mxu0 0.0
        %6019 = vmatprep.subr.mxu0 0.0
        %6020 = vmatpush1.msra.mxu0 0.0
        %6021 = vmatprep.subr.mxu0 0.0
        %6022 = vmatpush1.msra.mxu0 0.0
        %6023 = vmatprep.subr.mxu0 0.0
        %6024 = vmatpush1.msra.mxu0 0.0
        %6025 = vmatprep.subr.mxu0 0.0
        %6026 = vmatpush1.msra.mxu0 0.0
        %6027 = vmatprep.subr.mxu0 0.0
        %6028 = vmatpush1.msra.mxu0 0.0
        %6029 = vmatprep.subr.mxu0 0.0
        %6030 = vmatpush1.msra.mxu0 0.0
        %6031 = vmatprep.subr.mxu0 0.0
        %6032 = vmatpush1.msra.mxu0 0.0
        %6033 = vmatprep.subr.mxu0 0.0
        %6034 = vmatpush1.msra.mxu0 0.0
        %6035 = vmatprep.subr.mxu0 0.0
        %6036 = vmatpush1.msra.mxu0 0.0
        %6037 = vmatprep.subr.mxu0 0.0
        %6038 = vmatpush1.msra.mxu0 0.0
        %6039 = vmatprep.subr.mxu0 0.0
        %6040 = vmatpush1.msra.mxu0 0.0
        %6041 = vmatprep.subr.mxu0 0.0
        %6042 = vmatpush1.msra.mxu0 0.0
        %6043 = vmatprep.subr.mxu0 0.0
        %6044 = vmatpush1.msra.mxu0 0.0
        %6045 = vmatprep.subr.mxu0 0.0
        %6046 = vmatpush1.msra.mxu0 0.0
        %6047 = vmatprep.subr.mxu0 0.0
        %6048 = vmatpush1.msra.mxu0 0.0
        %6049 = vmatprep.mubr.f32.mxu0 0.0
        %v6050 = vand.u32 %v5478, 4294901760
        %6051 = vmatmul.mubr.f32.gmra.mrb[0].mxu0 %v6050
        %v6052 = vpop.f32.mrb[0].mxu0
        %v6053 = vadd.f32 %v5934, %v6052
        %v6054 = vpop.f32.mrb[0].mxu0
        %6055 = vdwg.mxu0
        %6056 = vmatprep.subr.mxu0 0.0
        %v6057 = vand.u32 %v5479, 4294901760
        %6058 = vmatpush1.msra.mxu0 %v6057
        %6059 = vmatprep.subr.mxu0 0.0
        %v6060 = vand.u32 %v5480, 4294901760
        %6061 = vmatpush1.msra.mxu0 %v6060
        %6062 = vmatprep.subr.mxu0 0.0
        %v6063 = vand.u32 %v5481, 4294901760
        %6064 = vmatpush1.msra.mxu0 %v6063
        %6065 = vmatprep.subr.mxu0 0.0
        %v6066 = vand.u32 %v5482, 4294901760
        %6067 = vmatpush1.msra.mxu0 %v6066
        %6068 = vmatprep.subr.mxu0 0.0
        %v6069 = vand.u32 %v5483, 4294901760
        %6070 = vmatpush1.msra.mxu0 %v6069
        %6071 = vmatprep.subr.mxu0 0.0
        %v6072 = vand.u32 %v5484, 4294901760
        %6073 = vmatpush1.msra.mxu0 %v6072
        %6074 = vmatprep.subr.mxu0 0.0
        %v6075 = vand.u32 %v5485, 4294901760
        %6076 = vmatpush1.msra.mxu0 %v6075
        %6077 = vmatprep.subr.mxu0 0.0
        %v6078 = vand.u32 %v5486, 4294901760
        %6079 = vmatpush1.msra.mxu0 %v6078
        %6080 = vmatprep.subr.mxu0 0.0
        %v6081 = vand.u32 %v5487, 4294901760
        %6082 = vmatpush1.msra.mxu0 %v6081
        %6083 = vmatprep.subr.mxu0 0.0
        %v6084 = vand.u32 %v5488, 4294901760
        %6085 = vmatpush1.msra.mxu0 %v6084
        %6086 = vmatprep.subr.mxu0 0.0
        %v6087 = vand.u32 %v5489, 4294901760
        %6088 = vmatpush1.msra.mxu0 %v6087
        %6089 = vmatprep.subr.mxu0 0.0
        %v6090 = vand.u32 %v5490, 4294901760
        %6091 = vmatpush1.msra.mxu0 %v6090
        %6092 = vmatprep.subr.mxu0 0.0
        %v6093 = vand.u32 %v5491, 4294901760
        %6094 = vmatpush1.msra.mxu0 %v6093
        %6095 = vmatprep.subr.mxu0 0.0
        %v6096 = vand.u32 %v5492, 4294901760
        %6097 = vmatpush1.msra.mxu0 %v6096
        %6098 = vmatprep.subr.mxu0 0.0
        %v6099 = vand.u32 %v5493, 4294901760
        %6100 = vmatpush1.msra.mxu0 %v6099
        %6101 = vmatprep.subr.mxu0 0.0
        %v6102 = vand.u32 %v5494, 4294901760
        %6103 = vmatpush1.msra.mxu0 %v6102
        %6104 = vmatprep.subr.mxu0 0.0
        %6105 = vmatpush1.msra.mxu0 0.0
        %6106 = vmatprep.subr.mxu0 0.0
        %6107 = vmatpush1.msra.mxu0 0.0
        %6108 = vmatprep.subr.mxu0 0.0
        %6109 = vmatpush1.msra.mxu0 0.0
        %6110 = vmatprep.subr.mxu0 0.0
        %6111 = vmatpush1.msra.mxu0 0.0
        %6112 = vmatprep.subr.mxu0 0.0
        %6113 = vmatpush1.msra.mxu0 0.0
        %6114 = vmatprep.subr.mxu0 0.0
        %6115 = vmatpush1.msra.mxu0 0.0
        %6116 = vmatprep.subr.mxu0 0.0
        %6117 = vmatpush1.msra.mxu0 0.0
        %6118 = vmatprep.subr.mxu0 0.0
        %6119 = vmatpush1.msra.mxu0 0.0
        %6120 = vmatprep.subr.mxu0 0.0
        %6121 = vmatpush1.msra.mxu0 0.0
        %6122 = vmatprep.subr.mxu0 0.0
        %6123 = vmatpush1.msra.mxu0 0.0
        %6124 = vmatprep.subr.mxu0 0.0
        %6125 = vmatpush1.msra.mxu0 0.0
        %6126 = vmatprep.subr.mxu0 0.0
        %6127 = vmatpush1.msra.mxu0 0.0
        %6128 = vmatprep.subr.mxu0 0.0
        %6129 = vmatpush1.msra.mxu0 0.0
        %6130 = vmatprep.subr.mxu0 0.0
        %6131 = vmatpush1.msra.mxu0 0.0
        %6132 = vmatprep.subr.mxu0 0.0
        %6133 = vmatpush1.msra.mxu0 0.0
        %6134 = vmatprep.subr.mxu0 0.0
        %6135 = vmatpush1.msra.mxu0 0.0
        %6136 = vmatprep.mubr.f32.mxu0 0.0
        %v6137 = vand.u32 %v5478, 4294901760
        %6138 = vmatmul.mubr.f32.gmra.mrb[0].mxu0 %v6137
        %v6139 = vpop.f32.mrb[0].mxu0
        %v6140 = vadd.f32 %v6053, %v6139
        %v6141 = vpop.f32.mrb[0].mxu0
        %6142 = vdwg.mxu0
        %6143 = vst [vmem:[%s241] sm:$0xff] %v6140
        %s6144 = sand.u32 %s119, 1
        %s6145 = scalar_lea.sflag [#allocation4], %s6144
        %s6146 = sand.u32 %s119, 1
        %s6147 = smul.addr %s6146, 8
        %s6148 = scalar_lea.vmem [#allocation8], %s6147
        // Predicated region
        $region49: #{tpu_custom_call.1} parent=35 // pred_check
          %p6149 = pneg %p129
        $region50: #{tpu_custom_call.1} parent=35 // pred_check_branch
          %6151 = sbr.rel (%p6149) target = $region52
        $region51: #{tpu_custom_call.1} parent=35 // pred_region
          %s6153 = ssub.s32 128, 128
          %6154 = vsyncadd %s6145, %s6153
          %s6155 = smul.addr %s22, 128
          %s6156 = scalar_lea.hbm %s4, %s6155
          %s6158 = sshll.u32 %s6148, 4
          %s6159 = int_to_ptr.vmem [resolvable:$true] %s6158
          %6161 = dma.vmem_to_hbm [thread:$0]  %s6159, 128, %s6156, %s6145
        $region52: #{tpu_custom_call.1} parent=35 // pred_fallthru
          _
      $region36: #{tpu_custom_call.1} parent=5 // pred_fallthru
        _
      %p6162 = scmp.le.s32.totalorder 2, %s17
      // Predicated region
      $region53: #{tpu_custom_call.1} parent=5 // pred_check
        %p6163 = pneg %p6162
      $region54: #{tpu_custom_call.1} parent=5 // pred_check_branch
        %6165 = sbr.rel (%p6163) target = $region56
      $region55: #{tpu_custom_call.1} parent=5 // pred_region
        %s6166 = ssub.s32 %s17, 2
        // Predicated region
        $region57: #{tpu_custom_call.1} parent=55 // pred_check
          %p6167 = pneg %p135
        $region58: #{tpu_custom_call.1} parent=55 // pred_check_branch
          %6169 = sbr.rel (%p6167) target = $region60
        $region59: #{tpu_custom_call.1} parent=55 // pred_region
          %s6170 = sand.u32 %s120, 1
          %s6171 = scalar_lea.sflag [#allocation4], %s6170
          %s6172 = sand.u32 %s120, 1
          %s6173 = smul.addr %s6172, 8
          %s6174 = scalar_lea.vmem [#allocation8], %s6173
          %6175 = dma.done %s6171, 128
        $region60: #{tpu_custom_call.1} parent=55 // pred_fallthru
          _
      $region56: #{tpu_custom_call.1} parent=5 // pred_fallthru
        _
    $region6: #{tpu_custom_call.1} parent=1 // loop_footer
      %s21 = sadd.s32 1, %s17
    $region7: #{tpu_custom_call.1} parent=1 // loop_footer_branch
      %16 = sbr.rel target = $region3
    $region8: #{tpu_custom_call.1} parent=1 // loop_exit
      _
    %6176 = vsyncpa [#allocation3], 1
    %s6177 = scalar_lea.sflag [#allocation3], 1
    %6178 = vsyncpa %s6177, 1
    %6179 = vsyncpa [#allocation6], 1
    %6180 = vsyncpa [#allocation4], 1
    %s6181 = scalar_lea.sflag [#allocation4], 1
    %6182 = vsyncpa %s6181, 1

</llo_original>
